<compile_context>
chip_gen: v7x
topology: tpu7x:2x2x1
jax: 0.10.0
libtpu: 0.0.40
codegen_flags: <defaults>
</compile_context>

<pallas_src>
import functools

import jax
import jax.numpy as jnp
from jax.experimental import pallas as pl
from jax.experimental.pallas import tpu as pltpu


def _round_up(n, m):
    return ((n + m - 1) // m) * m


# ----------------------------------------------------------------------------
# Kernel 1: conv (as matmul over the 4 pooling-tap patch matrices, transposed)
#           fused with MaxPool2d(2, 2) + ReLU.
# ----------------------------------------------------------------------------
def _conv_pool_relu_kernel(p_ref, w_ref, b_ref, o_ref):
    # p_ref: (4, K, TM) bf16   -- the 4 pooling taps of im2col patches^T
    # w_ref: (OC, K)    bf16
    # b_ref: (OC, 1)    f32
    # o_ref: (OC, TM)   f32    -- lane-dense: M on lanes
    w = w_ref[...]
    acc = jnp.dot(w, p_ref[0], preferred_element_type=jnp.float32)
    for t in range(1, 4):
        acc = jnp.maximum(acc, jnp.dot(w, p_ref[t],
                                       preferred_element_type=jnp.float32))
    o_ref[...] = jnp.maximum(acc + b_ref[...], 0.0)


def conv_pool_relu(x, w, b, *, tile_m=512):
    """Conv2d(valid, stride 1) -> MaxPool2d(2,2) -> ReLU.  NCHW in / NCHW out."""
    B, C, H, W = x.shape
    OC, _, KH, KW = w.shape
    OH, OW = H - KH + 1, W - KW + 1
    PH, PW = OH // 2, OW // 2
    K = C * KH * KW
    M = B * PH * PW

    # ---- XLA glue: build the 4 pooling-tap patch matrices, transposed (K, M).
    # Row ordering k = (c, ki, kj) matches w.reshape(OC, K); column ordering
    # m = (b, py, px).
    # TODO(synk): patch extraction (im2col) still runs as XLA slicing/stack; a
    # fully fused version needs in-kernel (C,OH,OW)->(C,OH*OW) reshapes.
    taps = []
    for dy in range(2):
        for dx in range(2):
            rows = []
            for ki in range(KH):
                for kj in range(KW):
                    rows.append(
                        x[:, :, dy + ki:dy + ki + 2 * PH:2,
                              dx + kj:dx + kj + 2 * PW:2])      # (B, C, PH, PW)
            r = jnp.stack(rows, axis=0)                         # (KH*KW, B, C, PH, PW)
            r = r.transpose(2, 0, 1, 3, 4)                      # (C, KH*KW, B, PH, PW)
            taps.append(r.reshape(K, M))
    patches = jnp.stack(taps, axis=0)                           # (4, K, M)

    TM = min(tile_m, _round_up(M, 128))                         # lane-dense tiles
    M_pad = _round_up(M, TM)
    patches = jnp.pad(patches, ((0, 0), (0, 0), (0, M_pad - M))).astype(jnp.bfloat16)
    w_mat = w.reshape(OC, K).astype(jnp.bfloat16)
    b_col = b.reshape(OC, 1).astype(jnp.float32)

    flops = 2 * 4 * OC * K * M_pad
    bytes_accessed = (patches.size * 2 + w_mat.size * 2
                      + b_col.size * 4 + OC * M_pad * 4)

    out = pl.pallas_call(
        _conv_pool_relu_kernel,
        out_shape=jax.ShapeDtypeStruct((OC, M_pad), jnp.float32),
        grid=(M_pad // TM,),
        in_specs=[
            pl.BlockSpec((4, K, TM), lambda i: (0, 0, i)),
            pl.BlockSpec((OC, K), lambda i: (0, 0)),
            pl.BlockSpec((OC, 1), lambda i: (0, 0)),
        ],
        out_specs=pl.BlockSpec((OC, TM), lambda i: (0, i)),
        compiler_params=pltpu.CompilerParams(
            dimension_semantics=("parallel",),
            vmem_limit_bytes=32 * 1024 * 1024),
        cost_estimate=pl.CostEstimate(flops=flops, transcendentals=0,
                                      bytes_accessed=bytes_accessed),
    )(patches, w_mat, b_col)

    out = out[:, :M].reshape(OC, B, PH, PW).transpose(1, 0, 2, 3)  # back to NCHW
    return out


# ----------------------------------------------------------------------------
# Kernel 2: fused 2-layer MLP  (x @ W1 + b1 -> ReLU -> @ W2 + b2 [-> log_softmax])
# ----------------------------------------------------------------------------
def _fused_mlp_kernel(x_ref, w1_ref, b1_ref, w2_ref, b2_ref, o_ref, *,
                      final_log_softmax):
    h = jnp.dot(x_ref[...], w1_ref[...], preferred_element_type=jnp.float32)
    h = jnp.maximum(h + b1_ref[...], 0.0)
    y = jnp.dot(h.astype(w2_ref.dtype), w2_ref[...],
                preferred_element_type=jnp.float32)
    y = y + b2_ref[...]
    if final_log_softmax:
        m = jnp.max(y, axis=-1, keepdims=True)
        s = y - m
        y = s - jnp.log(jnp.sum(jnp.exp(s), axis=-1, keepdims=True))
    o_ref[...] = y


def fused_mlp(x, w1, b1, w2, b2, *, final_log_softmax=False, tile_b=256):
    """x: (B, K1); w1: (K1, N1); w2: (N1, N2).  One pallas_call for both layers."""
    B, K1 = x.shape
    N1 = w1.shape[1]
    N2 = w2.shape[1]
    TB = min(tile_b, _round_up(B, 8))
    B_pad = _round_up(B, TB)
    x_p = jnp.pad(x, ((0, B_pad - B), (0, 0))).astype(jnp.bfloat16)

    flops = 2 * B_pad * (K1 * N1 + N1 * N2)
    bytes_accessed = (x_p.size * 2 + (w1.size + w2.size) * 2
                      + (b1.size + b2.size) * 4 + B_pad * N2 * 4)

    out = pl.pallas_call(
        functools.partial(_fused_mlp_kernel, final_log_softmax=final_log_softmax),
        out_shape=jax.ShapeDtypeStruct((B_pad, N2), jnp.float32),
        grid=(B_pad // TB,),
        in_specs=[
            pl.BlockSpec((TB, K1), lambda i: (i, 0)),
            pl.BlockSpec((K1, N1), lambda i: (0, 0)),
            pl.BlockSpec((1, N1), lambda i: (0, 0)),
            pl.BlockSpec((N1, N2), lambda i: (0, 0)),
            pl.BlockSpec((1, N2), lambda i: (0, 0)),
        ],
        out_specs=pl.BlockSpec((TB, N2), lambda i: (i, 0)),
        compiler_params=pltpu.CompilerParams(
            dimension_semantics=("parallel",),
            vmem_limit_bytes=32 * 1024 * 1024),
        cost_estimate=pl.CostEstimate(
            flops=flops,
            transcendentals=(B_pad * N2 if final_log_softmax else 0),
            bytes_accessed=bytes_accessed),
    )(x_p,
      w1.astype(jnp.bfloat16), b1.reshape(1, N1).astype(jnp.float32),
      w2.astype(jnp.bfloat16), b2.reshape(1, N2).astype(jnp.float32))
    return out[:B]


# ----------------------------------------------------------------------------
# Kernel 3: bilinear grid_sample (zero padding, align_corners=False) done as
# one-hot row/col selection matrices + MXU matmul + masked reduction (no gather)
# ----------------------------------------------------------------------------
def _grid_sample_kernel(coords_ref, imgT_ref, o_ref, *, H, W):
    # coords_ref: (1, 2, HW) f32  -- row 0 = source x, row 1 = source y per output pixel
    # imgT_ref:   (1, W, H)  f32  -- transposed input image
    # o_ref:      (1, 1, HW) f32
    c = coords_ref[0]                       # (2, HW)
    ix = c[0:1, :]
    iy = c[1:2, :]
    ix0 = jnp.floor(ix)
    iy0 = jnp.floor(iy)

    def tap_matrix(size, i_tap, w_tap):
        # (size, HW) one-hot selection scaled by the zero-padded tap weight.
        iota = jax.lax.broadcasted_iota(jnp.int32, (size, H * W), 0)
        valid = (i_tap >= 0.0) & (i_tap <= size - 1.0)
        wgt = jnp.where(valid, w_tap, 0.0)
        idx = jnp.clip(i_tap, 0.0, size - 1.0).astype(jnp.int32)
        return jnp.where(iota == idx, wgt, 0.0)

    row_m = (tap_matrix(H, iy0, iy0 + 1.0 - iy)
             + tap_matrix(H, iy0 + 1.0, iy - iy0))          # (H, HW)
    col_m = (tap_matrix(W, ix0, ix0 + 1.0 - ix)
             + tap_matrix(W, ix0 + 1.0, ix - ix0))          # (W, HW)

    # rwT[x, p] = sum_y img[y, x] * row_m[y, p]  (row gather as MXU matmul)
    rwT = jnp.dot(imgT_ref[0], row_m, preferred_element_type=jnp.float32)  # (W, HW)
    # out[p] = sum_x rwT[x, p] * col_m[x, p]     (column gather as masked reduce)
    o_ref[0] = jnp.sum(rwT * col_m, axis=0, keepdims=True)                 # (1, HW)


def grid_sample(x, theta):
    """x: (B, 1, H, W), theta: (B, 6) -> bilinear-resampled (B, 1, H, W)."""
    B, C, H, W = x.shape
    assert C == 1  # model always feeds a single-channel image
    HW = H * W

    # affine_grid, align_corners=False (elementwise XLA glue, no gather).
    xs_n = (2.0 * jnp.arange(W, dtype=jnp.float32) + 1.0) / W - 1.0
    ys_n = (2.0 * jnp.arange(H, dtype=jnp.float32) + 1.0) / H - 1.0
    base = jnp.stack([jnp.tile(xs_n, H), jnp.repeat(ys_n, W),
                      jnp.ones(HW, jnp.float32)], axis=1)           # (HW, 3)
    g = jnp.einsum("pk,bjk->bjp", base, theta.reshape(B, 2, 3))     # (B, 2, HW)
    ix = ((g[:, 0, :] + 1.0) * W - 1.0) * 0.5                       # source pixel coords
    iy = ((g[:, 1, :] + 1.0) * H - 1.0) * 0.5
    coords = jnp.stack([ix, iy], axis=1)                            # (B, 2, HW)
    img_t = x[:, 0, :, :].transpose(0, 2, 1).astype(jnp.float32)    # (B, W, H)

    out = pl.pallas_call(
        functools.partial(_grid_sample_kernel, H=H, W=W),
        out_shape=jax.ShapeDtypeStruct((B, 1, HW), jnp.float32),
        grid=(B,),
        in_specs=[
            pl.BlockSpec((1, 2, HW), lambda b: (b, 0, 0)),
            pl.BlockSpec((1, W, H), lambda b: (b, 0, 0)),
        ],
        out_specs=pl.BlockSpec((1, 1, HW), lambda b: (b, 0, 0)),
        compiler_params=pltpu.CompilerParams(
            dimension_semantics=("parallel",),
            vmem_limit_bytes=32 * 1024 * 1024),
        cost_estimate=pl.CostEstimate(
            flops=2 * B * W * H * HW + 10 * B * (H + W) * HW,
            transcendentals=0,
            bytes_accessed=B * (2 * HW + W * H + HW) * 4),
    )(coords, img_t)
    return out.reshape(B, C, H, W)


# ----------------------------------------------------------------------------
# Parameters (deterministic, PyTorch-default-style uniform init)
# ----------------------------------------------------------------------------
def init_params(key):
    ks = jax.random.split(key, 8)

    def conv_init(k, oc, ic, kh, kw):
        bound = float(ic * kh * kw) ** -0.5
        k1, k2 = jax.random.split(k)
        return (jax.random.uniform(k1, (oc, ic, kh, kw), jnp.float32, -bound, bound),
                jax.random.uniform(k2, (oc,), jnp.float32, -bound, bound))

    def lin_init(k, out_f, in_f):
        bound = float(in_f) ** -0.5
        k1, k2 = jax.random.split(k)
        return (jax.random.uniform(k1, (out_f, in_f), jnp.float32, -bound, bound),
                jax.random.uniform(k2, (out_f,), jnp.float32, -bound, bound))

    p = {}
    p["conv1_w"], p["conv1_b"] = conv_init(ks[0], 10, 1, 5, 5)
    p["conv2_w"], p["conv2_b"] = conv_init(ks[1], 20, 10, 5, 5)
    p["fc1_w"], p["fc1_b"] = lin_init(ks[2], 50, 320)
    p["fc2_w"], p["fc2_b"] = lin_init(ks[3], 10, 50)
    p["loc_conv1_w"], p["loc_conv1_b"] = conv_init(ks[4], 8, 1, 7, 7)
    p["loc_conv2_w"], p["loc_conv2_b"] = conv_init(ks[5], 10, 8, 5, 5)
    p["fc_loc1_w"], p["fc_loc1_b"] = lin_init(ks[6], 32, 10 * 3 * 3)
    # fc_loc[2]: zero weights, identity-affine bias (exactly as in __init__)
    p["fc_loc2_w"] = jnp.zeros((6, 32), jnp.float32)
    p["fc_loc2_b"] = jnp.array([1, 0, 0, 0, 1, 0], jnp.float32)
    return p


# ----------------------------------------------------------------------------
# Forward pass (matches STN.forward semantics, eval-mode dropout)
# ----------------------------------------------------------------------------
def stn_forward(params, x):
    B = x.shape[0]

    # --- spatial transformer: localization network (conv -> pool -> relu, x2)
    xs = conv_pool_relu(x, params["loc_conv1_w"], params["loc_conv1_b"])    # (B, 8, 11, 11)
    xs = conv_pool_relu(xs, params["loc_conv2_w"], params["loc_conv2_b"])   # (B, 10, 3, 3)
    xs = xs.reshape(B, 10 * 3 * 3)
    theta = fused_mlp(xs, params["fc_loc1_w"].T, params["fc_loc1_b"],
                      params["fc_loc2_w"].T, params["fc_loc2_b"])           # (B, 6)

    xt = grid_sample(x, theta)                                              # (B, 1, 28, 28)

    # --- main classifier ---
    y = conv_pool_relu(xt, params["conv1_w"], params["conv1_b"])            # (B, 10, 12, 12)
    # Dropout2d after conv2 is identity in eval mode.
    y = conv_pool_relu(y, params["conv2_w"], params["conv2_b"])             # (B, 20, 4, 4)
    y = y.reshape(B, 320)
    # Dropout between fc1 and fc2 is identity in eval mode.
    return fused_mlp(y, params["fc1_w"].T, params["fc1_b"],
                     params["fc2_w"].T, params["fc2_b"],
                     final_log_softmax=True)                                # (B, 10)


if __name__ == "__main__":
    key = jax.random.PRNGKey(0)
    pkey, xkey = jax.random.split(key)
    params = init_params(pkey)
    # MNIST-style input implied by the module (fc1 in_features=320, fc_loc in=90)
    x = jax.random.normal(xkey, (2, 1, 28, 28), dtype=jnp.float32)

    out = jax.jit(stn_forward)(params, x)
    out = jax.block_until_ready(out)

    assert out.shape == (2, 10) and out.dtype == jnp.float32
    # log_softmax rows must (log-)sum to 1
    assert jnp.allclose(jnp.exp(out).sum(axis=1), 1.0, atol=1e-4)
    print("KERNEL_OK")
</pallas_src>

<mosaic_0001>
module attributes {stable_mosaic.version = 11 : i64} {
  func.func @_conv_pool_relu_kernel(%arg0: i32, %arg1: memref<4x49x256xbf16, #tpu.memory_space<vmem>>, %arg2: memref<8x49xbf16, #tpu.memory_space<vmem>>, %arg3: memref<8x1xf32, #tpu.memory_space<vmem>>, %arg4: memref<8x256xf32, #tpu.memory_space<vmem>>) attributes {dimension_semantics = [#tpu.dimension_semantics<parallel>], iteration_bounds = array<i64: 1>, scalar_prefetch = 0 : i64, scratch_operands = 0 : i64, tpu.core_type = #tpu.core_type<tc>, window_params = [{transform_indices = @transform_0, window_bounds = array<i64: 4, 49, 256>}, {pipeline_mode = #tpu.pipeline_mode<synchronous>, transform_indices = @transform_1, window_bounds = array<i64: 8, 49>}, {pipeline_mode = #tpu.pipeline_mode<synchronous>, transform_indices = @transform_2, window_bounds = array<i64: 8, 1>}, {transform_indices = @transform_3, window_bounds = array<i64: 8, 256>}]} {
    %c0 = arith.constant 0 : index
    %c0_0 = arith.constant 0 : index
    %0 = vector.load %arg2[%c0, %c0_0] : memref<8x49xbf16, #tpu.memory_space<vmem>>, vector<8x49xbf16>
    %c0_1 = arith.constant 0 : index
    %c0_2 = arith.constant 0 : index
    %c0_3 = arith.constant 0 : index
    %1 = vector.load %arg1[%c0_1, %c0_2, %c0_3] : memref<4x49x256xbf16, #tpu.memory_space<vmem>>, vector<1x49x256xbf16>
    %2 = vector.shape_cast %1 : vector<1x49x256xbf16> to vector<49x256xbf16>
    %cst = arith.constant dense<0.000000e+00> : vector<8x256xf32>
    %3 = tpu.matmul %0, %2, %cst {dimension_numbers = #tpu.dot_dimension_numbers<[1], [0], [0], [1], [0, 0, 1, 1], [], []>} : vector<8x49xbf16>, vector<49x256xbf16>, vector<8x256xf32> -> vector<8x256xf32>
    %c1 = arith.constant 1 : index
    %c0_4 = arith.constant 0 : index
    %c0_5 = arith.constant 0 : index
    %4 = vector.load %arg1[%c1, %c0_4, %c0_5] : memref<4x49x256xbf16, #tpu.memory_space<vmem>>, vector<1x49x256xbf16>
    %5 = vector.shape_cast %4 : vector<1x49x256xbf16> to vector<49x256xbf16>
    %cst_6 = arith.constant dense<0.000000e+00> : vector<8x256xf32>
    %6 = tpu.matmul %0, %5, %cst_6 {dimension_numbers = #tpu.dot_dimension_numbers<[1], [0], [0], [1], [0, 0, 1, 1], [], []>} : vector<8x49xbf16>, vector<49x256xbf16>, vector<8x256xf32> -> vector<8x256xf32>
    %7 = arith.maximumf %3, %6 : vector<8x256xf32>
    %c2 = arith.constant 2 : index
    %c0_7 = arith.constant 0 : index
    %c0_8 = arith.constant 0 : index
    %8 = vector.load %arg1[%c2, %c0_7, %c0_8] : memref<4x49x256xbf16, #tpu.memory_space<vmem>>, vector<1x49x256xbf16>
    %9 = vector.shape_cast %8 : vector<1x49x256xbf16> to vector<49x256xbf16>
    %cst_9 = arith.constant dense<0.000000e+00> : vector<8x256xf32>
    %10 = tpu.matmul %0, %9, %cst_9 {dimension_numbers = #tpu.dot_dimension_numbers<[1], [0], [0], [1], [0, 0, 1, 1], [], []>} : vector<8x49xbf16>, vector<49x256xbf16>, vector<8x256xf32> -> vector<8x256xf32>
    %11 = arith.maximumf %7, %10 : vector<8x256xf32>
    %c3 = arith.constant 3 : index
    %c0_10 = arith.constant 0 : index
    %c0_11 = arith.constant 0 : index
    %12 = vector.load %arg1[%c3, %c0_10, %c0_11] : memref<4x49x256xbf16, #tpu.memory_space<vmem>>, vector<1x49x256xbf16>
    %13 = vector.shape_cast %12 : vector<1x49x256xbf16> to vector<49x256xbf16>
    %cst_12 = arith.constant dense<0.000000e+00> : vector<8x256xf32>
    %14 = tpu.matmul %0, %13, %cst_12 {dimension_numbers = #tpu.dot_dimension_numbers<[1], [0], [0], [1], [0, 0, 1, 1], [], []>} : vector<8x49xbf16>, vector<49x256xbf16>, vector<8x256xf32> -> vector<8x256xf32>
    %15 = arith.maximumf %11, %14 : vector<8x256xf32>
    %c0_13 = arith.constant 0 : index
    %c0_14 = arith.constant 0 : index
    %16 = vector.load %arg3[%c0_13, %c0_14] : memref<8x1xf32, #tpu.memory_space<vmem>>, vector<8x1xf32>
    %17 = vector.broadcast %16 : vector<8x1xf32> to vector<8x256xf32>
    %18 = arith.addf %15, %17 : vector<8x256xf32>
    %cst_15 = arith.constant 0.000000e+00 : f32
    %19 = vector.broadcast %cst_15 : f32 to vector<8x256xf32>
    %20 = arith.maximumf %18, %19 : vector<8x256xf32>
    %c0_16 = arith.constant 0 : index
    %c0_17 = arith.constant 0 : index
    %21 = vector.load %arg4[%c0_16, %c0_17] : memref<8x256xf32, #tpu.memory_space<vmem>>, vector<8x256xf32>
    tpu.vector_store %arg4[%c0_16, %c0_17], %20 {strides = array<i32>} : memref<8x256xf32, #tpu.memory_space<vmem>>, vector<8x256xf32>,
    return
  }
  func.func @transform_0(%arg0: i32) -> (i32, i32, i32) {
    %c0_i32 = arith.constant 0 : i32
    %c0_i32_0 = arith.constant 0 : i32
    %c0_i32_1 = arith.constant 0 : i32
    return %c0_i32, %c0_i32_0, %arg0 : i32, i32, i32
  }
  func.func @transform_1(%arg0: i32) -> (i32, i32) {
    %c0_i32 = arith.constant 0 : i32
    %c0_i32_0 = arith.constant 0 : i32
    %c0_i32_1 = arith.constant 0 : i32
    return %c0_i32, %c0_i32_0 : i32, i32
  }
  func.func @transform_2(%arg0: i32) -> (i32, i32) {
    %c0_i32 = arith.constant 0 : i32
    %c0_i32_0 = arith.constant 0 : i32
    %c0_i32_1 = arith.constant 0 : i32
    return %c0_i32, %c0_i32_0 : i32, i32
  }
  func.func @transform_3(%arg0: i32) -> (i32, i32) {
    %c0_i32 = arith.constant 0 : i32
    %c0_i32_0 = arith.constant 0 : i32
    return %c0_i32, %arg0 : i32, i32
  }
}

module attributes {stable_mosaic.version = 11 : i64} {
  func.func @_conv_pool_relu_kernel(%arg0: i32, %arg1: memref<4x200x128xbf16, #tpu.memory_space<vmem>>, %arg2: memref<10x200xbf16, #tpu.memory_space<vmem>>, %arg3: memref<10x1xf32, #tpu.memory_space<vmem>>, %arg4: memref<10x128xf32, #tpu.memory_space<vmem>>) attributes {dimension_semantics = [#tpu.dimension_semantics<parallel>], iteration_bounds = array<i64: 1>, scalar_prefetch = 0 : i64, scratch_operands = 0 : i64, tpu.core_type = #tpu.core_type<tc>, window_params = [{transform_indices = @transform_0, window_bounds = array<i64: 4, 200, 128>}, {pipeline_mode = #tpu.pipeline_mode<synchronous>, transform_indices = @transform_1, window_bounds = array<i64: 10, 200>}, {pipeline_mode = #tpu.pipeline_mode<synchronous>, transform_indices = @transform_2, window_bounds = array<i64: 10, 1>}, {transform_indices = @transform_3, window_bounds = array<i64: 10, 128>}]} {
    %c0 = arith.constant 0 : index
    %c0_0 = arith.constant 0 : index
    %0 = vector.load %arg2[%c0, %c0_0] : memref<10x200xbf16, #tpu.memory_space<vmem>>, vector<10x200xbf16>
    %c0_1 = arith.constant 0 : index
    %c0_2 = arith.constant 0 : index
    %c0_3 = arith.constant 0 : index
    %1 = vector.load %arg1[%c0_1, %c0_2, %c0_3] : memref<4x200x128xbf16, #tpu.memory_space<vmem>>, vector<1x200x128xbf16>
    %2 = vector.shape_cast %1 : vector<1x200x128xbf16> to vector<200x128xbf16>
    %cst = arith.constant dense<0.000000e+00> : vector<10x128xf32>
    %3 = tpu.matmul %0, %2, %cst {dimension_numbers = #tpu.dot_dimension_numbers<[1], [0], [0], [1], [0, 0, 1, 1], [], []>} : vector<10x200xbf16>, vector<200x128xbf16>, vector<10x128xf32> -> vector<10x128xf32>
    %c1 = arith.constant 1 : index
    %c0_4 = arith.constant 0 : index
    %c0_5 = arith.constant 0 : index
    %4 = vector.load %arg1[%c1, %c0_4, %c0_5] : memref<4x200x128xbf16, #tpu.memory_space<vmem>>, vector<1x200x128xbf16>
    %5 = vector.shape_cast %4 : vector<1x200x128xbf16> to vector<200x128xbf16>
    %cst_6 = arith.constant dense<0.000000e+00> : vector<10x128xf32>
    %6 = tpu.matmul %0, %5, %cst_6 {dimension_numbers = #tpu.dot_dimension_numbers<[1], [0], [0], [1], [0, 0, 1, 1], [], []>} : vector<10x200xbf16>, vector<200x128xbf16>, vector<10x128xf32> -> vector<10x128xf32>
    %7 = arith.maximumf %3, %6 : vector<10x128xf32>
    %c2 = arith.constant 2 : index
    %c0_7 = arith.constant 0 : index
    %c0_8 = arith.constant 0 : index
    %8 = vector.load %arg1[%c2, %c0_7, %c0_8] : memref<4x200x128xbf16, #tpu.memory_space<vmem>>, vector<1x200x128xbf16>
    %9 = vector.shape_cast %8 : vector<1x200x128xbf16> to vector<200x128xbf16>
    %cst_9 = arith.constant dense<0.000000e+00> : vector<10x128xf32>
    %10 = tpu.matmul %0, %9, %cst_9 {dimension_numbers = #tpu.dot_dimension_numbers<[1], [0], [0], [1], [0, 0, 1, 1], [], []>} : vector<10x200xbf16>, vector<200x128xbf16>, vector<10x128xf32> -> vector<10x128xf32>
    %11 = arith.maximumf %7, %10 : vector<10x128xf32>
    %c3 = arith.constant 3 : index
    %c0_10 = arith.constant 0 : index
    %c0_11 = arith.constant 0 : index
    %12 = vector.load %arg1[%c3, %c0_10, %c0_11] : memref<4x200x128xbf16, #tpu.memory_space<vmem>>, vector<1x200x128xbf16>
    %13 = vector.shape_cast %12 : vector<1x200x128xbf16> to vector<200x128xbf16>
    %cst_12 = arith.constant dense<0.000000e+00> : vector<10x128xf32>
    %14 = tpu.matmul %0, %13, %cst_12 {dimension_numbers = #tpu.dot_dimension_numbers<[1], [0], [0], [1], [0, 0, 1, 1], [], []>} : vector<10x200xbf16>, vector<200x128xbf16>, vector<10x128xf32> -> vector<10x128xf32>
    %15 = arith.maximumf %11, %14 : vector<10x128xf32>
    %c0_13 = arith.constant 0 : index
    %c0_14 = arith.constant 0 : index
    %16 = vector.load %arg3[%c0_13, %c0_14] : memref<10x1xf32, #tpu.memory_space<vmem>>, vector<10x1xf32>
    %17 = vector.broadcast %16 : vector<10x1xf32> to vector<10x128xf32>
    %18 = arith.addf %15, %17 : vector<10x128xf32>
    %cst_15 = arith.constant 0.000000e+00 : f32
    %19 = vector.broadcast %cst_15 : f32 to vector<10x128xf32>
    %20 = arith.maximumf %18, %19 : vector<10x128xf32>
    %c0_16 = arith.constant 0 : index
    %c0_17 = arith.constant 0 : index
    %21 = vector.load %arg4[%c0_16, %c0_17] : memref<10x128xf32, #tpu.memory_space<vmem>>, vector<10x128xf32>
    tpu.vector_store %arg4[%c0_16, %c0_17], %20 {strides = array<i32>} : memref<10x128xf32, #tpu.memory_space<vmem>>, vector<10x128xf32>,
    return
  }
  func.func @transform_0(%arg0: i32) -> (i32, i32, i32) {
    %c0_i32 = arith.constant 0 : i32
    %c0_i32_0 = arith.constant 0 : i32
    %c0_i32_1 = arith.constant 0 : i32
    return %c0_i32, %c0_i32_0, %arg0 : i32, i32, i32
  }
  func.func @transform_1(%arg0: i32) -> (i32, i32) {
    %c0_i32 = arith.constant 0 : i32
    %c0_i32_0 = arith.constant 0 : i32
    %c0_i32_1 = arith.constant 0 : i32
    return %c0_i32, %c0_i32_0 : i32, i32
  }
  func.func @transform_2(%arg0: i32) -> (i32, i32) {
    %c0_i32 = arith.constant 0 : i32
    %c0_i32_0 = arith.constant 0 : i32
    %c0_i32_1 = arith.constant 0 : i32
    return %c0_i32, %c0_i32_0 : i32, i32
  }
  func.func @transform_3(%arg0: i32) -> (i32, i32) {
    %c0_i32 = arith.constant 0 : i32
    %c0_i32_0 = arith.constant 0 : i32
    return %c0_i32, %arg0 : i32, i32
  }
}

module attributes {stable_mosaic.version = 11 : i64} {
  func.func @_fused_mlp_kernel(%arg0: i32, %arg1: memref<8x90xbf16, #tpu.memory_space<vmem>>, %arg2: memref<90x32xbf16, #tpu.memory_space<vmem>>, %arg3: memref<1x32xf32, #tpu.memory_space<vmem>>, %arg4: memref<32x6xbf16, #tpu.memory_space<vmem>>, %arg5: memref<1x6xf32, #tpu.memory_space<vmem>>, %arg6: memref<8x6xf32, #tpu.memory_space<vmem>>) attributes {dimension_semantics = [#tpu.dimension_semantics<parallel>], iteration_bounds = array<i64: 1>, scalar_prefetch = 0 : i64, scratch_operands = 0 : i64, tpu.core_type = #tpu.core_type<tc>, window_params = [{transform_indices = @transform_0, window_bounds = array<i64: 8, 90>}, {pipeline_mode = #tpu.pipeline_mode<synchronous>, transform_indices = @transform_1, window_bounds = array<i64: 90, 32>}, {pipeline_mode = #tpu.pipeline_mode<synchronous>, transform_indices = @transform_2, window_bounds = array<i64: 1, 32>}, {pipeline_mode = #tpu.pipeline_mode<synchronous>, transform_indices = @transform_3, window_bounds = array<i64: 32, 6>}, {pipeline_mode = #tpu.pipeline_mode<synchronous>, transform_indices = @transform_4, window_bounds = array<i64: 1, 6>}, {transform_indices = @transform_5, window_bounds = array<i64: 8, 6>}]} {
    %c0 = arith.constant 0 : index
    %c0_0 = arith.constant 0 : index
    %0 = vector.load %arg1[%c0, %c0_0] : memref<8x90xbf16, #tpu.memory_space<vmem>>, vector<8x90xbf16>
    %c0_1 = arith.constant 0 : index
    %c0_2 = arith.constant 0 : index
    %1 = vector.load %arg2[%c0_1, %c0_2] : memref<90x32xbf16, #tpu.memory_space<vmem>>, vector<90x32xbf16>
    %cst = arith.constant dense<0.000000e+00> : vector<8x32xf32>
    %2 = tpu.matmul %0, %1, %cst {dimension_numbers = #tpu.dot_dimension_numbers<[1], [0], [0], [1], [0, 0, 1, 1], [], []>} : vector<8x90xbf16>, vector<90x32xbf16>, vector<8x32xf32> -> vector<8x32xf32>
    %c0_3 = arith.constant 0 : index
    %c0_4 = arith.constant 0 : index
    %3 = vector.load %arg3[%c0_3, %c0_4] : memref<1x32xf32, #tpu.memory_space<vmem>>, vector<1x32xf32>
    %4 = vector.broadcast %3 : vector<1x32xf32> to vector<8x32xf32>
    %5 = arith.addf %2, %4 : vector<8x32xf32>
    %cst_5 = arith.constant 0.000000e+00 : f32
    %6 = vector.broadcast %cst_5 : f32 to vector<8x32xf32>
    %7 = arith.maximumf %5, %6 : vector<8x32xf32>
    %8 = arith.truncf %7 : vector<8x32xf32> to vector<8x32xbf16>
    %c0_6 = arith.constant 0 : index
    %c0_7 = arith.constant 0 : index
    %9 = vector.load %arg4[%c0_6, %c0_7] : memref<32x6xbf16, #tpu.memory_space<vmem>>, vector<32x6xbf16>
    %cst_8 = arith.constant dense<0.000000e+00> : vector<8x6xf32>
    %10 = tpu.matmul %8, %9, %cst_8 {dimension_numbers = #tpu.dot_dimension_numbers<[1], [0], [0], [1], [0, 0, 1, 1], [], []>} : vector<8x32xbf16>, vector<32x6xbf16>, vector<8x6xf32> -> vector<8x6xf32>
    %c0_9 = arith.constant 0 : index
    %c0_10 = arith.constant 0 : index
    %11 = vector.load %arg5[%c0_9, %c0_10] : memref<1x6xf32, #tpu.memory_space<vmem>>, vector<1x6xf32>
    %12 = vector.broadcast %11 : vector<1x6xf32> to vector<8x6xf32>
    %13 = arith.addf %10, %12 : vector<8x6xf32>
    %c0_11 = arith.constant 0 : index
    %c0_12 = arith.constant 0 : index
    %14 = vector.load %arg6[%c0_11, %c0_12] : memref<8x6xf32, #tpu.memory_space<vmem>>, vector<8x6xf32>
    tpu.vector_store %arg6[%c0_11, %c0_12], %13 {strides = array<i32>} : memref<8x6xf32, #tpu.memory_space<vmem>>, vector<8x6xf32>,
    return
  }
  func.func @transform_0(%arg0: i32) -> (i32, i32) {
    %c0_i32 = arith.constant 0 : i32
    %c0_i32_0 = arith.constant 0 : i32
    return %arg0, %c0_i32 : i32, i32
  }
  func.func @transform_1(%arg0: i32) -> (i32, i32) {
    %c0_i32 = arith.constant 0 : i32
    %c0_i32_0 = arith.constant 0 : i32
    %c0_i32_1 = arith.constant 0 : i32
    return %c0_i32, %c0_i32_0 : i32, i32
  }
  func.func @transform_2(%arg0: i32) -> (i32, i32) {
    %c0_i32 = arith.constant 0 : i32
    %c0_i32_0 = arith.constant 0 : i32
    %c0_i32_1 = arith.constant 0 : i32
    return %c0_i32, %c0_i32_0 : i32, i32
  }
  func.func @transform_3(%arg0: i32) -> (i32, i32) {
    %c0_i32 = arith.constant 0 : i32
    %c0_i32_0 = arith.constant 0 : i32
    %c0_i32_1 = arith.constant 0 : i32
    return %c0_i32, %c0_i32_0 : i32, i32
  }
  func.func @transform_4(%arg0: i32) -> (i32, i32) {
    %c0_i32 = arith.constant 0 : i32
    %c0_i32_0 = arith.constant 0 : i32
    %c0_i32_1 = arith.constant 0 : i32
    return %c0_i32, %c0_i32_0 : i32, i32
  }
  func.func @transform_5(%arg0: i32) -> (i32, i32) {
    %c0_i32 = arith.constant 0 : i32
    %c0_i32_0 = arith.constant 0 : i32
    return %arg0, %c0_i32 : i32, i32
  }
}

module attributes {stable_mosaic.version = 11 : i64} {
  func.func @_grid_sample_kernel(%arg0: i32, %arg1: memref<1x2x784xf32, #tpu.memory_space<vmem>>, %arg2: memref<1x28x28xf32, #tpu.memory_space<vmem>>, %arg3: memref<1x1x784xf32, #tpu.memory_space<vmem>>) attributes {dimension_semantics = [#tpu.dimension_semantics<parallel>], iteration_bounds = array<i64: 2>, scalar_prefetch = 0 : i64, scratch_operands = 0 : i64, tpu.core_type = #tpu.core_type<tc>, window_params = [{transform_indices = @transform_0, window_bounds = array<i64: 1, 2, 784>}, {transform_indices = @transform_1, window_bounds = array<i64: 1, 28, 28>}, {transform_indices = @transform_2, window_bounds = array<i64: 1, 1, 784>}]} {
    %c0 = arith.constant 0 : index
    %c0_0 = arith.constant 0 : index
    %c0_1 = arith.constant 0 : index
    %0 = vector.load %arg1[%c0, %c0_0, %c0_1] : memref<1x2x784xf32, #tpu.memory_space<vmem>>, vector<1x2x784xf32>
    %1 = vector.shape_cast %0 : vector<1x2x784xf32> to vector<2x784xf32>
    %2 = vector.extract_strided_slice %1 {offsets = [0, 0], sizes = [1, 784], strides = [1, 1]} : vector<2x784xf32> to vector<1x784xf32>
    %3 = vector.extract_strided_slice %1 {offsets = [1, 0], sizes = [1, 784], strides = [1, 1]} : vector<2x784xf32> to vector<1x784xf32>
    %4 = math.floor %2 : vector<1x784xf32>
    %5 = math.floor %3 : vector<1x784xf32>
    %cst = arith.constant 1.000000e+00 : f32
    %6 = vector.broadcast %cst : f32 to vector<1x784xf32>
    %7 = arith.addf %5, %6 : vector<1x784xf32>
    %8 = arith.subf %7, %3 : vector<1x784xf32>
    %9 = tpu.iota {dimensions = array<i32: 0>} : vector<28x784xi32>
    %cst_2 = arith.constant 0.000000e+00 : f32
    %10 = vector.broadcast %cst_2 : f32 to vector<1x784xf32>
    %11 = arith.cmpf oge, %5, %10 : vector<1x784xf32>
    %cst_3 = arith.constant 2.700000e+01 : f32
    %12 = vector.broadcast %cst_3 : f32 to vector<1x784xf32>
    %13 = arith.cmpf ole, %5, %12 : vector<1x784xf32>
    %14 = arith.andi %11, %13 : vector<1x784xi1>
    %cst_4 = arith.constant 0.000000e+00 : f32
    %15 = vector.broadcast %cst_4 : f32 to vector<1x784xf32>
    %16 = arith.select %14, %8, %15 : vector<1x784xi1>, vector<1x784xf32>
    %cst_5 = arith.constant 0.000000e+00 : f32
    %cst_6 = arith.constant 2.700000e+01 : f32
    %17 = vector.broadcast %cst_5 : f32 to vector<1x784xf32>
    %18 = arith.maximumf %17, %5 : vector<1x784xf32>
    %19 = vector.broadcast %cst_6 : f32 to vector<1x784xf32>
    %20 = arith.minimumf %19, %18 : vector<1x784xf32>
    %21 = arith.fptosi %20 : vector<1x784xf32> to vector<1x784xi32>
    %22 = vector.broadcast %21 : vector<1x784xi32> to vector<28x784xi32>
    %23 = arith.cmpi eq, %9, %22 : vector<28x784xi32>
    %cst_7 = arith.constant 0.000000e+00 : f32
    %24 = vector.shape_cast %16 : vector<1x784xf32> to vector<1x784xf32>
    %25 = vector.broadcast %24 : vector<1x784xf32> to vector<28x784xf32>
    %26 = vector.broadcast %cst_7 : f32 to vector<28x784xf32>
    %27 = arith.select %23, %25, %26 : vector<28x784xi1>, vector<28x784xf32>
    %cst_8 = arith.constant 1.000000e+00 : f32
    %28 = vector.broadcast %cst_8 : f32 to vector<1x784xf32>
    %29 = arith.addf %5, %28 : vector<1x784xf32>
    %30 = arith.subf %3, %5 : vector<1x784xf32>
    %31 = tpu.iota {dimensions = array<i32: 0>} : vector<28x784xi32>
    %cst_9 = arith.constant 0.000000e+00 : f32
    %32 = vector.broadcast %cst_9 : f32 to vector<1x784xf32>
    %33 = arith.cmpf oge, %29, %32 : vector<1x784xf32>
    %cst_10 = arith.constant 2.700000e+01 : f32
    %34 = vector.broadcast %cst_10 : f32 to vector<1x784xf32>
    %35 = arith.cmpf ole, %29, %34 : vector<1x784xf32>
    %36 = arith.andi %33, %35 : vector<1x784xi1>
    %cst_11 = arith.constant 0.000000e+00 : f32
    %37 = vector.broadcast %cst_11 : f32 to vector<1x784xf32>
    %38 = arith.select %36, %30, %37 : vector<1x784xi1>, vector<1x784xf32>
    %cst_12 = arith.constant 0.000000e+00 : f32
    %cst_13 = arith.constant 2.700000e+01 : f32
    %39 = vector.broadcast %cst_12 : f32 to vector<1x784xf32>
    %40 = arith.maximumf %39, %29 : vector<1x784xf32>
    %41 = vector.broadcast %cst_13 : f32 to vector<1x784xf32>
    %42 = arith.minimumf %41, %40 : vector<1x784xf32>
    %43 = arith.fptosi %42 : vector<1x784xf32> to vector<1x784xi32>
    %44 = vector.broadcast %43 : vector<1x784xi32> to vector<28x784xi32>
    %45 = arith.cmpi eq, %31, %44 : vector<28x784xi32>
    %cst_14 = arith.constant 0.000000e+00 : f32
    %46 = vector.shape_cast %38 : vector<1x784xf32> to vector<1x784xf32>
    %47 = vector.broadcast %46 : vector<1x784xf32> to vector<28x784xf32>
    %48 = vector.broadcast %cst_14 : f32 to vector<28x784xf32>
    %49 = arith.select %45, %47, %48 : vector<28x784xi1>, vector<28x784xf32>
    %50 = arith.addf %27, %49 : vector<28x784xf32>
    %cst_15 = arith.constant 1.000000e+00 : f32
    %51 = vector.broadcast %cst_15 : f32 to vector<1x784xf32>
    %52 = arith.addf %4, %51 : vector<1x784xf32>
    %53 = arith.subf %52, %2 : vector<1x784xf32>
    %54 = tpu.iota {dimensions = array<i32: 0>} : vector<28x784xi32>
    %cst_16 = arith.constant 0.000000e+00 : f32
    %55 = vector.broadcast %cst_16 : f32 to vector<1x784xf32>
    %56 = arith.cmpf oge, %4, %55 : vector<1x784xf32>
    %cst_17 = arith.constant 2.700000e+01 : f32
    %57 = vector.broadcast %cst_17 : f32 to vector<1x784xf32>
    %58 = arith.cmpf ole, %4, %57 : vector<1x784xf32>
    %59 = arith.andi %56, %58 : vector<1x784xi1>
    %cst_18 = arith.constant 0.000000e+00 : f32
    %60 = vector.broadcast %cst_18 : f32 to vector<1x784xf32>
    %61 = arith.select %59, %53, %60 : vector<1x784xi1>, vector<1x784xf32>
    %cst_19 = arith.constant 0.000000e+00 : f32
    %cst_20 = arith.constant 2.700000e+01 : f32
    %62 = vector.broadcast %cst_19 : f32 to vector<1x784xf32>
    %63 = arith.maximumf %62, %4 : vector<1x784xf32>
    %64 = vector.broadcast %cst_20 : f32 to vector<1x784xf32>
    %65 = arith.minimumf %64, %63 : vector<1x784xf32>
    %66 = arith.fptosi %65 : vector<1x784xf32> to vector<1x784xi32>
    %67 = vector.broadcast %66 : vector<1x784xi32> to vector<28x784xi32>
    %68 = arith.cmpi eq, %54, %67 : vector<28x784xi32>
    %cst_21 = arith.constant 0.000000e+00 : f32
    %69 = vector.shape_cast %61 : vector<1x784xf32> to vector<1x784xf32>
    %70 = vector.broadcast %69 : vector<1x784xf32> to vector<28x784xf32>
    %71 = vector.broadcast %cst_21 : f32 to vector<28x784xf32>
    %72 = arith.select %68, %70, %71 : vector<28x784xi1>, vector<28x784xf32>
    %cst_22 = arith.constant 1.000000e+00 : f32
    %73 = vector.broadcast %cst_22 : f32 to vector<1x784xf32>
    %74 = arith.addf %4, %73 : vector<1x784xf32>
    %75 = arith.subf %2, %4 : vector<1x784xf32>
    %76 = tpu.iota {dimensions = array<i32: 0>} : vector<28x784xi32>
    %cst_23 = arith.constant 0.000000e+00 : f32
    %77 = vector.broadcast %cst_23 : f32 to vector<1x784xf32>
    %78 = arith.cmpf oge, %74, %77 : vector<1x784xf32>
    %cst_24 = arith.constant 2.700000e+01 : f32
    %79 = vector.broadcast %cst_24 : f32 to vector<1x784xf32>
    %80 = arith.cmpf ole, %74, %79 : vector<1x784xf32>
    %81 = arith.andi %78, %80 : vector<1x784xi1>
    %cst_25 = arith.constant 0.000000e+00 : f32
    %82 = vector.broadcast %cst_25 : f32 to vector<1x784xf32>
    %83 = arith.select %81, %75, %82 : vector<1x784xi1>, vector<1x784xf32>
    %cst_26 = arith.constant 0.000000e+00 : f32
    %cst_27 = arith.constant 2.700000e+01 : f32
    %84 = vector.broadcast %cst_26 : f32 to vector<1x784xf32>
    %85 = arith.maximumf %84, %74 : vector<1x784xf32>
    %86 = vector.broadcast %cst_27 : f32 to vector<1x784xf32>
    %87 = arith.minimumf %86, %85 : vector<1x784xf32>
    %88 = arith.fptosi %87 : vector<1x784xf32> to vector<1x784xi32>
    %89 = vector.broadcast %88 : vector<1x784xi32> to vector<28x784xi32>
    %90 = arith.cmpi eq, %76, %89 : vector<28x784xi32>
    %cst_28 = arith.constant 0.000000e+00 : f32
    %91 = vector.shape_cast %83 : vector<1x784xf32> to vector<1x784xf32>
    %92 = vector.broadcast %91 : vector<1x784xf32> to vector<28x784xf32>
    %93 = vector.broadcast %cst_28 : f32 to vector<28x784xf32>
    %94 = arith.select %90, %92, %93 : vector<28x784xi1>, vector<28x784xf32>
    %95 = arith.addf %72, %94 : vector<28x784xf32>
    %c0_29 = arith.constant 0 : index
    %c0_30 = arith.constant 0 : index
    %c0_31 = arith.constant 0 : index
    %96 = vector.load %arg2[%c0_29, %c0_30, %c0_31] : memref<1x28x28xf32, #tpu.memory_space<vmem>>, vector<1x28x28xf32>
    %97 = vector.shape_cast %96 : vector<1x28x28xf32> to vector<28x28xf32>
    %cst_32 = arith.constant dense<0.000000e+00> : vector<28x784xf32>
    %98 = tpu.matmul %97, %50, %cst_32 {dimension_numbers = #tpu.dot_dimension_numbers<[1], [0], [0], [1], [0, 0, 1, 1], [], []>} : vector<28x28xf32>, vector<28x784xf32>, vector<28x784xf32> -> vector<28x784xf32>
    %99 = arith.mulf %98, %95 : vector<28x784xf32>
    %cst_33 = arith.constant dense<0.000000e+00> : vector<784xf32>
    %100 = vector.multi_reduction <add>, %99, %cst_33 [0] : vector<28x784xf32> to vector<784xf32>
    %101 = vector.shape_cast %100 : vector<784xf32> to vector<1x784xf32>
    %c0_34 = arith.constant 0 : index
    %c0_35 = arith.constant 0 : index
    %c0_36 = arith.constant 0 : index
    %102 = vector.load %arg3[%c0_34, %c0_35, %c0_36] : memref<1x1x784xf32, #tpu.memory_space<vmem>>, vector<1x1x784xf32>
    %103 = vector.shape_cast %102 : vector<1x1x784xf32> to vector<1x784xf32>
    %104 = vector.shape_cast %101 : vector<1x784xf32> to vector<1x1x784xf32>
    tpu.vector_store %arg3[%c0_34, %c0_35, %c0_36], %104 {strides = array<i32>} : memref<1x1x784xf32, #tpu.memory_space<vmem>>, vector<1x1x784xf32>,
    return
  }
  func.func @transform_0(%arg0: i32) -> (i32, i32, i32) {
    %c0_i32 = arith.constant 0 : i32
    %c0_i32_0 = arith.constant 0 : i32
    %c0_i32_1 = arith.constant 0 : i32
    return %arg0, %c0_i32, %c0_i32_0 : i32, i32, i32
  }
  func.func @transform_1(%arg0: i32) -> (i32, i32, i32) {
    %c0_i32 = arith.constant 0 : i32
    %c0_i32_0 = arith.constant 0 : i32
    %c0_i32_1 = arith.constant 0 : i32
    return %arg0, %c0_i32, %c0_i32_0 : i32, i32, i32
  }
  func.func @transform_2(%arg0: i32) -> (i32, i32, i32) {
    %c0_i32 = arith.constant 0 : i32
    %c0_i32_0 = arith.constant 0 : i32
    %c0_i32_1 = arith.constant 0 : i32
    return %arg0, %c0_i32, %c0_i32_0 : i32, i32, i32
  }
}

module attributes {stable_mosaic.version = 11 : i64} {
  func.func @_conv_pool_relu_kernel(%arg0: i32, %arg1: memref<4x25x384xbf16, #tpu.memory_space<vmem>>, %arg2: memref<10x25xbf16, #tpu.memory_space<vmem>>, %arg3: memref<10x1xf32, #tpu.memory_space<vmem>>, %arg4: memref<10x384xf32, #tpu.memory_space<vmem>>) attributes {dimension_semantics = [#tpu.dimension_semantics<parallel>], iteration_bounds = array<i64: 1>, scalar_prefetch = 0 : i64, scratch_operands = 0 : i64, tpu.core_type = #tpu.core_type<tc>, window_params = [{transform_indices = @transform_0, window_bounds = array<i64: 4, 25, 384>}, {pipeline_mode = #tpu.pipeline_mode<synchronous>, transform_indices = @transform_1, window_bounds = array<i64: 10, 25>}, {pipeline_mode = #tpu.pipeline_mode<synchronous>, transform_indices = @transform_2, window_bounds = array<i64: 10, 1>}, {transform_indices = @transform_3, window_bounds = array<i64: 10, 384>}]} {
    %c0 = arith.constant 0 : index
    %c0_0 = arith.constant 0 : index
    %0 = vector.load %arg2[%c0, %c0_0] : memref<10x25xbf16, #tpu.memory_space<vmem>>, vector<10x25xbf16>
    %c0_1 = arith.constant 0 : index
    %c0_2 = arith.constant 0 : index
    %c0_3 = arith.constant 0 : index
    %1 = vector.load %arg1[%c0_1, %c0_2, %c0_3] : memref<4x25x384xbf16, #tpu.memory_space<vmem>>, vector<1x25x384xbf16>
    %2 = vector.shape_cast %1 : vector<1x25x384xbf16> to vector<25x384xbf16>
    %cst = arith.constant dense<0.000000e+00> : vector<10x384xf32>
    %3 = tpu.matmul %0, %2, %cst {dimension_numbers = #tpu.dot_dimension_numbers<[1], [0], [0], [1], [0, 0, 1, 1], [], []>} : vector<10x25xbf16>, vector<25x384xbf16>, vector<10x384xf32> -> vector<10x384xf32>
    %c1 = arith.constant 1 : index
    %c0_4 = arith.constant 0 : index
    %c0_5 = arith.constant 0 : index
    %4 = vector.load %arg1[%c1, %c0_4, %c0_5] : memref<4x25x384xbf16, #tpu.memory_space<vmem>>, vector<1x25x384xbf16>
    %5 = vector.shape_cast %4 : vector<1x25x384xbf16> to vector<25x384xbf16>
    %cst_6 = arith.constant dense<0.000000e+00> : vector<10x384xf32>
    %6 = tpu.matmul %0, %5, %cst_6 {dimension_numbers = #tpu.dot_dimension_numbers<[1], [0], [0], [1], [0, 0, 1, 1], [], []>} : vector<10x25xbf16>, vector<25x384xbf16>, vector<10x384xf32> -> vector<10x384xf32>
    %7 = arith.maximumf %3, %6 : vector<10x384xf32>
    %c2 = arith.constant 2 : index
    %c0_7 = arith.constant 0 : index
    %c0_8 = arith.constant 0 : index
    %8 = vector.load %arg1[%c2, %c0_7, %c0_8] : memref<4x25x384xbf16, #tpu.memory_space<vmem>>, vector<1x25x384xbf16>
    %9 = vector.shape_cast %8 : vector<1x25x384xbf16> to vector<25x384xbf16>
    %cst_9 = arith.constant dense<0.000000e+00> : vector<10x384xf32>
    %10 = tpu.matmul %0, %9, %cst_9 {dimension_numbers = #tpu.dot_dimension_numbers<[1], [0], [0], [1], [0, 0, 1, 1], [], []>} : vector<10x25xbf16>, vector<25x384xbf16>, vector<10x384xf32> -> vector<10x384xf32>
    %11 = arith.maximumf %7, %10 : vector<10x384xf32>
    %c3 = arith.constant 3 : index
    %c0_10 = arith.constant 0 : index
    %c0_11 = arith.constant 0 : index
    %12 = vector.load %arg1[%c3, %c0_10, %c0_11] : memref<4x25x384xbf16, #tpu.memory_space<vmem>>, vector<1x25x384xbf16>
    %13 = vector.shape_cast %12 : vector<1x25x384xbf16> to vector<25x384xbf16>
    %cst_12 = arith.constant dense<0.000000e+00> : vector<10x384xf32>
    %14 = tpu.matmul %0, %13, %cst_12 {dimension_numbers = #tpu.dot_dimension_numbers<[1], [0], [0], [1], [0, 0, 1, 1], [], []>} : vector<10x25xbf16>, vector<25x384xbf16>, vector<10x384xf32> -> vector<10x384xf32>
    %15 = arith.maximumf %11, %14 : vector<10x384xf32>
    %c0_13 = arith.constant 0 : index
    %c0_14 = arith.constant 0 : index
    %16 = vector.load %arg3[%c0_13, %c0_14] : memref<10x1xf32, #tpu.memory_space<vmem>>, vector<10x1xf32>
    %17 = vector.broadcast %16 : vector<10x1xf32> to vector<10x384xf32>
    %18 = arith.addf %15, %17 : vector<10x384xf32>
    %cst_15 = arith.constant 0.000000e+00 : f32
    %19 = vector.broadcast %cst_15 : f32 to vector<10x384xf32>
    %20 = arith.maximumf %18, %19 : vector<10x384xf32>
    %c0_16 = arith.constant 0 : index
    %c0_17 = arith.constant 0 : index
    %21 = vector.load %arg4[%c0_16, %c0_17] : memref<10x384xf32, #tpu.memory_space<vmem>>, vector<10x384xf32>
    tpu.vector_store %arg4[%c0_16, %c0_17], %20 {strides = array<i32>} : memref<10x384xf32, #tpu.memory_space<vmem>>, vector<10x384xf32>,
    return
  }
  func.func @transform_0(%arg0: i32) -> (i32, i32, i32) {
    %c0_i32 = arith.constant 0 : i32
    %c0_i32_0 = arith.constant 0 : i32
    %c0_i32_1 = arith.constant 0 : i32
    return %c0_i32, %c0_i32_0, %arg0 : i32, i32, i32
  }
  func.func @transform_1(%arg0: i32) -> (i32, i32) {
    %c0_i32 = arith.constant 0 : i32
    %c0_i32_0 = arith.constant 0 : i32
    %c0_i32_1 = arith.constant 0 : i32
    return %c0_i32, %c0_i32_0 : i32, i32
  }
  func.func @transform_2(%arg0: i32) -> (i32, i32) {
    %c0_i32 = arith.constant 0 : i32
    %c0_i32_0 = arith.constant 0 : i32
    %c0_i32_1 = arith.constant 0 : i32
    return %c0_i32, %c0_i32_0 : i32, i32
  }
  func.func @transform_3(%arg0: i32) -> (i32, i32) {
    %c0_i32 = arith.constant 0 : i32
    %c0_i32_0 = arith.constant 0 : i32
    return %c0_i32, %arg0 : i32, i32
  }
}

module attributes {stable_mosaic.version = 11 : i64} {
  func.func @_conv_pool_relu_kernel(%arg0: i32, %arg1: memref<4x250x128xbf16, #tpu.memory_space<vmem>>, %arg2: memref<20x250xbf16, #tpu.memory_space<vmem>>, %arg3: memref<20x1xf32, #tpu.memory_space<vmem>>, %arg4: memref<20x128xf32, #tpu.memory_space<vmem>>) attributes {dimension_semantics = [#tpu.dimension_semantics<parallel>], iteration_bounds = array<i64: 1>, scalar_prefetch = 0 : i64, scratch_operands = 0 : i64, tpu.core_type = #tpu.core_type<tc>, window_params = [{transform_indices = @transform_0, window_bounds = array<i64: 4, 250, 128>}, {pipeline_mode = #tpu.pipeline_mode<synchronous>, transform_indices = @transform_1, window_bounds = array<i64: 20, 250>}, {pipeline_mode = #tpu.pipeline_mode<synchronous>, transform_indices = @transform_2, window_bounds = array<i64: 20, 1>}, {transform_indices = @transform_3, window_bounds = array<i64: 20, 128>}]} {
    %c0 = arith.constant 0 : index
    %c0_0 = arith.constant 0 : index
    %0 = vector.load %arg2[%c0, %c0_0] : memref<20x250xbf16, #tpu.memory_space<vmem>>, vector<20x250xbf16>
    %c0_1 = arith.constant 0 : index
    %c0_2 = arith.constant 0 : index
    %c0_3 = arith.constant 0 : index
    %1 = vector.load %arg1[%c0_1, %c0_2, %c0_3] : memref<4x250x128xbf16, #tpu.memory_space<vmem>>, vector<1x250x128xbf16>
    %2 = vector.shape_cast %1 : vector<1x250x128xbf16> to vector<250x128xbf16>
    %cst = arith.constant dense<0.000000e+00> : vector<20x128xf32>
    %3 = tpu.matmul %0, %2, %cst {dimension_numbers = #tpu.dot_dimension_numbers<[1], [0], [0], [1], [0, 0, 1, 1], [], []>} : vector<20x250xbf16>, vector<250x128xbf16>, vector<20x128xf32> -> vector<20x128xf32>
    %c1 = arith.constant 1 : index
    %c0_4 = arith.constant 0 : index
    %c0_5 = arith.constant 0 : index
    %4 = vector.load %arg1[%c1, %c0_4, %c0_5] : memref<4x250x128xbf16, #tpu.memory_space<vmem>>, vector<1x250x128xbf16>
    %5 = vector.shape_cast %4 : vector<1x250x128xbf16> to vector<250x128xbf16>
    %cst_6 = arith.constant dense<0.000000e+00> : vector<20x128xf32>
    %6 = tpu.matmul %0, %5, %cst_6 {dimension_numbers = #tpu.dot_dimension_numbers<[1], [0], [0], [1], [0, 0, 1, 1], [], []>} : vector<20x250xbf16>, vector<250x128xbf16>, vector<20x128xf32> -> vector<20x128xf32>
    %7 = arith.maximumf %3, %6 : vector<20x128xf32>
    %c2 = arith.constant 2 : index
    %c0_7 = arith.constant 0 : index
    %c0_8 = arith.constant 0 : index
    %8 = vector.load %arg1[%c2, %c0_7, %c0_8] : memref<4x250x128xbf16, #tpu.memory_space<vmem>>, vector<1x250x128xbf16>
    %9 = vector.shape_cast %8 : vector<1x250x128xbf16> to vector<250x128xbf16>
    %cst_9 = arith.constant dense<0.000000e+00> : vector<20x128xf32>
    %10 = tpu.matmul %0, %9, %cst_9 {dimension_numbers = #tpu.dot_dimension_numbers<[1], [0], [0], [1], [0, 0, 1, 1], [], []>} : vector<20x250xbf16>, vector<250x128xbf16>, vector<20x128xf32> -> vector<20x128xf32>
    %11 = arith.maximumf %7, %10 : vector<20x128xf32>
    %c3 = arith.constant 3 : index
    %c0_10 = arith.constant 0 : index
    %c0_11 = arith.constant 0 : index
    %12 = vector.load %arg1[%c3, %c0_10, %c0_11] : memref<4x250x128xbf16, #tpu.memory_space<vmem>>, vector<1x250x128xbf16>
    %13 = vector.shape_cast %12 : vector<1x250x128xbf16> to vector<250x128xbf16>
    %cst_12 = arith.constant dense<0.000000e+00> : vector<20x128xf32>
    %14 = tpu.matmul %0, %13, %cst_12 {dimension_numbers = #tpu.dot_dimension_numbers<[1], [0], [0], [1], [0, 0, 1, 1], [], []>} : vector<20x250xbf16>, vector<250x128xbf16>, vector<20x128xf32> -> vector<20x128xf32>
    %15 = arith.maximumf %11, %14 : vector<20x128xf32>
    %c0_13 = arith.constant 0 : index
    %c0_14 = arith.constant 0 : index
    %16 = vector.load %arg3[%c0_13, %c0_14] : memref<20x1xf32, #tpu.memory_space<vmem>>, vector<20x1xf32>
    %17 = vector.broadcast %16 : vector<20x1xf32> to vector<20x128xf32>
    %18 = arith.addf %15, %17 : vector<20x128xf32>
    %cst_15 = arith.constant 0.000000e+00 : f32
    %19 = vector.broadcast %cst_15 : f32 to vector<20x128xf32>
    %20 = arith.maximumf %18, %19 : vector<20x128xf32>
    %c0_16 = arith.constant 0 : index
    %c0_17 = arith.constant 0 : index
    %21 = vector.load %arg4[%c0_16, %c0_17] : memref<20x128xf32, #tpu.memory_space<vmem>>, vector<20x128xf32>
    tpu.vector_store %arg4[%c0_16, %c0_17], %20 {strides = array<i32>} : memref<20x128xf32, #tpu.memory_space<vmem>>, vector<20x128xf32>,
    return
  }
  func.func @transform_0(%arg0: i32) -> (i32, i32, i32) {
    %c0_i32 = arith.constant 0 : i32
    %c0_i32_0 = arith.constant 0 : i32
    %c0_i32_1 = arith.constant 0 : i32
    return %c0_i32, %c0_i32_0, %arg0 : i32, i32, i32
  }
  func.func @transform_1(%arg0: i32) -> (i32, i32) {
    %c0_i32 = arith.constant 0 : i32
    %c0_i32_0 = arith.constant 0 : i32
    %c0_i32_1 = arith.constant 0 : i32
    return %c0_i32, %c0_i32_0 : i32, i32
  }
  func.func @transform_2(%arg0: i32) -> (i32, i32) {
    %c0_i32 = arith.constant 0 : i32
    %c0_i32_0 = arith.constant 0 : i32
    %c0_i32_1 = arith.constant 0 : i32
    return %c0_i32, %c0_i32_0 : i32, i32
  }
  func.func @transform_3(%arg0: i32) -> (i32, i32) {
    %c0_i32 = arith.constant 0 : i32
    %c0_i32_0 = arith.constant 0 : i32
    return %c0_i32, %arg0 : i32, i32
  }
}

module attributes {stable_mosaic.version = 11 : i64} {
  func.func @_fused_mlp_kernel(%arg0: i32, %arg1: memref<8x320xbf16, #tpu.memory_space<vmem>>, %arg2: memref<320x50xbf16, #tpu.memory_space<vmem>>, %arg3: memref<1x50xf32, #tpu.memory_space<vmem>>, %arg4: memref<50x10xbf16, #tpu.memory_space<vmem>>, %arg5: memref<1x10xf32, #tpu.memory_space<vmem>>, %arg6: memref<8x10xf32, #tpu.memory_space<vmem>>) attributes {dimension_semantics = [#tpu.dimension_semantics<parallel>], iteration_bounds = array<i64: 1>, scalar_prefetch = 0 : i64, scratch_operands = 0 : i64, tpu.core_type = #tpu.core_type<tc>, window_params = [{transform_indices = @transform_0, window_bounds = array<i64: 8, 320>}, {pipeline_mode = #tpu.pipeline_mode<synchronous>, transform_indices = @transform_1, window_bounds = array<i64: 320, 50>}, {pipeline_mode = #tpu.pipeline_mode<synchronous>, transform_indices = @transform_2, window_bounds = array<i64: 1, 50>}, {pipeline_mode = #tpu.pipeline_mode<synchronous>, transform_indices = @transform_3, window_bounds = array<i64: 50, 10>}, {pipeline_mode = #tpu.pipeline_mode<synchronous>, transform_indices = @transform_4, window_bounds = array<i64: 1, 10>}, {transform_indices = @transform_5, window_bounds = array<i64: 8, 10>}]} {
    %c0 = arith.constant 0 : index
    %c0_0 = arith.constant 0 : index
    %0 = vector.load %arg1[%c0, %c0_0] : memref<8x320xbf16, #tpu.memory_space<vmem>>, vector<8x320xbf16>
    %c0_1 = arith.constant 0 : index
    %c0_2 = arith.constant 0 : index
    %1 = vector.load %arg2[%c0_1, %c0_2] : memref<320x50xbf16, #tpu.memory_space<vmem>>, vector<320x50xbf16>
    %cst = arith.constant dense<0.000000e+00> : vector<8x50xf32>
    %2 = tpu.matmul %0, %1, %cst {dimension_numbers = #tpu.dot_dimension_numbers<[1], [0], [0], [1], [0, 0, 1, 1], [], []>} : vector<8x320xbf16>, vector<320x50xbf16>, vector<8x50xf32> -> vector<8x50xf32>
    %c0_3 = arith.constant 0 : index
    %c0_4 = arith.constant 0 : index
    %3 = vector.load %arg3[%c0_3, %c0_4] : memref<1x50xf32, #tpu.memory_space<vmem>>, vector<1x50xf32>
    %4 = vector.broadcast %3 : vector<1x50xf32> to vector<8x50xf32>
    %5 = arith.addf %2, %4 : vector<8x50xf32>
    %cst_5 = arith.constant 0.000000e+00 : f32
    %6 = vector.broadcast %cst_5 : f32 to vector<8x50xf32>
    %7 = arith.maximumf %5, %6 : vector<8x50xf32>
    %8 = arith.truncf %7 : vector<8x50xf32> to vector<8x50xbf16>
    %c0_6 = arith.constant 0 : index
    %c0_7 = arith.constant 0 : index
    %9 = vector.load %arg4[%c0_6, %c0_7] : memref<50x10xbf16, #tpu.memory_space<vmem>>, vector<50x10xbf16>
    %cst_8 = arith.constant dense<0.000000e+00> : vector<8x10xf32>
    %10 = tpu.matmul %8, %9, %cst_8 {dimension_numbers = #tpu.dot_dimension_numbers<[1], [0], [0], [1], [0, 0, 1, 1], [], []>} : vector<8x50xbf16>, vector<50x10xbf16>, vector<8x10xf32> -> vector<8x10xf32>
    %c0_9 = arith.constant 0 : index
    %c0_10 = arith.constant 0 : index
    %11 = vector.load %arg5[%c0_9, %c0_10] : memref<1x10xf32, #tpu.memory_space<vmem>>, vector<1x10xf32>
    %12 = vector.broadcast %11 : vector<1x10xf32> to vector<8x10xf32>
    %13 = arith.addf %10, %12 : vector<8x10xf32>
    %cst_11 = arith.constant dense<0xFF800000> : vector<8xf32>
    %14 = vector.multi_reduction <maximumf>, %13, %cst_11 [1] : vector<8x10xf32> to vector<8xf32>
    %15 = vector.shape_cast %14 : vector<8xf32> to vector<8x1xf32>
    %16 = vector.broadcast %15 : vector<8x1xf32> to vector<8x10xf32>
    %17 = arith.subf %13, %16 : vector<8x10xf32>
    %18 = math.exp %17 : vector<8x10xf32>
    %cst_12 = arith.constant dense<0.000000e+00> : vector<8xf32>
    %19 = vector.multi_reduction <add>, %18, %cst_12 [1] : vector<8x10xf32> to vector<8xf32>
    %20 = vector.shape_cast %19 : vector<8xf32> to vector<8x1xf32>
    %21 = math.log %20 : vector<8x1xf32>
    %22 = vector.broadcast %21 : vector<8x1xf32> to vector<8x10xf32>
    %23 = arith.subf %17, %22 : vector<8x10xf32>
    %c0_13 = arith.constant 0 : index
    %c0_14 = arith.constant 0 : index
    %24 = vector.load %arg6[%c0_13, %c0_14] : memref<8x10xf32, #tpu.memory_space<vmem>>, vector<8x10xf32>
    tpu.vector_store %arg6[%c0_13, %c0_14], %23 {strides = array<i32>} : memref<8x10xf32, #tpu.memory_space<vmem>>, vector<8x10xf32>,
    return
  }
  func.func @transform_0(%arg0: i32) -> (i32, i32) {
    %c0_i32 = arith.constant 0 : i32
    %c0_i32_0 = arith.constant 0 : i32
    return %arg0, %c0_i32 : i32, i32
  }
  func.func @transform_1(%arg0: i32) -> (i32, i32) {
    %c0_i32 = arith.constant 0 : i32
    %c0_i32_0 = arith.constant 0 : i32
    %c0_i32_1 = arith.constant 0 : i32
    return %c0_i32, %c0_i32_0 : i32, i32
  }
  func.func @transform_2(%arg0: i32) -> (i32, i32) {
    %c0_i32 = arith.constant 0 : i32
    %c0_i32_0 = arith.constant 0 : i32
    %c0_i32_1 = arith.constant 0 : i32
    return %c0_i32, %c0_i32_0 : i32, i32
  }
  func.func @transform_3(%arg0: i32) -> (i32, i32) {
    %c0_i32 = arith.constant 0 : i32
    %c0_i32_0 = arith.constant 0 : i32
    %c0_i32_1 = arith.constant 0 : i32
    return %c0_i32, %c0_i32_0 : i32, i32
  }
  func.func @transform_4(%arg0: i32) -> (i32, i32) {
    %c0_i32 = arith.constant 0 : i32
    %c0_i32_0 = arith.constant 0 : i32
    %c0_i32_1 = arith.constant 0 : i32
    return %c0_i32, %c0_i32_0 : i32, i32
  }
  func.func @transform_5(%arg0: i32) -> (i32, i32) {
    %c0_i32 = arith.constant 0 : i32
    %c0_i32_0 = arith.constant 0 : i32
    return %arg0, %c0_i32 : i32, i32
  }
}

</mosaic_0001>

<llo_original>
// kernel: stn_forward.7
$region0: #{stn_forward.7}
  #allocation0 [shape = 'u32[]', space=smem, size = 0x4, offset = 0x4, fixed_abs, tag = 'smem constant byte address 0x4 - core index']
  #allocation1 [shape = 'u32[144,128]{1,0:T(1,128)}', space=vmem, size = 0x12000, scoped, tag = 'internal scratch']
  %s0 = inlined_call_operand.vmem [shape: bf16[4,49,256], index: 0, kind: input, shape index: {}]
  %s1 = inlined_call_operand.vmem [shape: bf16[8,49], index: 1, kind: input, shape index: {}]
  %s2 = inlined_call_operand.vmem [shape: f32[8,1], index: 2, kind: input, shape index: {}]
  %s3 = inlined_call_operand.vmem [shape: f32[8,256], index: 3, kind: output, shape index: {}]
  %s4 = sld [smem:[#allocation0]]
  $region22: #{stn_forward.7} parent=0
    _
  %s6 = ssub.s32 1, %s4
  %s7 = scalar_select 0, %s6, %s4
  // Predicated region
  $region2: #{stn_forward.7} parent=0 // pred_check
    _
  $region3: #{stn_forward.7} parent=0 // pred_check_branch
    %9 = sbr.rel (0) target = $region5
  $region4: #{stn_forward.7} parent=0 // pred_region
    _
  $region5: #{stn_forward.7} parent=0 // pred_fallthru
    _
  // Predicated region
  $region6: #{stn_forward.7} parent=0 // pred_check
    _
  $region7: #{stn_forward.7} parent=0 // pred_check_branch
    %11 = sbr.rel (0) target = $region9
  $region8: #{stn_forward.7} parent=0 // pred_region
    _
  $region9: #{stn_forward.7} parent=0 // pred_fallthru
    _
  // Predicated region
  $region10: #{stn_forward.7} parent=0 // pred_check
    _
  $region11: #{stn_forward.7} parent=0 // pred_check_branch
    %13 = sbr.rel (0) target = $region13
  $region12: #{stn_forward.7} parent=0 // pred_region
    _
  $region13: #{stn_forward.7} parent=0 // pred_fallthru
    _
  %v15 = vld [vmem:[%s1] sm:$0xf]
  %v16 = vld [vmem:[%s0] sm:$0xff]
  %v17 = vld [vmem:[%s0 + $0x8] sm:$0xff]
  %v18 = vld [vmem:[%s0 + $0x10] sm:$0xff]
  %v19 = vld [vmem:[%s0 + $0x18] sm:$0xff]
  %v20 = vld [vmem:[%s0 + $0x20] sm:$0xff]
  %v21 = vld [vmem:[%s0 + $0x28] sm:$0xff]
  %v22 = vld [vmem:[%s0 + $0x30] sm:$0x11]
  %v30 = vunpack.c.l.b16 %v16
  %v31 = vunpack.c.h.b16 %v16
  %v32 = vunpack.c.l.b16 %v17
  %v33 = vunpack.c.h.b16 %v17
  %v34 = vunpack.c.l.b16 %v18
  %v35 = vunpack.c.h.b16 %v18
  %v36 = vunpack.c.l.b16 %v19
  %v37 = vunpack.c.h.b16 %v19
  %v38 = vunpack.c.l.b16 %v20
  %v39 = vunpack.c.h.b16 %v20
  %v40 = vunpack.c.l.b16 %v21
  %v41 = vunpack.c.h.b16 %v21
  %v42 = vunpack.c.l.b16 %v22
  %v43 = vunpack.c.h.b16 %v22
  %v44 = vpack.c.b16 %v32, %v30
  %v45 = vpack.c.b16 %v33, %v31
  %v46 = vpack.c.b16 %v36, %v34
  %v47 = vpack.c.b16 %v37, %v35
  %v48 = vpack.c.b16 %v40, %v38
  %v49 = vpack.c.b16 %v41, %v39
  %v50 = vpack.c.b16 %v42, %v42
  %v51 = vpack.c.b16 %v43, %v43
  %vm58 = vcmask 400384
  %v60 = vsel %vm58, %v15, 0
  %vm62 = vcmask 1040384
  %v63 = vsel 0, 4294967295, 65535
  %v64 = vsel %vm62, %v63, 0
  %v66 = vand.u32 %v50, %v64
  %v69 = vand.u32 %v51, %v64
  %71 = vmatprep.subr.bf16.mxu0 %v45
  %72 = vmatpush1.bf16.msra.mxu0 %v44
  %73 = vmatprep.subr.bf16.mxu0 %v47
  %74 = vmatpush1.bf16.msra.mxu0 %v46
  %75 = vmatprep.subr.bf16.mxu0 %v49
  %76 = vmatpush1.bf16.msra.mxu0 %v48
  %77 = vmatprep.subr.bf16.mxu0 %v69
  %78 = vmatpush1.bf16.msra.mxu0 %v66
  %79 = vmatprep.subr.bf16.mxu0 0
  %80 = vmatpush1.bf16.msra.mxu0 0
  %81 = vmatprep.subr.bf16.mxu0 0
  %82 = vmatpush1.bf16.msra.mxu0 0
  %83 = vmatprep.subr.bf16.mxu0 0
  %84 = vmatpush1.bf16.msra.mxu0 0
  %85 = vmatprep.subr.bf16.mxu0 0
  %86 = vmatpush1.bf16.msra.mxu0 0
  %87 = vmatprep.subr.bf16.mxu0 0
  %88 = vmatpush1.bf16.msra.mxu0 0
  %89 = vmatprep.subr.bf16.mxu0 0
  %90 = vmatpush1.bf16.msra.mxu0 0
  %91 = vmatprep.subr.bf16.mxu0 0
  %92 = vmatpush1.bf16.msra.mxu0 0
  %93 = vmatprep.subr.bf16.mxu0 0
  %94 = vmatpush1.bf16.msra.mxu0 0
  %95 = vmatprep.subr.bf16.mxu0 0
  %96 = vmatpush1.bf16.msra.mxu0 0
  %97 = vmatprep.subr.bf16.mxu0 0
  %98 = vmatpush1.bf16.msra.mxu0 0
  %99 = vmatprep.subr.bf16.mxu0 0
  %100 = vmatpush1.bf16.msra.mxu0 0
  %101 = vmatprep.subr.bf16.mxu0 0
  %102 = vmatpush1.bf16.msra.mxu0 0
  %103 = vmatprep.mubr.bf16.mxu0 0
  %104 = vmatmul.mubr.bf16.gmra.mrb[0].mxu0 %v60
  %v105 = vpop.f32.mrb[0].mxu0
  %v106 = vadd.f32 0.0, %v105
  %v107 = vpop.f32.mrb[0].mxu0
  %v108 = vadd.f32 0.0, %v107
  %v109 = vpop.f32.mrb[0].mxu0
  %v110 = vpop.f32.mrb[0].mxu0
  %111 = vdwg.mxu0
  %s112 = scalar_lea.vmem %s0, 56
  %v113 = vld [vmem:[%s112] sm:$0xff]
  %v114 = vld [vmem:[%s112 + $0x8] sm:$0xff]
  %v115 = vld [vmem:[%s112 + $0x10] sm:$0xff]
  %v116 = vld [vmem:[%s112 + $0x18] sm:$0xff]
  %v117 = vld [vmem:[%s112 + $0x20] sm:$0xff]
  %v118 = vld [vmem:[%s112 + $0x28] sm:$0xff]
  %v119 = vld [vmem:[%s112 + $0x30] sm:$0x11]
  %v127 = vunpack.c.l.b16 %v113
  %v128 = vunpack.c.h.b16 %v113
  %v129 = vunpack.c.l.b16 %v114
  %v130 = vunpack.c.h.b16 %v114
  %v131 = vunpack.c.l.b16 %v115
  %v132 = vunpack.c.h.b16 %v115
  %v133 = vunpack.c.l.b16 %v116
  %v134 = vunpack.c.h.b16 %v116
  %v135 = vunpack.c.l.b16 %v117
  %v136 = vunpack.c.h.b16 %v117
  %v137 = vunpack.c.l.b16 %v118
  %v138 = vunpack.c.h.b16 %v118
  %v139 = vunpack.c.l.b16 %v119
  %v140 = vunpack.c.h.b16 %v119
  %v141 = vpack.c.b16 %v129, %v127
  %v142 = vpack.c.b16 %v130, %v128
  %v143 = vpack.c.b16 %v133, %v131
  %v144 = vpack.c.b16 %v134, %v132
  %v145 = vpack.c.b16 %v137, %v135
  %v146 = vpack.c.b16 %v138, %v136
  %v147 = vpack.c.b16 %v139, %v139
  %v148 = vpack.c.b16 %v140, %v140
  %v156 = vand.u32 %v147, %v64
  %v159 = vand.u32 %v148, %v64
  %161 = vmatprep.subr.bf16.mxu0 %v142
  %162 = vmatpush1.bf16.msra.mxu0 %v141
  %163 = vmatprep.subr.bf16.mxu0 %v144
  %164 = vmatpush1.bf16.msra.mxu0 %v143
  %165 = vmatprep.subr.bf16.mxu0 %v146
  %166 = vmatpush1.bf16.msra.mxu0 %v145
  %167 = vmatprep.subr.bf16.mxu0 %v159
  %168 = vmatpush1.bf16.msra.mxu0 %v156
  %169 = vmatprep.subr.bf16.mxu0 0
  %170 = vmatpush1.bf16.msra.mxu0 0
  %171 = vmatprep.subr.bf16.mxu0 0
  %172 = vmatpush1.bf16.msra.mxu0 0
  %173 = vmatprep.subr.bf16.mxu0 0
  %174 = vmatpush1.bf16.msra.mxu0 0
  %175 = vmatprep.subr.bf16.mxu0 0
  %176 = vmatpush1.bf16.msra.mxu0 0
  %177 = vmatprep.subr.bf16.mxu0 0
  %178 = vmatpush1.bf16.msra.mxu0 0
  %179 = vmatprep.subr.bf16.mxu0 0
  %180 = vmatpush1.bf16.msra.mxu0 0
  %181 = vmatprep.subr.bf16.mxu0 0
  %182 = vmatpush1.bf16.msra.mxu0 0
  %183 = vmatprep.subr.bf16.mxu0 0
  %184 = vmatpush1.bf16.msra.mxu0 0
  %185 = vmatprep.subr.bf16.mxu0 0
  %186 = vmatpush1.bf16.msra.mxu0 0
  %187 = vmatprep.subr.bf16.mxu0 0
  %188 = vmatpush1.bf16.msra.mxu0 0
  %189 = vmatprep.subr.bf16.mxu0 0
  %190 = vmatpush1.bf16.msra.mxu0 0
  %191 = vmatprep.subr.bf16.mxu0 0
  %192 = vmatpush1.bf16.msra.mxu0 0
  %193 = vmatprep.mubr.bf16.mxu0 0
  %194 = vmatmul.mubr.bf16.gmra.mrb[0].mxu0 %v60
  %v195 = vpop.f32.mrb[0].mxu0
  %v196 = vadd.f32 0.0, %v195
  %v197 = vpop.f32.mrb[0].mxu0
  %v198 = vadd.f32 0.0, %v197
  %v199 = vpop.f32.mrb[0].mxu0
  %v200 = vpop.f32.mrb[0].mxu0
  %201 = vdwg.mxu0
  %v202 = vmax.f32 %v106, %v196
  %v203 = vmax.f32 %v108, %v198
  %s204 = scalar_lea.vmem %s0, 112
  %v205 = vld [vmem:[%s204] sm:$0xff]
  %v206 = vld [vmem:[%s204 + $0x8] sm:$0xff]
  %v207 = vld [vmem:[%s204 + $0x10] sm:$0xff]
  %v208 = vld [vmem:[%s204 + $0x18] sm:$0xff]
  %v209 = vld [vmem:[%s204 + $0x20] sm:$0xff]
  %v210 = vld [vmem:[%s204 + $0x28] sm:$0xff]
  %v211 = vld [vmem:[%s204 + $0x30] sm:$0x11]
  %v219 = vunpack.c.l.b16 %v205
  %v220 = vunpack.c.h.b16 %v205
  %v221 = vunpack.c.l.b16 %v206
  %v222 = vunpack.c.h.b16 %v206
  %v223 = vunpack.c.l.b16 %v207
  %v224 = vunpack.c.h.b16 %v207
  %v225 = vunpack.c.l.b16 %v208
  %v226 = vunpack.c.h.b16 %v208
  %v227 = vunpack.c.l.b16 %v209
  %v228 = vunpack.c.h.b16 %v209
  %v229 = vunpack.c.l.b16 %v210
  %v230 = vunpack.c.h.b16 %v210
  %v231 = vunpack.c.l.b16 %v211
  %v232 = vunpack.c.h.b16 %v211
  %v233 = vpack.c.b16 %v221, %v219
  %v234 = vpack.c.b16 %v222, %v220
  %v235 = vpack.c.b16 %v225, %v223
  %v236 = vpack.c.b16 %v226, %v224
  %v237 = vpack.c.b16 %v229, %v227
  %v238 = vpack.c.b16 %v230, %v228
  %v239 = vpack.c.b16 %v231, %v231
  %v240 = vpack.c.b16 %v232, %v232
  %v248 = vand.u32 %v239, %v64
  %v251 = vand.u32 %v240, %v64
  %253 = vmatprep.subr.bf16.mxu0 %v234
  %254 = vmatpush1.bf16.msra.mxu0 %v233
  %255 = vmatprep.subr.bf16.mxu0 %v236
  %256 = vmatpush1.bf16.msra.mxu0 %v235
  %257 = vmatprep.subr.bf16.mxu0 %v238
  %258 = vmatpush1.bf16.msra.mxu0 %v237
  %259 = vmatprep.subr.bf16.mxu0 %v251
  %260 = vmatpush1.bf16.msra.mxu0 %v248
  %261 = vmatprep.subr.bf16.mxu0 0
  %262 = vmatpush1.bf16.msra.mxu0 0
  %263 = vmatprep.subr.bf16.mxu0 0
  %264 = vmatpush1.bf16.msra.mxu0 0
  %265 = vmatprep.subr.bf16.mxu0 0
  %266 = vmatpush1.bf16.msra.mxu0 0
  %267 = vmatprep.subr.bf16.mxu0 0
  %268 = vmatpush1.bf16.msra.mxu0 0
  %269 = vmatprep.subr.bf16.mxu0 0
  %270 = vmatpush1.bf16.msra.mxu0 0
  %271 = vmatprep.subr.bf16.mxu0 0
  %272 = vmatpush1.bf16.msra.mxu0 0
  %273 = vmatprep.subr.bf16.mxu0 0
  %274 = vmatpush1.bf16.msra.mxu0 0
  %275 = vmatprep.subr.bf16.mxu0 0
  %276 = vmatpush1.bf16.msra.mxu0 0
  %277 = vmatprep.subr.bf16.mxu0 0
  %278 = vmatpush1.bf16.msra.mxu0 0
  %279 = vmatprep.subr.bf16.mxu0 0
  %280 = vmatpush1.bf16.msra.mxu0 0
  %281 = vmatprep.subr.bf16.mxu0 0
  %282 = vmatpush1.bf16.msra.mxu0 0
  %283 = vmatprep.subr.bf16.mxu0 0
  %284 = vmatpush1.bf16.msra.mxu0 0
  %285 = vmatprep.mubr.bf16.mxu0 0
  %286 = vmatmul.mubr.bf16.gmra.mrb[0].mxu0 %v60
  %v287 = vpop.f32.mrb[0].mxu0
  %v288 = vadd.f32 0.0, %v287
  %v289 = vpop.f32.mrb[0].mxu0
  %v290 = vadd.f32 0.0, %v289
  %v291 = vpop.f32.mrb[0].mxu0
  %v292 = vpop.f32.mrb[0].mxu0
  %293 = vdwg.mxu0
  %v294 = vmax.f32 %v202, %v288
  %v295 = vmax.f32 %v203, %v290
  %s296 = scalar_lea.vmem %s0, 168
  %v297 = vld [vmem:[%s296] sm:$0xff]
  %v298 = vld [vmem:[%s296 + $0x8] sm:$0xff]
  %v299 = vld [vmem:[%s296 + $0x10] sm:$0xff]
  %v300 = vld [vmem:[%s296 + $0x18] sm:$0xff]
  %v301 = vld [vmem:[%s296 + $0x20] sm:$0xff]
  %v302 = vld [vmem:[%s296 + $0x28] sm:$0xff]
  %v303 = vld [vmem:[%s296 + $0x30] sm:$0x11]
  %v311 = vunpack.c.l.b16 %v297
  %v312 = vunpack.c.h.b16 %v297
  %v313 = vunpack.c.l.b16 %v298
  %v314 = vunpack.c.h.b16 %v298
  %v315 = vunpack.c.l.b16 %v299
  %v316 = vunpack.c.h.b16 %v299
  %v317 = vunpack.c.l.b16 %v300
  %v318 = vunpack.c.h.b16 %v300
  %v319 = vunpack.c.l.b16 %v301
  %v320 = vunpack.c.h.b16 %v301
  %v321 = vunpack.c.l.b16 %v302
  %v322 = vunpack.c.h.b16 %v302
  %v323 = vunpack.c.l.b16 %v303
  %v324 = vunpack.c.h.b16 %v303
  %v325 = vpack.c.b16 %v313, %v311
  %v326 = vpack.c.b16 %v314, %v312
  %v327 = vpack.c.b16 %v317, %v315
  %v328 = vpack.c.b16 %v318, %v316
  %v329 = vpack.c.b16 %v321, %v319
  %v330 = vpack.c.b16 %v322, %v320
  %v331 = vpack.c.b16 %v323, %v323
  %v332 = vpack.c.b16 %v324, %v324
  %v340 = vand.u32 %v331, %v64
  %v343 = vand.u32 %v332, %v64
  %345 = vmatprep.subr.bf16.mxu0 %v326
  %346 = vmatpush1.bf16.msra.mxu0 %v325
  %347 = vmatprep.subr.bf16.mxu0 %v328
  %348 = vmatpush1.bf16.msra.mxu0 %v327
  %349 = vmatprep.subr.bf16.mxu0 %v330
  %350 = vmatpush1.bf16.msra.mxu0 %v329
  %351 = vmatprep.subr.bf16.mxu0 %v343
  %352 = vmatpush1.bf16.msra.mxu0 %v340
  %353 = vmatprep.subr.bf16.mxu0 0
  %354 = vmatpush1.bf16.msra.mxu0 0
  %355 = vmatprep.subr.bf16.mxu0 0
  %356 = vmatpush1.bf16.msra.mxu0 0
  %357 = vmatprep.subr.bf16.mxu0 0
  %358 = vmatpush1.bf16.msra.mxu0 0
  %359 = vmatprep.subr.bf16.mxu0 0
  %360 = vmatpush1.bf16.msra.mxu0 0
  %361 = vmatprep.subr.bf16.mxu0 0
  %362 = vmatpush1.bf16.msra.mxu0 0
  %363 = vmatprep.subr.bf16.mxu0 0
  %364 = vmatpush1.bf16.msra.mxu0 0
  %365 = vmatprep.subr.bf16.mxu0 0
  %366 = vmatpush1.bf16.msra.mxu0 0
  %367 = vmatprep.subr.bf16.mxu0 0
  %368 = vmatpush1.bf16.msra.mxu0 0
  %369 = vmatprep.subr.bf16.mxu0 0
  %370 = vmatpush1.bf16.msra.mxu0 0
  %371 = vmatprep.subr.bf16.mxu0 0
  %372 = vmatpush1.bf16.msra.mxu0 0
  %373 = vmatprep.subr.bf16.mxu0 0
  %374 = vmatpush1.bf16.msra.mxu0 0
  %375 = vmatprep.subr.bf16.mxu0 0
  %376 = vmatpush1.bf16.msra.mxu0 0
  %377 = vmatprep.mubr.bf16.mxu0 0
  %378 = vmatmul.mubr.bf16.gmra.mrb[0].mxu0 %v60
  %v379 = vpop.f32.mrb[0].mxu0
  %v380 = vadd.f32 0.0, %v379
  %v381 = vpop.f32.mrb[0].mxu0
  %v382 = vadd.f32 0.0, %v381
  %v383 = vpop.f32.mrb[0].mxu0
  %v384 = vpop.f32.mrb[0].mxu0
  %385 = vdwg.mxu0
  %v386 = vmax.f32 %v294, %v380
  %v387 = vmax.f32 %v295, %v382
  %v388 = vld [vmem:[%s2] sm:$0xff]
  %390 = vset.pattern.permute.xlu0 0
  %391 = vperm.xlu0 %390, %v388
  %v392 = vpop.permute.xlu0 %391
  %v394 = vadd.f32 %v386, %v392
  %v395 = vadd.f32 %v387, %v392
  %v396 = vmax.f32 %v394, 0.0
  %v397 = vmax.f32 %v395, 0.0
  %398 = vst [vmem:[%s3] sm:$0xff] %v396
  %399 = vst [vmem:[%s3 + $0x8] sm:$0xff] %v397
  // Predicated region
  $region14: #{stn_forward.7} parent=0 // pred_check
    _
  $region15: #{stn_forward.7} parent=0 // pred_check_branch
    %401 = sbr.rel (0) target = $region17
  $region16: #{stn_forward.7} parent=0 // pred_region
    _
  $region17: #{stn_forward.7} parent=0 // pred_fallthru
    _
  // Predicated region
  $region18: #{stn_forward.7} parent=0 // pred_check
    _
  $region19: #{stn_forward.7} parent=0 // pred_check_branch
    %403 = sbr.rel (0) target = $region21
  $region20: #{stn_forward.7} parent=0 // pred_region
    _
  $region21: #{stn_forward.7} parent=0 // pred_fallthru
    _

// kernel: tile.8
$region0: #{tile.8}
  #allocation0 [shape = 's32[1]{0}', space=sflag, size = 0x4, scoped, tag = 'scoped memory for tile.8']
  %s0 = inlined_call_operand.vmem [shape: bf16[28], index: 0, kind: input, shape index: {}]
  %s1 = inlined_call_operand.vmem [shape: bf16[28,28], index: 1, kind: output, shape index: {}]
  // Predicated region
  $region2: #{tile.8} parent=0 // pred_check
    _
  $region3: #{tile.8} parent=0 // pred_check_branch
    %3 = sbr.rel (0) target = $region5
  $region4: #{tile.8} parent=0 // pred_region
    _
  $region5: #{tile.8} parent=0 // pred_fallthru
    _
  %v4 = vld [vmem:[%s0] ss:$0 sm:$0xff]
  %v5 = vunpack.i.l.bf16 %v4
  %v7 = vunpack.i.h.bf16 %v4
  %v9 = vpack.c.bf16 0.0, %v5
  %10 = vst [vmem:[%s1] sm:$0xf] %v9
  %s11 = scalar_lea.vmem %s1, 4
  %v12 = vpack.c.bf16 0.0, %v5
  %13 = vst [vmem:[%s11] sm:$0xf] %v12
  %s14 = scalar_lea.vmem %s1, 8
  %v15 = vpack.c.bf16 0.0, %v5
  %16 = vst [vmem:[%s14] sm:$0xf] %v15
  %s17 = scalar_lea.vmem %s1, 12
  %v18 = vpack.c.bf16 0.0, %v5
  %19 = vst [vmem:[%s17] sm:$0xf] %v18

// kernel: stn_forward.8
$region0: #{stn_forward.8}
  #allocation0 [shape = 'u32[]', space=smem, size = 0x4, offset = 0x4, fixed_abs, tag = 'smem constant byte address 0x4 - core index']
  #allocation1 [shape = 'u32[144,128]{1,0:T(1,128)}', space=vmem, size = 0x12000, scoped, tag = 'internal scratch']
  %s0 = inlined_call_operand.vmem [shape: bf16[4,200,128], index: 0, kind: input, shape index: {}]
  %s1 = inlined_call_operand.vmem [shape: bf16[10,200], index: 1, kind: input, shape index: {}]
  %s2 = inlined_call_operand.vmem [shape: f32[10,1], index: 2, kind: input, shape index: {}]
  %s3 = inlined_call_operand.vmem [shape: f32[10,128], index: 3, kind: output, shape index: {}]
  %s4 = sld [smem:[#allocation0]]
  $region22: #{stn_forward.8} parent=0
    _
  %s6 = ssub.s32 1, %s4
  %s7 = scalar_select 0, %s6, %s4
  // Predicated region
  $region2: #{stn_forward.8} parent=0 // pred_check
    _
  $region3: #{stn_forward.8} parent=0 // pred_check_branch
    %9 = sbr.rel (0) target = $region5
  $region4: #{stn_forward.8} parent=0 // pred_region
    _
  $region5: #{stn_forward.8} parent=0 // pred_fallthru
    _
  // Predicated region
  $region6: #{stn_forward.8} parent=0 // pred_check
    _
  $region7: #{stn_forward.8} parent=0 // pred_check_branch
    %11 = sbr.rel (0) target = $region9
  $region8: #{stn_forward.8} parent=0 // pred_region
    _
  $region9: #{stn_forward.8} parent=0 // pred_fallthru
    _
  // Predicated region
  $region10: #{stn_forward.8} parent=0 // pred_check
    _
  $region11: #{stn_forward.8} parent=0 // pred_check_branch
    %13 = sbr.rel (0) target = $region13
  $region12: #{stn_forward.8} parent=0 // pred_region
    _
  $region13: #{stn_forward.8} parent=0 // pred_fallthru
    _
  %v15 = vld [vmem:[%s1] sm:$0xff]
  %v16 = vld [vmem:[%s1 + $0x8] sm:$0x11]
  %v17 = vld [vmem:[%s0] sm:$0xf]
  %v18 = vld [vmem:[%s0 + $0x4] sm:$0xf]
  %v19 = vld [vmem:[%s0 + $0x8] sm:$0xf]
  %v20 = vld [vmem:[%s0 + $0xc] sm:$0xf]
  %v21 = vld [vmem:[%s0 + $0x10] sm:$0xf]
  %v22 = vld [vmem:[%s0 + $0x14] sm:$0xf]
  %v23 = vld [vmem:[%s0 + $0x18] sm:$0xf]
  %v24 = vld [vmem:[%s0 + $0x1c] sm:$0xf]
  %v25 = vld [vmem:[%s0 + $0x20] sm:$0xf]
  %v26 = vld [vmem:[%s0 + $0x24] sm:$0xf]
  %v27 = vld [vmem:[%s0 + $0x28] sm:$0xf]
  %v28 = vld [vmem:[%s0 + $0x2c] sm:$0xf]
  %v29 = vld [vmem:[%s0 + $0x30] sm:$0xf]
  %v30 = vld [vmem:[%s0 + $0x34] sm:$0xf]
  %v31 = vld [vmem:[%s0 + $0x38] sm:$0xf]
  %v32 = vld [vmem:[%s0 + $0x3c] sm:$0xf]
  %v33 = vld [vmem:[%s0 + $0x40] sm:$0xf]
  %v34 = vld [vmem:[%s0 + $0x44] sm:$0xf]
  %v35 = vld [vmem:[%s0 + $0x48] sm:$0xf]
  %v36 = vld [vmem:[%s0 + $0x4c] sm:$0xf]
  %v37 = vld [vmem:[%s0 + $0x50] sm:$0xf]
  %v38 = vld [vmem:[%s0 + $0x54] sm:$0xf]
  %v39 = vld [vmem:[%s0 + $0x58] sm:$0xf]
  %v40 = vld [vmem:[%s0 + $0x5c] sm:$0xf]
  %v41 = vld [vmem:[%s0 + $0x60] sm:$0xf]
  %v44 = vunpack.c.l.b16 %v15
  %v45 = vunpack.c.h.b16 %v15
  %v46 = vunpack.c.l.b16 %v16
  %v47 = vunpack.c.h.b16 %v16
  %v48 = vpack.c.b16 %v46, %v44
  %v49 = vpack.c.b16 %v47, %v45
  %v76 = vunpack.c.l.b16 %v17
  %v77 = vunpack.c.l.b16 %v18
  %v78 = vunpack.c.l.b16 %v19
  %v79 = vunpack.c.l.b16 %v20
  %v80 = vunpack.c.l.b16 %v21
  %v81 = vunpack.c.l.b16 %v22
  %v82 = vunpack.c.l.b16 %v23
  %v83 = vunpack.c.l.b16 %v24
  %v84 = vunpack.c.l.b16 %v25
  %v85 = vunpack.c.l.b16 %v26
  %v86 = vunpack.c.l.b16 %v27
  %v87 = vunpack.c.l.b16 %v28
  %v88 = vunpack.c.l.b16 %v29
  %v89 = vunpack.c.l.b16 %v30
  %v90 = vunpack.c.l.b16 %v31
  %v91 = vunpack.c.l.b16 %v32
  %v92 = vunpack.c.l.b16 %v33
  %v93 = vunpack.c.l.b16 %v34
  %v94 = vunpack.c.l.b16 %v35
  %v95 = vunpack.c.l.b16 %v36
  %v96 = vunpack.c.l.b16 %v37
  %v97 = vunpack.c.l.b16 %v38
  %v98 = vunpack.c.l.b16 %v39
  %v99 = vunpack.c.l.b16 %v40
  %v100 = vunpack.c.l.b16 %v41
  %v101 = vpack.c.b16 %v77, %v76
  %v102 = vpack.c.b16 %v79, %v78
  %v103 = vpack.c.b16 %v81, %v80
  %v104 = vpack.c.b16 %v83, %v82
  %v105 = vpack.c.b16 %v85, %v84
  %v106 = vpack.c.b16 %v87, %v86
  %v107 = vpack.c.b16 %v89, %v88
  %v108 = vpack.c.b16 %v91, %v90
  %v109 = vpack.c.b16 %v93, %v92
  %v110 = vpack.c.b16 %v95, %v94
  %v111 = vpack.c.b16 %v97, %v96
  %v112 = vpack.c.b16 %v99, %v98
  %v113 = vpack.c.b16 %v100, %v100
  %vm126 = vcmask 588800
  %v128 = vsel %vm126, %v49, 0
  %vm130 = vcmask 1043456
  %v132 = vsel %vm130, %v113, 0
  %134 = vmatprep.subr.bf16.mxu0 0
  %135 = vmatpush1.bf16.msra.mxu0 %v101
  %136 = vmatprep.subr.bf16.mxu0 0
  %137 = vmatpush1.bf16.msra.mxu0 %v102
  %138 = vmatprep.subr.bf16.mxu0 0
  %139 = vmatpush1.bf16.msra.mxu0 %v103
  %140 = vmatprep.subr.bf16.mxu0 0
  %141 = vmatpush1.bf16.msra.mxu0 %v104
  %142 = vmatprep.subr.bf16.mxu0 0
  %143 = vmatpush1.bf16.msra.mxu0 %v105
  %144 = vmatprep.subr.bf16.mxu0 0
  %145 = vmatpush1.bf16.msra.mxu0 %v106
  %146 = vmatprep.subr.bf16.mxu0 0
  %147 = vmatpush1.bf16.msra.mxu0 %v107
  %148 = vmatprep.subr.bf16.mxu0 0
  %149 = vmatpush1.bf16.msra.mxu0 %v108
  %150 = vmatprep.subr.bf16.mxu0 0
  %151 = vmatpush1.bf16.msra.mxu0 %v109
  %152 = vmatprep.subr.bf16.mxu0 0
  %153 = vmatpush1.bf16.msra.mxu0 %v110
  %154 = vmatprep.subr.bf16.mxu0 0
  %155 = vmatpush1.bf16.msra.mxu0 %v111
  %156 = vmatprep.subr.bf16.mxu0 0
  %157 = vmatpush1.bf16.msra.mxu0 %v112
  %158 = vmatprep.subr.bf16.mxu0 0
  %159 = vmatpush1.bf16.msra.mxu0 %v132
  %160 = vmatprep.subr.bf16.mxu0 0
  %161 = vmatpush1.bf16.msra.mxu0 0
  %162 = vmatprep.subr.bf16.mxu0 0
  %163 = vmatpush1.bf16.msra.mxu0 0
  %164 = vmatprep.subr.bf16.mxu0 0
  %165 = vmatpush1.bf16.msra.mxu0 0
  %166 = vmatprep.mubr.bf16.mxu0 %v128
  %167 = vmatmul.mubr.bf16.gmra.mrb[0].mxu0 %v48
  %v168 = vpop.f32.mrb[0].mxu0
  %v169 = vadd.f32 0.0, %v168
  %v170 = vpop.f32.mrb[0].mxu0
  %v171 = vpop.f32.mrb[0].mxu0
  %v172 = vadd.f32 0.0, %v171
  %v173 = vpop.f32.mrb[0].mxu0
  %174 = vdwg.mxu0
  %s175 = scalar_lea.vmem %s0, 100
  %v176 = vld [vmem:[%s175] sm:$0xf]
  %v177 = vld [vmem:[%s175 + $0x4] sm:$0xf]
  %v178 = vld [vmem:[%s175 + $0x8] sm:$0xf]
  %v179 = vld [vmem:[%s175 + $0xc] sm:$0xf]
  %v180 = vld [vmem:[%s175 + $0x10] sm:$0xf]
  %v181 = vld [vmem:[%s175 + $0x14] sm:$0xf]
  %v182 = vld [vmem:[%s175 + $0x18] sm:$0xf]
  %v183 = vld [vmem:[%s175 + $0x1c] sm:$0xf]
  %v184 = vld [vmem:[%s175 + $0x20] sm:$0xf]
  %v185 = vld [vmem:[%s175 + $0x24] sm:$0xf]
  %v186 = vld [vmem:[%s175 + $0x28] sm:$0xf]
  %v187 = vld [vmem:[%s175 + $0x2c] sm:$0xf]
  %v188 = vld [vmem:[%s175 + $0x30] sm:$0xf]
  %v189 = vld [vmem:[%s175 + $0x34] sm:$0xf]
  %v190 = vld [vmem:[%s175 + $0x38] sm:$0xf]
  %v191 = vld [vmem:[%s175 + $0x3c] sm:$0xf]
  %v192 = vld [vmem:[%s175 + $0x40] sm:$0xf]
  %v193 = vld [vmem:[%s175 + $0x44] sm:$0xf]
  %v194 = vld [vmem:[%s175 + $0x48] sm:$0xf]
  %v195 = vld [vmem:[%s175 + $0x4c] sm:$0xf]
  %v196 = vld [vmem:[%s175 + $0x50] sm:$0xf]
  %v197 = vld [vmem:[%s175 + $0x54] sm:$0xf]
  %v198 = vld [vmem:[%s175 + $0x58] sm:$0xf]
  %v199 = vld [vmem:[%s175 + $0x5c] sm:$0xf]
  %v200 = vld [vmem:[%s175 + $0x60] sm:$0xf]
  %v226 = vunpack.c.l.b16 %v176
  %v227 = vunpack.c.l.b16 %v177
  %v228 = vunpack.c.l.b16 %v178
  %v229 = vunpack.c.l.b16 %v179
  %v230 = vunpack.c.l.b16 %v180
  %v231 = vunpack.c.l.b16 %v181
  %v232 = vunpack.c.l.b16 %v182
  %v233 = vunpack.c.l.b16 %v183
  %v234 = vunpack.c.l.b16 %v184
  %v235 = vunpack.c.l.b16 %v185
  %v236 = vunpack.c.l.b16 %v186
  %v237 = vunpack.c.l.b16 %v187
  %v238 = vunpack.c.l.b16 %v188
  %v239 = vunpack.c.l.b16 %v189
  %v240 = vunpack.c.l.b16 %v190
  %v241 = vunpack.c.l.b16 %v191
  %v242 = vunpack.c.l.b16 %v192
  %v243 = vunpack.c.l.b16 %v193
  %v244 = vunpack.c.l.b16 %v194
  %v245 = vunpack.c.l.b16 %v195
  %v246 = vunpack.c.l.b16 %v196
  %v247 = vunpack.c.l.b16 %v197
  %v248 = vunpack.c.l.b16 %v198
  %v249 = vunpack.c.l.b16 %v199
  %v250 = vunpack.c.l.b16 %v200
  %v251 = vpack.c.b16 %v227, %v226
  %v252 = vpack.c.b16 %v229, %v228
  %v253 = vpack.c.b16 %v231, %v230
  %v254 = vpack.c.b16 %v233, %v232
  %v255 = vpack.c.b16 %v235, %v234
  %v256 = vpack.c.b16 %v237, %v236
  %v257 = vpack.c.b16 %v239, %v238
  %v258 = vpack.c.b16 %v241, %v240
  %v259 = vpack.c.b16 %v243, %v242
  %v260 = vpack.c.b16 %v245, %v244
  %v261 = vpack.c.b16 %v247, %v246
  %v262 = vpack.c.b16 %v249, %v248
  %v263 = vpack.c.b16 %v250, %v250
  %v277 = vsel %vm130, %v263, 0
  %279 = vmatprep.subr.bf16.mxu0 0
  %280 = vmatpush1.bf16.msra.mxu0 %v251
  %281 = vmatprep.subr.bf16.mxu0 0
  %282 = vmatpush1.bf16.msra.mxu0 %v252
  %283 = vmatprep.subr.bf16.mxu0 0
  %284 = vmatpush1.bf16.msra.mxu0 %v253
  %285 = vmatprep.subr.bf16.mxu0 0
  %286 = vmatpush1.bf16.msra.mxu0 %v254
  %287 = vmatprep.subr.bf16.mxu0 0
  %288 = vmatpush1.bf16.msra.mxu0 %v255
  %289 = vmatprep.subr.bf16.mxu0 0
  %290 = vmatpush1.bf16.msra.mxu0 %v256
  %291 = vmatprep.subr.bf16.mxu0 0
  %292 = vmatpush1.bf16.msra.mxu0 %v257
  %293 = vmatprep.subr.bf16.mxu0 0
  %294 = vmatpush1.bf16.msra.mxu0 %v258
  %295 = vmatprep.subr.bf16.mxu0 0
  %296 = vmatpush1.bf16.msra.mxu0 %v259
  %297 = vmatprep.subr.bf16.mxu0 0
  %298 = vmatpush1.bf16.msra.mxu0 %v260
  %299 = vmatprep.subr.bf16.mxu0 0
  %300 = vmatpush1.bf16.msra.mxu0 %v261
  %301 = vmatprep.subr.bf16.mxu0 0
  %302 = vmatpush1.bf16.msra.mxu0 %v262
  %303 = vmatprep.subr.bf16.mxu0 0
  %304 = vmatpush1.bf16.msra.mxu0 %v277
  %305 = vmatprep.subr.bf16.mxu0 0
  %306 = vmatpush1.bf16.msra.mxu0 0
  %307 = vmatprep.subr.bf16.mxu0 0
  %308 = vmatpush1.bf16.msra.mxu0 0
  %309 = vmatprep.subr.bf16.mxu0 0
  %310 = vmatpush1.bf16.msra.mxu0 0
  %311 = vmatprep.mubr.bf16.mxu0 %v128
  %312 = vmatmul.mubr.bf16.gmra.mrb[0].mxu0 %v48
  %v313 = vpop.f32.mrb[0].mxu0
  %v314 = vadd.f32 0.0, %v313
  %v315 = vpop.f32.mrb[0].mxu0
  %v316 = vpop.f32.mrb[0].mxu0
  %v317 = vadd.f32 0.0, %v316
  %v318 = vpop.f32.mrb[0].mxu0
  %319 = vdwg.mxu0
  %v320 = vmax.f32 %v169, %v314
  %v321 = vmax.f32 %v172, %v317
  %s322 = scalar_lea.vmem %s0, 200
  %v323 = vld [vmem:[%s322] sm:$0xf]
  %v324 = vld [vmem:[%s322 + $0x4] sm:$0xf]
  %v325 = vld [vmem:[%s322 + $0x8] sm:$0xf]
  %v326 = vld [vmem:[%s322 + $0xc] sm:$0xf]
  %v327 = vld [vmem:[%s322 + $0x10] sm:$0xf]
  %v328 = vld [vmem:[%s322 + $0x14] sm:$0xf]
  %v329 = vld [vmem:[%s322 + $0x18] sm:$0xf]
  %v330 = vld [vmem:[%s322 + $0x1c] sm:$0xf]
  %v331 = vld [vmem:[%s322 + $0x20] sm:$0xf]
  %v332 = vld [vmem:[%s322 + $0x24] sm:$0xf]
  %v333 = vld [vmem:[%s322 + $0x28] sm:$0xf]
  %v334 = vld [vmem:[%s322 + $0x2c] sm:$0xf]
  %v335 = vld [vmem:[%s322 + $0x30] sm:$0xf]
  %v336 = vld [vmem:[%s322 + $0x34] sm:$0xf]
  %v337 = vld [vmem:[%s322 + $0x38] sm:$0xf]
  %v338 = vld [vmem:[%s322 + $0x3c] sm:$0xf]
  %v339 = vld [vmem:[%s322 + $0x40] sm:$0xf]
  %v340 = vld [vmem:[%s322 + $0x44] sm:$0xf]
  %v341 = vld [vmem:[%s322 + $0x48] sm:$0xf]
  %v342 = vld [vmem:[%s322 + $0x4c] sm:$0xf]
  %v343 = vld [vmem:[%s322 + $0x50] sm:$0xf]
  %v344 = vld [vmem:[%s322 + $0x54] sm:$0xf]
  %v345 = vld [vmem:[%s322 + $0x58] sm:$0xf]
  %v346 = vld [vmem:[%s322 + $0x5c] sm:$0xf]
  %v347 = vld [vmem:[%s322 + $0x60] sm:$0xf]
  %v373 = vunpack.c.l.b16 %v323
  %v374 = vunpack.c.l.b16 %v324
  %v375 = vunpack.c.l.b16 %v325
  %v376 = vunpack.c.l.b16 %v326
  %v377 = vunpack.c.l.b16 %v327
  %v378 = vunpack.c.l.b16 %v328
  %v379 = vunpack.c.l.b16 %v329
  %v380 = vunpack.c.l.b16 %v330
  %v381 = vunpack.c.l.b16 %v331
  %v382 = vunpack.c.l.b16 %v332
  %v383 = vunpack.c.l.b16 %v333
  %v384 = vunpack.c.l.b16 %v334
  %v385 = vunpack.c.l.b16 %v335
  %v386 = vunpack.c.l.b16 %v336
  %v387 = vunpack.c.l.b16 %v337
  %v388 = vunpack.c.l.b16 %v338
  %v389 = vunpack.c.l.b16 %v339
  %v390 = vunpack.c.l.b16 %v340
  %v391 = vunpack.c.l.b16 %v341
  %v392 = vunpack.c.l.b16 %v342
  %v393 = vunpack.c.l.b16 %v343
  %v394 = vunpack.c.l.b16 %v344
  %v395 = vunpack.c.l.b16 %v345
  %v396 = vunpack.c.l.b16 %v346
  %v397 = vunpack.c.l.b16 %v347
  %v398 = vpack.c.b16 %v374, %v373
  %v399 = vpack.c.b16 %v376, %v375
  %v400 = vpack.c.b16 %v378, %v377
  %v401 = vpack.c.b16 %v380, %v379
  %v402 = vpack.c.b16 %v382, %v381
  %v403 = vpack.c.b16 %v384, %v383
  %v404 = vpack.c.b16 %v386, %v385
  %v405 = vpack.c.b16 %v388, %v387
  %v406 = vpack.c.b16 %v390, %v389
  %v407 = vpack.c.b16 %v392, %v391
  %v408 = vpack.c.b16 %v394, %v393
  %v409 = vpack.c.b16 %v396, %v395
  %v410 = vpack.c.b16 %v397, %v397
  %v424 = vsel %vm130, %v410, 0
  %426 = vmatprep.subr.bf16.mxu0 0
  %427 = vmatpush1.bf16.msra.mxu0 %v398
  %428 = vmatprep.subr.bf16.mxu0 0
  %429 = vmatpush1.bf16.msra.mxu0 %v399
  %430 = vmatprep.subr.bf16.mxu0 0
  %431 = vmatpush1.bf16.msra.mxu0 %v400
  %432 = vmatprep.subr.bf16.mxu0 0
  %433 = vmatpush1.bf16.msra.mxu0 %v401
  %434 = vmatprep.subr.bf16.mxu0 0
  %435 = vmatpush1.bf16.msra.mxu0 %v402
  %436 = vmatprep.subr.bf16.mxu0 0
  %437 = vmatpush1.bf16.msra.mxu0 %v403
  %438 = vmatprep.subr.bf16.mxu0 0
  %439 = vmatpush1.bf16.msra.mxu0 %v404
  %440 = vmatprep.subr.bf16.mxu0 0
  %441 = vmatpush1.bf16.msra.mxu0 %v405
  %442 = vmatprep.subr.bf16.mxu0 0
  %443 = vmatpush1.bf16.msra.mxu0 %v406
  %444 = vmatprep.subr.bf16.mxu0 0
  %445 = vmatpush1.bf16.msra.mxu0 %v407
  %446 = vmatprep.subr.bf16.mxu0 0
  %447 = vmatpush1.bf16.msra.mxu0 %v408
  %448 = vmatprep.subr.bf16.mxu0 0
  %449 = vmatpush1.bf16.msra.mxu0 %v409
  %450 = vmatprep.subr.bf16.mxu0 0
  %451 = vmatpush1.bf16.msra.mxu0 %v424
  %452 = vmatprep.subr.bf16.mxu0 0
  %453 = vmatpush1.bf16.msra.mxu0 0
  %454 = vmatprep.subr.bf16.mxu0 0
  %455 = vmatpush1.bf16.msra.mxu0 0
  %456 = vmatprep.subr.bf16.mxu0 0
  %457 = vmatpush1.bf16.msra.mxu0 0
  %458 = vmatprep.mubr.bf16.mxu0 %v128
  %459 = vmatmul.mubr.bf16.gmra.mrb[0].mxu0 %v48
  %v460 = vpop.f32.mrb[0].mxu0
  %v461 = vadd.f32 0.0, %v460
  %v462 = vpop.f32.mrb[0].mxu0
  %v463 = vpop.f32.mrb[0].mxu0
  %v464 = vadd.f32 0.0, %v463
  %v465 = vpop.f32.mrb[0].mxu0
  %466 = vdwg.mxu0
  %v467 = vmax.f32 %v320, %v461
  %v468 = vmax.f32 %v321, %v464
  %s469 = scalar_lea.vmem %s0, 300
  %v470 = vld [vmem:[%s469] sm:$0xf]
  %v471 = vld [vmem:[%s469 + $0x4] sm:$0xf]
  %v472 = vld [vmem:[%s469 + $0x8] sm:$0xf]
  %v473 = vld [vmem:[%s469 + $0xc] sm:$0xf]
  %v474 = vld [vmem:[%s469 + $0x10] sm:$0xf]
  %v475 = vld [vmem:[%s469 + $0x14] sm:$0xf]
  %v476 = vld [vmem:[%s469 + $0x18] sm:$0xf]
  %v477 = vld [vmem:[%s469 + $0x1c] sm:$0xf]
  %v478 = vld [vmem:[%s469 + $0x20] sm:$0xf]
  %v479 = vld [vmem:[%s469 + $0x24] sm:$0xf]
  %v480 = vld [vmem:[%s469 + $0x28] sm:$0xf]
  %v481 = vld [vmem:[%s469 + $0x2c] sm:$0xf]
  %v482 = vld [vmem:[%s469 + $0x30] sm:$0xf]
  %v483 = vld [vmem:[%s469 + $0x34] sm:$0xf]
  %v484 = vld [vmem:[%s469 + $0x38] sm:$0xf]
  %v485 = vld [vmem:[%s469 + $0x3c] sm:$0xf]
  %v486 = vld [vmem:[%s469 + $0x40] sm:$0xf]
  %v487 = vld [vmem:[%s469 + $0x44] sm:$0xf]
  %v488 = vld [vmem:[%s469 + $0x48] sm:$0xf]
  %v489 = vld [vmem:[%s469 + $0x4c] sm:$0xf]
  %v490 = vld [vmem:[%s469 + $0x50] sm:$0xf]
  %v491 = vld [vmem:[%s469 + $0x54] sm:$0xf]
  %v492 = vld [vmem:[%s469 + $0x58] sm:$0xf]
  %v493 = vld [vmem:[%s469 + $0x5c] sm:$0xf]
  %v494 = vld [vmem:[%s469 + $0x60] sm:$0xf]
  %v520 = vunpack.c.l.b16 %v470
  %v521 = vunpack.c.l.b16 %v471
  %v522 = vunpack.c.l.b16 %v472
  %v523 = vunpack.c.l.b16 %v473
  %v524 = vunpack.c.l.b16 %v474
  %v525 = vunpack.c.l.b16 %v475
  %v526 = vunpack.c.l.b16 %v476
  %v527 = vunpack.c.l.b16 %v477
  %v528 = vunpack.c.l.b16 %v478
  %v529 = vunpack.c.l.b16 %v479
  %v530 = vunpack.c.l.b16 %v480
  %v531 = vunpack.c.l.b16 %v481
  %v532 = vunpack.c.l.b16 %v482
  %v533 = vunpack.c.l.b16 %v483
  %v534 = vunpack.c.l.b16 %v484
  %v535 = vunpack.c.l.b16 %v485
  %v536 = vunpack.c.l.b16 %v486
  %v537 = vunpack.c.l.b16 %v487
  %v538 = vunpack.c.l.b16 %v488
  %v539 = vunpack.c.l.b16 %v489
  %v540 = vunpack.c.l.b16 %v490
  %v541 = vunpack.c.l.b16 %v491
  %v542 = vunpack.c.l.b16 %v492
  %v543 = vunpack.c.l.b16 %v493
  %v544 = vunpack.c.l.b16 %v494
  %v545 = vpack.c.b16 %v521, %v520
  %v546 = vpack.c.b16 %v523, %v522
  %v547 = vpack.c.b16 %v525, %v524
  %v548 = vpack.c.b16 %v527, %v526
  %v549 = vpack.c.b16 %v529, %v528
  %v550 = vpack.c.b16 %v531, %v530
  %v551 = vpack.c.b16 %v533, %v532
  %v552 = vpack.c.b16 %v535, %v534
  %v553 = vpack.c.b16 %v537, %v536
  %v554 = vpack.c.b16 %v539, %v538
  %v555 = vpack.c.b16 %v541, %v540
  %v556 = vpack.c.b16 %v543, %v542
  %v557 = vpack.c.b16 %v544, %v544
  %v571 = vsel %vm130, %v557, 0
  %573 = vmatprep.subr.bf16.mxu0 0
  %574 = vmatpush1.bf16.msra.mxu0 %v545
  %575 = vmatprep.subr.bf16.mxu0 0
  %576 = vmatpush1.bf16.msra.mxu0 %v546
  %577 = vmatprep.subr.bf16.mxu0 0
  %578 = vmatpush1.bf16.msra.mxu0 %v547
  %579 = vmatprep.subr.bf16.mxu0 0
  %580 = vmatpush1.bf16.msra.mxu0 %v548
  %581 = vmatprep.subr.bf16.mxu0 0
  %582 = vmatpush1.bf16.msra.mxu0 %v549
  %583 = vmatprep.subr.bf16.mxu0 0
  %584 = vmatpush1.bf16.msra.mxu0 %v550
  %585 = vmatprep.subr.bf16.mxu0 0
  %586 = vmatpush1.bf16.msra.mxu0 %v551
  %587 = vmatprep.subr.bf16.mxu0 0
  %588 = vmatpush1.bf16.msra.mxu0 %v552
  %589 = vmatprep.subr.bf16.mxu0 0
  %590 = vmatpush1.bf16.msra.mxu0 %v553
  %591 = vmatprep.subr.bf16.mxu0 0
  %592 = vmatpush1.bf16.msra.mxu0 %v554
  %593 = vmatprep.subr.bf16.mxu0 0
  %594 = vmatpush1.bf16.msra.mxu0 %v555
  %595 = vmatprep.subr.bf16.mxu0 0
  %596 = vmatpush1.bf16.msra.mxu0 %v556
  %597 = vmatprep.subr.bf16.mxu0 0
  %598 = vmatpush1.bf16.msra.mxu0 %v571
  %599 = vmatprep.subr.bf16.mxu0 0
  %600 = vmatpush1.bf16.msra.mxu0 0
  %601 = vmatprep.subr.bf16.mxu0 0
  %602 = vmatpush1.bf16.msra.mxu0 0
  %603 = vmatprep.subr.bf16.mxu0 0
  %604 = vmatpush1.bf16.msra.mxu0 0
  %605 = vmatprep.mubr.bf16.mxu0 %v128
  %606 = vmatmul.mubr.bf16.gmra.mrb[0].mxu0 %v48
  %v607 = vpop.f32.mrb[0].mxu0
  %v608 = vadd.f32 0.0, %v607
  %v609 = vpop.f32.mrb[0].mxu0
  %v610 = vpop.f32.mrb[0].mxu0
  %v611 = vadd.f32 0.0, %v610
  %v612 = vpop.f32.mrb[0].mxu0
  %613 = vdwg.mxu0
  %v614 = vmax.f32 %v467, %v608
  %v615 = vmax.f32 %v468, %v611
  %v616 = vld [vmem:[%s2] sm:$0xff]
  %v617 = vld [vmem:[%s2 + $0x8] sm:$0x3]
  %619 = vset.pattern.permute.xlu0 0
  %620 = vperm.xlu0 %619, %v616
  %v621 = vpop.permute.xlu0 %620
  %624 = vset.pattern.permute.xlu0 0
  %625 = vperm.xlu0 %624, %v617
  %v626 = vpop.permute.xlu0 %625
  %v628 = vadd.f32 %v614, %v621
  %v629 = vadd.f32 %v615, %v626
  %v630 = vmax.f32 %v628, 0.0
  %v631 = vmax.f32 %v629, 0.0
  %632 = vst [vmem:[%s3] sm:$0xff] %v630
  %633 = vst [vmem:[%s3 + $0x8] sm:$0x3] %v631
  // Predicated region
  $region14: #{stn_forward.8} parent=0 // pred_check
    _
  $region15: #{stn_forward.8} parent=0 // pred_check_branch
    %635 = sbr.rel (0) target = $region17
  $region16: #{stn_forward.8} parent=0 // pred_region
    _
  $region17: #{stn_forward.8} parent=0 // pred_fallthru
    _
  // Predicated region
  $region18: #{stn_forward.8} parent=0 // pred_check
    _
  $region19: #{stn_forward.8} parent=0 // pred_check_branch
    %637 = sbr.rel (0) target = $region21
  $region20: #{stn_forward.8} parent=0 // pred_region
    _
  $region21: #{stn_forward.8} parent=0 // pred_fallthru
    _

// kernel: stn_forward.9
$region0: #{stn_forward.9}
  #allocation0 [shape = 'u32[]', space=smem, size = 0x4, offset = 0x4, fixed_abs, tag = 'smem constant byte address 0x4 - core index']
  #allocation1 [shape = 'u32[144,128]{1,0:T(1,128)}', space=vmem, size = 0x12000, scoped, tag = 'internal scratch']
  %s0 = inlined_call_operand.vmem [shape: bf16[8,90], index: 0, kind: input, shape index: {}]
  %s1 = inlined_call_operand.vmem [shape: bf16[90,32], index: 1, kind: input, shape index: {}]
  %s2 = inlined_call_operand.vmem [shape: f32[1,32], index: 2, kind: input, shape index: {}]
  %s3 = inlined_call_operand.vmem [shape: bf16[32,6], index: 3, kind: input, shape index: {}]
  %s4 = inlined_call_operand.vmem [shape: f32[1,6], index: 4, kind: input, shape index: {}]
  %s5 = inlined_call_operand.vmem [shape: f32[8,6], index: 5, kind: output, shape index: {}]
  %s6 = sld [smem:[#allocation0]]
  $region30: #{stn_forward.9} parent=0
    _
  %s8 = ssub.s32 1, %s6
  %s9 = scalar_select 0, %s8, %s6
  // Predicated region
  $region2: #{stn_forward.9} parent=0 // pred_check
    _
  $region3: #{stn_forward.9} parent=0 // pred_check_branch
    %11 = sbr.rel (0) target = $region5
  $region4: #{stn_forward.9} parent=0 // pred_region
    _
  $region5: #{stn_forward.9} parent=0 // pred_fallthru
    _
  // Predicated region
  $region6: #{stn_forward.9} parent=0 // pred_check
    _
  $region7: #{stn_forward.9} parent=0 // pred_check_branch
    %13 = sbr.rel (0) target = $region9
  $region8: #{stn_forward.9} parent=0 // pred_region
    _
  $region9: #{stn_forward.9} parent=0 // pred_fallthru
    _
  // Predicated region
  $region10: #{stn_forward.9} parent=0 // pred_check
    _
  $region11: #{stn_forward.9} parent=0 // pred_check_branch
    %15 = sbr.rel (0) target = $region13
  $region12: #{stn_forward.9} parent=0 // pred_region
    _
  $region13: #{stn_forward.9} parent=0 // pred_fallthru
    _
  // Predicated region
  $region14: #{stn_forward.9} parent=0 // pred_check
    _
  $region15: #{stn_forward.9} parent=0 // pred_check_branch
    %17 = sbr.rel (0) target = $region17
  $region16: #{stn_forward.9} parent=0 // pred_region
    _
  $region17: #{stn_forward.9} parent=0 // pred_fallthru
    _
  // Predicated region
  $region18: #{stn_forward.9} parent=0 // pred_check
    _
  $region19: #{stn_forward.9} parent=0 // pred_check_branch
    %19 = sbr.rel (0) target = $region21
  $region20: #{stn_forward.9} parent=0 // pred_region
    _
  $region21: #{stn_forward.9} parent=0 // pred_fallthru
    _
  %v21 = vld [vmem:[%s0] sm:$0xf]
  %v22 = vld [vmem:[%s1] sm:$0xf]
  %v23 = vld [vmem:[%s1 + $0x4] sm:$0xf]
  %v24 = vld [vmem:[%s1 + $0x8] sm:$0xf]
  %v25 = vld [vmem:[%s1 + $0xc] sm:$0xf]
  %v26 = vld [vmem:[%s1 + $0x10] sm:$0xf]
  %v27 = vld [vmem:[%s1 + $0x14] sm:$0xf]
  %v28 = vld [vmem:[%s1 + $0x18] sm:$0xf]
  %v29 = vld [vmem:[%s1 + $0x1c] sm:$0xf]
  %v30 = vld [vmem:[%s1 + $0x20] sm:$0xf]
  %v31 = vld [vmem:[%s1 + $0x24] sm:$0xf]
  %v32 = vld [vmem:[%s1 + $0x28] sm:$0xf]
  %v33 = vld [vmem:[%s1 + $0x2c] sm:$0x1]
  %v34 = vld [vmem:[%s2] sm:$0x1]
  %v36 = vlaneseq
  %v37 = vshrl.u32 %v36, 7
  %v38 = vsub.s32 0, %v37
  %v39 = vrot.slane %v34, %v38
  %v53 = vunpack.c.l.b16 %v22
  %v54 = vunpack.c.l.b16 %v23
  %v55 = vunpack.c.l.b16 %v24
  %v56 = vunpack.c.l.b16 %v25
  %v57 = vunpack.c.l.b16 %v26
  %v58 = vunpack.c.l.b16 %v27
  %v59 = vunpack.c.l.b16 %v28
  %v60 = vunpack.c.l.b16 %v29
  %v61 = vunpack.c.l.b16 %v30
  %v62 = vunpack.c.l.b16 %v31
  %v63 = vunpack.c.l.b16 %v32
  %v64 = vunpack.c.l.b16 %v33
  %v65 = vpack.c.b16 %v54, %v53
  %v66 = vpack.c.b16 %v56, %v55
  %v67 = vpack.c.b16 %v58, %v57
  %v68 = vpack.c.b16 %v60, %v59
  %v69 = vpack.c.b16 %v62, %v61
  %v70 = vpack.c.b16 %v64, %v63
  %vm76 = vcmask 736256
  %v78 = vsel %vm76, %v21, 0
  %vm80 = vcmask 1044480
  %v82 = vsel %vm80, %v70, 0
  %84 = vmatprep.subr.bf16.mxu0 0
  %85 = vmatpush1.bf16.msra.mxu0 %v65
  %86 = vmatprep.subr.bf16.mxu0 0
  %87 = vmatpush1.bf16.msra.mxu0 %v66
  %88 = vmatprep.subr.bf16.mxu0 0
  %89 = vmatpush1.bf16.msra.mxu0 %v67
  %90 = vmatprep.subr.bf16.mxu0 0
  %91 = vmatpush1.bf16.msra.mxu0 %v68
  %92 = vmatprep.subr.bf16.mxu0 0
  %93 = vmatpush1.bf16.msra.mxu0 %v69
  %94 = vmatprep.subr.bf16.mxu0 0
  %95 = vmatpush1.bf16.msra.mxu0 %v82
  %96 = vmatprep.subr.bf16.mxu0 0
  %97 = vmatpush1.bf16.msra.mxu0 0
  %98 = vmatprep.subr.bf16.mxu0 0
  %99 = vmatpush1.bf16.msra.mxu0 0
  %100 = vmatprep.subr.bf16.mxu0 0
  %101 = vmatpush1.bf16.msra.mxu0 0
  %102 = vmatprep.subr.bf16.mxu0 0
  %103 = vmatpush1.bf16.msra.mxu0 0
  %104 = vmatprep.subr.bf16.mxu0 0
  %105 = vmatpush1.bf16.msra.mxu0 0
  %106 = vmatprep.subr.bf16.mxu0 0
  %107 = vmatpush1.bf16.msra.mxu0 0
  %108 = vmatprep.subr.bf16.mxu0 0
  %109 = vmatpush1.bf16.msra.mxu0 0
  %110 = vmatprep.subr.bf16.mxu0 0
  %111 = vmatpush1.bf16.msra.mxu0 0
  %112 = vmatprep.subr.bf16.mxu0 0
  %113 = vmatpush1.bf16.msra.mxu0 0
  %114 = vmatprep.subr.bf16.mxu0 0
  %115 = vmatpush1.bf16.msra.mxu0 0
  %116 = vmatprep.mubr.bf16.mxu0 0
  %117 = vmatmul.mubr.bf16.gmra.mrb[0].mxu0 %v78
  %v118 = vpop.f32.mrb[0].mxu0
  %v119 = vadd.f32 %v39, %v118
  %v120 = vpop.f32.mrb[0].mxu0
  %v121 = vpop.f32.mrb[0].mxu0
  %v122 = vpop.f32.mrb[0].mxu0
  %123 = vdwg.mxu0
  %v124 = vmax.f32 %v119, 0.0
  %v125 = vpack.c.bf16 %v124, %v124
  %v126 = vld [vmem:[%s3] sm:$0xf]
  %v127 = vld [vmem:[%s3 + $0x4] sm:$0xf]
  %v128 = vld [vmem:[%s3 + $0x8] sm:$0xf]
  %v129 = vld [vmem:[%s3 + $0xc] sm:$0xf]
  %v130 = vld [vmem:[%s4] sm:$0x1]
  %v132 = vlaneseq
  %v133 = vshrl.u32 %v132, 7
  %v134 = vsub.s32 0, %v133
  %v135 = vrot.slane %v130, %v134
  %v141 = vunpack.c.l.b16 %v126
  %v142 = vunpack.c.l.b16 %v127
  %v143 = vunpack.c.l.b16 %v128
  %v144 = vunpack.c.l.b16 %v129
  %v145 = vpack.c.b16 %v142, %v141
  %v146 = vpack.c.b16 %v144, %v143
  %vm149 = vcmask 261120
  %v151 = vsel %vm149, %v125, 0
  %153 = vmatprep.subr.bf16.mxu0 0
  %154 = vmatpush1.bf16.msra.mxu0 %v145
  %155 = vmatprep.subr.bf16.mxu0 0
  %156 = vmatpush1.bf16.msra.mxu0 %v146
  %157 = vmatprep.subr.bf16.mxu0 0
  %158 = vmatpush1.bf16.msra.mxu0 0
  %159 = vmatprep.subr.bf16.mxu0 0
  %160 = vmatpush1.bf16.msra.mxu0 0
  %161 = vmatprep.subr.bf16.mxu0 0
  %162 = vmatpush1.bf16.msra.mxu0 0
  %163 = vmatprep.subr.bf16.mxu0 0
  %164 = vmatpush1.bf16.msra.mxu0 0
  %165 = vmatprep.subr.bf16.mxu0 0
  %166 = vmatpush1.bf16.msra.mxu0 0
  %167 = vmatprep.subr.bf16.mxu0 0
  %168 = vmatpush1.bf16.msra.mxu0 0
  %169 = vmatprep.subr.bf16.mxu0 0
  %170 = vmatpush1.bf16.msra.mxu0 0
  %171 = vmatprep.subr.bf16.mxu0 0
  %172 = vmatpush1.bf16.msra.mxu0 0
  %173 = vmatprep.subr.bf16.mxu0 0
  %174 = vmatpush1.bf16.msra.mxu0 0
  %175 = vmatprep.subr.bf16.mxu0 0
  %176 = vmatpush1.bf16.msra.mxu0 0
  %177 = vmatprep.subr.bf16.mxu0 0
  %178 = vmatpush1.bf16.msra.mxu0 0
  %179 = vmatprep.subr.bf16.mxu0 0
  %180 = vmatpush1.bf16.msra.mxu0 0
  %181 = vmatprep.subr.bf16.mxu0 0
  %182 = vmatpush1.bf16.msra.mxu0 0
  %183 = vmatprep.subr.bf16.mxu0 0
  %184 = vmatpush1.bf16.msra.mxu0 0
  %185 = vmatprep.mubr.bf16.mxu0 0
  %186 = vmatmul.mubr.bf16.gmra.mrb[0].mxu0 %v151
  %v187 = vpop.f32.mrb[0].mxu0
  %v188 = vadd.f32 %v135, %v187
  %v189 = vpop.f32.mrb[0].mxu0
  %v190 = vpop.f32.mrb[0].mxu0
  %v191 = vpop.f32.mrb[0].mxu0
  %192 = vdwg.mxu0
  %vm193 = vcmask 48128
  %194 = vst.msk [vmem:[%s5] sm:$0xff] %vm193, %v188
  // Predicated region
  $region22: #{stn_forward.9} parent=0 // pred_check
    _
  $region23: #{stn_forward.9} parent=0 // pred_check_branch
    %196 = sbr.rel (0) target = $region25
  $region24: #{stn_forward.9} parent=0 // pred_region
    _
  $region25: #{stn_forward.9} parent=0 // pred_fallthru
    _
  // Predicated region
  $region26: #{stn_forward.9} parent=0 // pred_check
    _
  $region27: #{stn_forward.9} parent=0 // pred_check_branch
    %198 = sbr.rel (0) target = $region29
  $region28: #{stn_forward.9} parent=0 // pred_region
    _
  $region29: #{stn_forward.9} parent=0 // pred_fallthru
    _

// kernel: stn_forward.10
$region0: #{stn_forward.10}
  #allocation0 [shape = 'u32[]', space=smem, size = 0x4, offset = 0x4, fixed_abs, tag = 'smem constant byte address 0x4 - core index']
  #allocation1 [shape = 'u32[144,128]{1,0:T(1,128)}', space=vmem, size = 0x12000, scoped, tag = 'internal scratch']
  %s0 = inlined_call_operand.vmem [shape: f32[2,2,784], index: 0, kind: input, shape index: {}]
  %s1 = inlined_call_operand.vmem [shape: f32[2,28,28], index: 1, kind: input, shape index: {}]
  %s2 = inlined_call_operand.vmem [shape: f32[2,1,784], index: 2, kind: output, shape index: {}]
  %s3 = sld [smem:[#allocation0]]
  $region41: #{stn_forward.10} parent=0
    _
  %s5 = ssub.s32 1, %s3
  %s6 = scalar_select 0, %s5, %s3
  loop: start=0, step=1, limit=4
  $region2: #{stn_forward.10} parent=0 // loop_pre_header
    _
  $region3: #{stn_forward.10} parent=0 // loop_header
    %s8 = sphi 0, %s12
    %p9 = scmp.ge.s32.totalorder %s8, 4
    %s18 = sphi 0, %s20
    %s21 = sphi 0, %s18
    %s22 = sphi 0, %s21
    %s38 = sphi 0, %s22
    %s44 = sphi 0, %s46
    %s47 = sphi 0, %s44
    %s48 = sphi 0, %s47
    %s64 = sphi 0, %s48
    %s70 = sphi 0, %s72
    %s73 = sphi 0, %s70
    %s74 = sphi 0, %s73
    %s90 = sphi 0, %s74
  $region4: #{stn_forward.10} parent=0 // loop_header_branch
    %11 = sbr.rel (%p9) target = $region8
  $region5: #{stn_forward.10} parent=0 // loop_body
    %s13 = ssub.s32 %s8, 1
    %s14 = ssub.s32 %s8, 2
    %s15 = sadd.s32 %s8, 1
    %s16 = ssub.s32 %s8, %s15
    %p17 = scmp.eq.s32.totalorder %s16, 0
    %s19 = sadd.s32 %s18, 1
    %s20 = scalar_select %p17, %s18, %s19
    %p23 = pneg %p17
    %p24 = scmp.eq.s32.totalorder %s8, 1
    %p25 = por %p23, %p24
    %p26 = scmp.ne.s32.totalorder %s18, %s21
    %p27 = scmp.eq.s32.totalorder %s8, 0
    %p28 = por %p26, %p27
    %p29 = scmp.ne.s32.totalorder %s18, %s21
    %p30 = scmp.eq.s32.totalorder %s13, 1
    %p31 = por %p29, %p30
    %p32 = scmp.ne.s32.totalorder %s21, %s22
    %p33 = scmp.eq.s32.totalorder %s13, 0
    %p34 = por %p32, %p33
    %p35 = scmp.ne.s32.totalorder %s21, %s22
    %p36 = scmp.eq.s32.totalorder %s14, 1
    %p37 = por %p35, %p36
    %p39 = scmp.ne.s32.totalorder %s22, %s38
    %p40 = scmp.eq.s32.totalorder %s14, 0
    %p41 = por %p39, %p40
    %s42 = ssub.s32 %s8, %s15
    %p43 = scmp.eq.s32.totalorder %s42, 0
    %s45 = sadd.s32 %s44, 1
    %s46 = scalar_select %p43, %s44, %s45
    %p49 = pneg %p43
    %p50 = scmp.eq.s32.totalorder %s8, 1
    %p51 = por %p49, %p50
    %p52 = scmp.ne.s32.totalorder %s44, %s47
    %p53 = scmp.eq.s32.totalorder %s8, 0
    %p54 = por %p52, %p53
    %p55 = scmp.ne.s32.totalorder %s44, %s47
    %p56 = scmp.eq.s32.totalorder %s13, 1
    %p57 = por %p55, %p56
    %p58 = scmp.ne.s32.totalorder %s47, %s48
    %p59 = scmp.eq.s32.totalorder %s13, 0
    %p60 = por %p58, %p59
    %p61 = scmp.ne.s32.totalorder %s47, %s48
    %p62 = scmp.eq.s32.totalorder %s14, 1
    %p63 = por %p61, %p62
    %p65 = scmp.ne.s32.totalorder %s48, %s64
    %p66 = scmp.eq.s32.totalorder %s14, 0
    %p67 = por %p65, %p66
    %s68 = ssub.s32 %s8, %s15
    %p69 = scmp.eq.s32.totalorder %s68, 0
    %s71 = sadd.s32 %s70, 1
    %s72 = scalar_select %p69, %s70, %s71
    %p75 = pneg %p69
    %p76 = scmp.eq.s32.totalorder %s8, 1
    %p77 = por %p75, %p76
    %p78 = scmp.ne.s32.totalorder %s70, %s73
    %p79 = scmp.eq.s32.totalorder %s8, 0
    %p80 = por %p78, %p79
    %p81 = scmp.ne.s32.totalorder %s70, %s73
    %p82 = scmp.eq.s32.totalorder %s13, 1
    %p83 = por %p81, %p82
    %p84 = scmp.ne.s32.totalorder %s73, %s74
    %p85 = scmp.eq.s32.totalorder %s13, 0
    %p86 = por %p84, %p85
    %p87 = scmp.ne.s32.totalorder %s73, %s74
    %p88 = scmp.eq.s32.totalorder %s14, 1
    %p89 = por %p87, %p88
    %p91 = scmp.ne.s32.totalorder %s74, %s90
    %p92 = scmp.eq.s32.totalorder %s14, 0
    %p93 = por %p91, %p92
    %p94 = scmp.le.s32.totalorder 1, %s8
    %p95 = scmp.lt.s32.totalorder %s8, 3
    %p96 = pnand %p94, %p95
    %p97 = pneg %p96
    // Predicated region
    $region9: #{stn_forward.10} parent=5 // pred_check
      _
    $region10: #{stn_forward.10} parent=5 // pred_check_branch
      %99 = sbr.rel (%p96) target = $region12
    $region11: #{stn_forward.10} parent=5 // pred_region
      %s100 = ssub.s32 %s8, 1
    $region12: #{stn_forward.10} parent=5 // pred_fallthru
      _
    %p101 = scmp.lt.s32.totalorder %s8, 2
    // Predicated region
    $region13: #{stn_forward.10} parent=5 // pred_check
      %p102 = pneg %p101
    $region14: #{stn_forward.10} parent=5 // pred_check_branch
      %104 = sbr.rel (%p102) target = $region16
    $region15: #{stn_forward.10} parent=5 // pred_region
      // Predicated region
      $region17: #{stn_forward.10} parent=15 // pred_check
        %p105 = pneg %p28
      $region18: #{stn_forward.10} parent=15 // pred_check_branch
        %107 = sbr.rel (%p105) target = $region20
      $region19: #{stn_forward.10} parent=15 // pred_region
        %p108 = scmp.lt.s32.totalorder %s8, 1
        %s109 = scalar_select %p108, %s8, 1
        %s110 = smul.addr %s109, 7
        %s111 = smul.addr %s110, 2
        %s112 = scalar_lea.vmem %s0, %s111
      $region20: #{stn_forward.10} parent=15 // pred_fallthru
        _
      // Predicated region
      $region21: #{stn_forward.10} parent=15 // pred_check
        %p113 = pneg %p54
      $region22: #{stn_forward.10} parent=15 // pred_check_branch
        %115 = sbr.rel (%p113) target = $region24
      $region23: #{stn_forward.10} parent=15 // pred_region
        %p116 = scmp.lt.s32.totalorder %s8, 1
        %s117 = scalar_select %p116, %s8, 1
        %s118 = smul.addr %s117, 4
        %s119 = smul.addr %s118, 8
        %s120 = scalar_lea.vmem %s1, %s119
      $region24: #{stn_forward.10} parent=15 // pred_fallthru
        _
    $region16: #{stn_forward.10} parent=5 // pred_fallthru
      _
    %p121 = scmp.le.s32.totalorder 1, %s8
    %p122 = scmp.lt.s32.totalorder %s8, 3
    %p123 = pnand %p121, %p122
    %p124 = pneg %p123
    // Predicated region
    $region25: #{stn_forward.10} parent=5 // pred_check
      _
    $region26: #{stn_forward.10} parent=5 // pred_check_branch
      %126 = sbr.rel (%p123) target = $region28
    $region27: #{stn_forward.10} parent=5 // pred_region
      %s127 = ssub.s32 %s8, 1
      %p128 = scmp.lt.s32.totalorder %s13, 1
      %s129 = scalar_select %p128, %s13, 1
      %s130 = smul.addr %s129, 7
      %s131 = smul.addr %s130, 2
      %s132 = scalar_lea.vmem %s0, %s131
      %p133 = pneg %p34
      %p134 = pneg %p31
      %p135 = scmp.lt.s32.totalorder %s13, 1
      %s136 = scalar_select %p135, %s13, 1
      %s137 = smul.addr %s136, 4
      %s138 = smul.addr %s137, 8
      %s139 = scalar_lea.vmem %s1, %s138
      %p140 = pneg %p60
      %p141 = pneg %p57
      %p142 = pneg %p86
      %p143 = pneg %p83
      %p144 = scmp.lt.s32.totalorder %s13, 1
      %s145 = scalar_select %p144, %s13, 1
      %s146 = smul.addr %s145, 7
      %s147 = scalar_lea.vmem %s2, %s146
      %p148 = scmp.lt.s32.totalorder %s13, 1
      %s149 = scalar_select %p148, %s13, 1
      %s150 = smul.addr %s149, 7
      %s151 = smul.addr %s150, 2
      %s152 = scalar_lea.vmem %s0, %s151
      %p153 = scmp.lt.s32.totalorder %s13, 1
      %s154 = scalar_select %p153, %s13, 1
      %s155 = smul.addr %s154, 4
      %s156 = smul.addr %s155, 8
      %s157 = scalar_lea.vmem %s1, %s156
      %p158 = scmp.lt.s32.totalorder %s13, 1
      %s159 = scalar_select %p158, %s13, 1
      %s160 = smul.addr %s159, 7
      %s161 = scalar_lea.vmem %s2, %s160
      %v162 = vld [vmem:[%s152] sm:$0xff]
      %v163 = vld [vmem:[%s152 + $0x8] sm:$0x3f]
      %v164 = vfloor.f32 %v162
      %v165 = vfloor.f32 %v163
      %v166 = vadd.f32 %v164, 1.0
      %v167 = vadd.f32 %v165, 1.0
      %v168 = vsub.f32 %v166, %v162
      %v169 = vsub.f32 %v167, %v163
      %v170 = vlaneseq
      %v171 = vshrl.u32 %v170, 7
      %v172 = vadd.s32 %v171, 8
      %v173 = vadd.s32 %v171, 16
      %v174 = vadd.s32 %v171, 24
      %vm175 = vcmp.ge.f32.partialorder %v164, 0.0
      %vm176 = vcmp.ge.f32.partialorder %v165, 0.0
      %vm177 = vcmp.le.f32.partialorder %v164, 27.0
      %vm178 = vcmp.le.f32.partialorder %v165, 27.0
      %vm179 = vmand %vm175, %vm177
      %vm180 = vmand %vm176, %vm178
      %v181 = vsel %vm179, %v168, 0.0
      %v182 = vsel %vm180, %v169, 0.0
      %v183 = vmax.f32 %v164, 0.0
      %v184 = vmax.f32 %v165, 0.0
      %v185 = vmin.f32 %v183, 27.0
      %v186 = vmin.f32 %v184, 27.0
      %v187 = vcvt.f32.s32.to.zero.pseudo %v185
      %v188 = vcvt.f32.s32.to.zero.pseudo %v186
      %v189 = vlaneseq
      %v190 = vshrl.u32 %v189, 7
      %v191 = vsub.s32 1, %v190
      %v192 = vrot.slane %v187, %v191
      %v193 = vlaneseq
      %v194 = vshrl.u32 %v193, 7
      %v195 = vsub.s32 3, %v194
      %v196 = vrot.slane %v187, %v195
      %v197 = vlaneseq
      %v198 = vshrl.u32 %v197, 7
      %v199 = vsub.s32 5, %v198
      %v200 = vrot.slane %v187, %v199
      %v201 = vlaneseq
      %v202 = vshrl.u32 %v201, 7
      %v203 = vsub.s32 7, %v202
      %v204 = vrot.slane %v187, %v203
      %v205 = vlaneseq
      %v206 = vshrl.u32 %v205, 7
      %v207 = vsub.s32 1, %v206
      %v208 = vrot.slane %v188, %v207
      %v209 = vlaneseq
      %v210 = vshrl.u32 %v209, 7
      %v211 = vsub.s32 3, %v210
      %v212 = vrot.slane %v188, %v211
      %v213 = vlaneseq
      %v214 = vshrl.u32 %v213, 7
      %v215 = vsub.s32 5, %v214
      %v216 = vrot.slane %v188, %v215
      %v217 = vlaneseq
      %v218 = vshrl.u32 %v217, 7
      %v219 = vsub.s32 1, %v218
      %v220 = vrot.slane %v192, %v219
      %v221 = vlaneseq
      %v222 = vshrl.u32 %v221, 7
      %v223 = vsub.s32 1, %v222
      %v224 = vrot.slane %v196, %v223
      %v225 = vlaneseq
      %v226 = vshrl.u32 %v225, 7
      %v227 = vsub.s32 1, %v226
      %v228 = vrot.slane %v200, %v227
      %v229 = vlaneseq
      %v230 = vshrl.u32 %v229, 7
      %v231 = vsub.s32 1, %v230
      %v232 = vrot.slane %v204, %v231
      %v233 = vlaneseq
      %v234 = vshrl.u32 %v233, 7
      %v235 = vsub.s32 1, %v234
      %v236 = vrot.slane %v208, %v235
      %v237 = vlaneseq
      %v238 = vshrl.u32 %v237, 7
      %v239 = vsub.s32 1, %v238
      %v240 = vrot.slane %v212, %v239
      %v241 = vlaneseq
      %v242 = vshrl.u32 %v241, 7
      %v243 = vsub.s32 1, %v242
      %v244 = vrot.slane %v216, %v243
      %vm245 = vcmp.eq.s32.totalorder %v171, %v220
      %vm246 = vcmp.eq.s32.totalorder %v171, %v224
      %vm247 = vcmp.eq.s32.totalorder %v171, %v228
      %vm248 = vcmp.eq.s32.totalorder %v171, %v232
      %vm249 = vcmp.eq.s32.totalorder %v171, %v236
      %vm250 = vcmp.eq.s32.totalorder %v171, %v240
      %vm251 = vcmp.eq.s32.totalorder %v171, %v244
      %vm252 = vcmp.eq.s32.totalorder %v172, %v220
      %vm253 = vcmp.eq.s32.totalorder %v172, %v224
      %vm254 = vcmp.eq.s32.totalorder %v172, %v228
      %vm255 = vcmp.eq.s32.totalorder %v172, %v232
      %vm256 = vcmp.eq.s32.totalorder %v172, %v236
      %vm257 = vcmp.eq.s32.totalorder %v172, %v240
      %vm258 = vcmp.eq.s32.totalorder %v172, %v244
      %vm259 = vcmp.eq.s32.totalorder %v173, %v220
      %vm260 = vcmp.eq.s32.totalorder %v173, %v224
      %vm261 = vcmp.eq.s32.totalorder %v173, %v228
      %vm262 = vcmp.eq.s32.totalorder %v173, %v232
      %vm263 = vcmp.eq.s32.totalorder %v173, %v236
      %vm264 = vcmp.eq.s32.totalorder %v173, %v240
      %vm265 = vcmp.eq.s32.totalorder %v173, %v244
      %vm266 = vcmp.eq.s32.totalorder %v174, %v220
      %vm267 = vcmp.eq.s32.totalorder %v174, %v224
      %vm268 = vcmp.eq.s32.totalorder %v174, %v228
      %vm269 = vcmp.eq.s32.totalorder %v174, %v232
      %vm270 = vcmp.eq.s32.totalorder %v174, %v236
      %vm271 = vcmp.eq.s32.totalorder %v174, %v240
      %vm272 = vcmp.eq.s32.totalorder %v174, %v244
      %v275 = vlaneseq
      %v276 = vshrl.u32 %v275, 7
      %v277 = vsub.s32 1, %v276
      %v278 = vrot.slane %v181, %v277
      %v279 = vlaneseq
      %v280 = vshrl.u32 %v279, 7
      %v281 = vsub.s32 3, %v280
      %v282 = vrot.slane %v181, %v281
      %v283 = vlaneseq
      %v284 = vshrl.u32 %v283, 7
      %v285 = vsub.s32 5, %v284
      %v286 = vrot.slane %v181, %v285
      %v287 = vlaneseq
      %v288 = vshrl.u32 %v287, 7
      %v289 = vsub.s32 7, %v288
      %v290 = vrot.slane %v181, %v289
      %v291 = vlaneseq
      %v292 = vshrl.u32 %v291, 7
      %v293 = vsub.s32 1, %v292
      %v294 = vrot.slane %v182, %v293
      %v295 = vlaneseq
      %v296 = vshrl.u32 %v295, 7
      %v297 = vsub.s32 3, %v296
      %v298 = vrot.slane %v182, %v297
      %v299 = vlaneseq
      %v300 = vshrl.u32 %v299, 7
      %v301 = vsub.s32 5, %v300
      %v302 = vrot.slane %v182, %v301
      %v310 = vlaneseq
      %v311 = vshrl.u32 %v310, 7
      %v312 = vsub.s32 1, %v311
      %v313 = vrot.slane %v278, %v312
      %v314 = vlaneseq
      %v315 = vshrl.u32 %v314, 7
      %v316 = vsub.s32 1, %v315
      %v317 = vrot.slane %v282, %v316
      %v318 = vlaneseq
      %v319 = vshrl.u32 %v318, 7
      %v320 = vsub.s32 1, %v319
      %v321 = vrot.slane %v286, %v320
      %v322 = vlaneseq
      %v323 = vshrl.u32 %v322, 7
      %v324 = vsub.s32 1, %v323
      %v325 = vrot.slane %v290, %v324
      %v326 = vlaneseq
      %v327 = vshrl.u32 %v326, 7
      %v328 = vsub.s32 1, %v327
      %v329 = vrot.slane %v294, %v328
      %v330 = vlaneseq
      %v331 = vshrl.u32 %v330, 7
      %v332 = vsub.s32 1, %v331
      %v333 = vrot.slane %v298, %v332
      %v334 = vlaneseq
      %v335 = vshrl.u32 %v334, 7
      %v336 = vsub.s32 1, %v335
      %v337 = vrot.slane %v302, %v336
      %v338 = vsel %vm245, %v313, 0.0
      %v339 = vsel %vm246, %v317, 0.0
      %v340 = vsel %vm247, %v321, 0.0
      %v341 = vsel %vm248, %v325, 0.0
      %v342 = vsel %vm249, %v329, 0.0
      %v343 = vsel %vm250, %v333, 0.0
      %v344 = vsel %vm251, %v337, 0.0
      %v345 = vsel %vm252, %v313, 0.0
      %v346 = vsel %vm253, %v317, 0.0
      %v347 = vsel %vm254, %v321, 0.0
      %v348 = vsel %vm255, %v325, 0.0
      %v349 = vsel %vm256, %v329, 0.0
      %v350 = vsel %vm257, %v333, 0.0
      %v351 = vsel %vm258, %v337, 0.0
      %v352 = vsel %vm259, %v313, 0.0
      %v353 = vsel %vm260, %v317, 0.0
      %v354 = vsel %vm261, %v321, 0.0
      %v355 = vsel %vm262, %v325, 0.0
      %v356 = vsel %vm263, %v329, 0.0
      %v357 = vsel %vm264, %v333, 0.0
      %v358 = vsel %vm265, %v337, 0.0
      %v359 = vsel %vm266, %v313, 0.0
      %v360 = vsel %vm267, %v317, 0.0
      %v361 = vsel %vm268, %v321, 0.0
      %v362 = vsel %vm269, %v325, 0.0
      %v363 = vsel %vm270, %v329, 0.0
      %v364 = vsel %vm271, %v333, 0.0
      %v365 = vsel %vm272, %v337, 0.0
      %v366 = vsub.f32 %v162, %v164
      %v367 = vsub.f32 %v163, %v165
      %vm368 = vcmp.ge.f32.partialorder %v166, 0.0
      %vm369 = vcmp.ge.f32.partialorder %v167, 0.0
      %vm370 = vcmp.le.f32.partialorder %v166, 27.0
      %vm371 = vcmp.le.f32.partialorder %v167, 27.0
      %vm372 = vmand %vm368, %vm370
      %vm373 = vmand %vm369, %vm371
      %v374 = vsel %vm372, %v366, 0.0
      %v375 = vsel %vm373, %v367, 0.0
      %v376 = vmax.f32 %v166, 0.0
      %v377 = vmax.f32 %v167, 0.0
      %v378 = vmin.f32 %v376, 27.0
      %v379 = vmin.f32 %v377, 27.0
      %v380 = vcvt.f32.s32.to.zero.pseudo %v378
      %v381 = vcvt.f32.s32.to.zero.pseudo %v379
      %v382 = vlaneseq
      %v383 = vshrl.u32 %v382, 7
      %v384 = vsub.s32 1, %v383
      %v385 = vrot.slane %v380, %v384
      %v386 = vlaneseq
      %v387 = vshrl.u32 %v386, 7
      %v388 = vsub.s32 3, %v387
      %v389 = vrot.slane %v380, %v388
      %v390 = vlaneseq
      %v391 = vshrl.u32 %v390, 7
      %v392 = vsub.s32 5, %v391
      %v393 = vrot.slane %v380, %v392
      %v394 = vlaneseq
      %v395 = vshrl.u32 %v394, 7
      %v396 = vsub.s32 7, %v395
      %v397 = vrot.slane %v380, %v396
      %v398 = vlaneseq
      %v399 = vshrl.u32 %v398, 7
      %v400 = vsub.s32 1, %v399
      %v401 = vrot.slane %v381, %v400
      %v402 = vlaneseq
      %v403 = vshrl.u32 %v402, 7
      %v404 = vsub.s32 3, %v403
      %v405 = vrot.slane %v381, %v404
      %v406 = vlaneseq
      %v407 = vshrl.u32 %v406, 7
      %v408 = vsub.s32 5, %v407
      %v409 = vrot.slane %v381, %v408
      %v410 = vlaneseq
      %v411 = vshrl.u32 %v410, 7
      %v412 = vsub.s32 1, %v411
      %v413 = vrot.slane %v385, %v412
      %v414 = vlaneseq
      %v415 = vshrl.u32 %v414, 7
      %v416 = vsub.s32 1, %v415
      %v417 = vrot.slane %v389, %v416
      %v418 = vlaneseq
      %v419 = vshrl.u32 %v418, 7
      %v420 = vsub.s32 1, %v419
      %v421 = vrot.slane %v393, %v420
      %v422 = vlaneseq
      %v423 = vshrl.u32 %v422, 7
      %v424 = vsub.s32 1, %v423
      %v425 = vrot.slane %v397, %v424
      %v426 = vlaneseq
      %v427 = vshrl.u32 %v426, 7
      %v428 = vsub.s32 1, %v427
      %v429 = vrot.slane %v401, %v428
      %v430 = vlaneseq
      %v431 = vshrl.u32 %v430, 7
      %v432 = vsub.s32 1, %v431
      %v433 = vrot.slane %v405, %v432
      %v434 = vlaneseq
      %v435 = vshrl.u32 %v434, 7
      %v436 = vsub.s32 1, %v435
      %v437 = vrot.slane %v409, %v436
      %vm438 = vcmp.eq.s32.totalorder %v171, %v413
      %vm439 = vcmp.eq.s32.totalorder %v171, %v417
      %vm440 = vcmp.eq.s32.totalorder %v171, %v421
      %vm441 = vcmp.eq.s32.totalorder %v171, %v425
      %vm442 = vcmp.eq.s32.totalorder %v171, %v429
      %vm443 = vcmp.eq.s32.totalorder %v171, %v433
      %vm444 = vcmp.eq.s32.totalorder %v171, %v437
      %vm445 = vcmp.eq.s32.totalorder %v172, %v413
      %vm446 = vcmp.eq.s32.totalorder %v172, %v417
      %vm447 = vcmp.eq.s32.totalorder %v172, %v421
      %vm448 = vcmp.eq.s32.totalorder %v172, %v425
      %vm449 = vcmp.eq.s32.totalorder %v172, %v429
      %vm450 = vcmp.eq.s32.totalorder %v172, %v433
      %vm451 = vcmp.eq.s32.totalorder %v172, %v437
      %vm452 = vcmp.eq.s32.totalorder %v173, %v413
      %vm453 = vcmp.eq.s32.totalorder %v173, %v417
      %vm454 = vcmp.eq.s32.totalorder %v173, %v421
      %vm455 = vcmp.eq.s32.totalorder %v173, %v425
      %vm456 = vcmp.eq.s32.totalorder %v173, %v429
      %vm457 = vcmp.eq.s32.totalorder %v173, %v433
      %vm458 = vcmp.eq.s32.totalorder %v173, %v437
      %vm459 = vcmp.eq.s32.totalorder %v174, %v413
      %vm460 = vcmp.eq.s32.totalorder %v174, %v417
      %vm461 = vcmp.eq.s32.totalorder %v174, %v421
      %vm462 = vcmp.eq.s32.totalorder %v174, %v425
      %vm463 = vcmp.eq.s32.totalorder %v174, %v429
      %vm464 = vcmp.eq.s32.totalorder %v174, %v433
      %vm465 = vcmp.eq.s32.totalorder %v174, %v437
      %v468 = vlaneseq
      %v469 = vshrl.u32 %v468, 7
      %v470 = vsub.s32 1, %v469
      %v471 = vrot.slane %v374, %v470
      %v472 = vlaneseq
      %v473 = vshrl.u32 %v472, 7
      %v474 = vsub.s32 3, %v473
      %v475 = vrot.slane %v374, %v474
      %v476 = vlaneseq
      %v477 = vshrl.u32 %v476, 7
      %v478 = vsub.s32 5, %v477
      %v479 = vrot.slane %v374, %v478
      %v480 = vlaneseq
      %v481 = vshrl.u32 %v480, 7
      %v482 = vsub.s32 7, %v481
      %v483 = vrot.slane %v374, %v482
      %v484 = vlaneseq
      %v485 = vshrl.u32 %v484, 7
      %v486 = vsub.s32 1, %v485
      %v487 = vrot.slane %v375, %v486
      %v488 = vlaneseq
      %v489 = vshrl.u32 %v488, 7
      %v490 = vsub.s32 3, %v489
      %v491 = vrot.slane %v375, %v490
      %v492 = vlaneseq
      %v493 = vshrl.u32 %v492, 7
      %v494 = vsub.s32 5, %v493
      %v495 = vrot.slane %v375, %v494
      %v503 = vlaneseq
      %v504 = vshrl.u32 %v503, 7
      %v505 = vsub.s32 1, %v504
      %v506 = vrot.slane %v471, %v505
      %v507 = vlaneseq
      %v508 = vshrl.u32 %v507, 7
      %v509 = vsub.s32 1, %v508
      %v510 = vrot.slane %v475, %v509
      %v511 = vlaneseq
      %v512 = vshrl.u32 %v511, 7
      %v513 = vsub.s32 1, %v512
      %v514 = vrot.slane %v479, %v513
      %v515 = vlaneseq
      %v516 = vshrl.u32 %v515, 7
      %v517 = vsub.s32 1, %v516
      %v518 = vrot.slane %v483, %v517
      %v519 = vlaneseq
      %v520 = vshrl.u32 %v519, 7
      %v521 = vsub.s32 1, %v520
      %v522 = vrot.slane %v487, %v521
      %v523 = vlaneseq
      %v524 = vshrl.u32 %v523, 7
      %v525 = vsub.s32 1, %v524
      %v526 = vrot.slane %v491, %v525
      %v527 = vlaneseq
      %v528 = vshrl.u32 %v527, 7
      %v529 = vsub.s32 1, %v528
      %v530 = vrot.slane %v495, %v529
      %v531 = vsel %vm438, %v506, 0.0
      %v532 = vsel %vm439, %v510, 0.0
      %v533 = vsel %vm440, %v514, 0.0
      %v534 = vsel %vm441, %v518, 0.0
      %v535 = vsel %vm442, %v522, 0.0
      %v536 = vsel %vm443, %v526, 0.0
      %v537 = vsel %vm444, %v530, 0.0
      %v538 = vsel %vm445, %v506, 0.0
      %v539 = vsel %vm446, %v510, 0.0
      %v540 = vsel %vm447, %v514, 0.0
      %v541 = vsel %vm448, %v518, 0.0
      %v542 = vsel %vm449, %v522, 0.0
      %v543 = vsel %vm450, %v526, 0.0
      %v544 = vsel %vm451, %v530, 0.0
      %v545 = vsel %vm452, %v506, 0.0
      %v546 = vsel %vm453, %v510, 0.0
      %v547 = vsel %vm454, %v514, 0.0
      %v548 = vsel %vm455, %v518, 0.0
      %v549 = vsel %vm456, %v522, 0.0
      %v550 = vsel %vm457, %v526, 0.0
      %v551 = vsel %vm458, %v530, 0.0
      %v552 = vsel %vm459, %v506, 0.0
      %v553 = vsel %vm460, %v510, 0.0
      %v554 = vsel %vm461, %v514, 0.0
      %v555 = vsel %vm462, %v518, 0.0
      %v556 = vsel %vm463, %v522, 0.0
      %v557 = vsel %vm464, %v526, 0.0
      %v558 = vsel %vm465, %v530, 0.0
      %v559 = vadd.f32 %v338, %v531
      %v560 = vadd.f32 %v339, %v532
      %v561 = vadd.f32 %v340, %v533
      %v562 = vadd.f32 %v341, %v534
      %v563 = vadd.f32 %v342, %v535
      %v564 = vadd.f32 %v343, %v536
      %v565 = vadd.f32 %v344, %v537
      %v566 = vadd.f32 %v345, %v538
      %v567 = vadd.f32 %v346, %v539
      %v568 = vadd.f32 %v347, %v540
      %v569 = vadd.f32 %v348, %v541
      %v570 = vadd.f32 %v349, %v542
      %v571 = vadd.f32 %v350, %v543
      %v572 = vadd.f32 %v351, %v544
      %v573 = vadd.f32 %v352, %v545
      %v574 = vadd.f32 %v353, %v546
      %v575 = vadd.f32 %v354, %v547
      %v576 = vadd.f32 %v355, %v548
      %v577 = vadd.f32 %v356, %v549
      %v578 = vadd.f32 %v357, %v550
      %v579 = vadd.f32 %v358, %v551
      %v580 = vadd.f32 %v359, %v552
      %v581 = vadd.f32 %v360, %v553
      %v582 = vadd.f32 %v361, %v554
      %v583 = vadd.f32 %v362, %v555
      %v584 = vadd.f32 %v363, %v556
      %v585 = vadd.f32 %v364, %v557
      %v586 = vadd.f32 %v365, %v558
      %v587 = vlaneseq
      %v588 = vshrl.u32 %v587, 7
      %v589 = vsub.s32 0, %v588
      %v590 = vrot.slane %v187, %v589
      %v591 = vlaneseq
      %v592 = vshrl.u32 %v591, 7
      %v593 = vsub.s32 2, %v592
      %v594 = vrot.slane %v187, %v593
      %v595 = vlaneseq
      %v596 = vshrl.u32 %v595, 7
      %v597 = vsub.s32 4, %v596
      %v598 = vrot.slane %v187, %v597
      %v599 = vlaneseq
      %v600 = vshrl.u32 %v599, 7
      %v601 = vsub.s32 6, %v600
      %v602 = vrot.slane %v187, %v601
      %v603 = vlaneseq
      %v604 = vshrl.u32 %v603, 7
      %v605 = vsub.s32 0, %v604
      %v606 = vrot.slane %v188, %v605
      %v607 = vlaneseq
      %v608 = vshrl.u32 %v607, 7
      %v609 = vsub.s32 2, %v608
      %v610 = vrot.slane %v188, %v609
      %v611 = vlaneseq
      %v612 = vshrl.u32 %v611, 7
      %v613 = vsub.s32 4, %v612
      %v614 = vrot.slane %v188, %v613
      %v615 = vlaneseq
      %v616 = vshrl.u32 %v615, 7
      %v617 = vsub.s32 0, %v616
      %v618 = vrot.slane %v590, %v617
      %v619 = vlaneseq
      %v620 = vshrl.u32 %v619, 7
      %v621 = vsub.s32 0, %v620
      %v622 = vrot.slane %v594, %v621
      %v623 = vlaneseq
      %v624 = vshrl.u32 %v623, 7
      %v625 = vsub.s32 0, %v624
      %v626 = vrot.slane %v598, %v625
      %v627 = vlaneseq
      %v628 = vshrl.u32 %v627, 7
      %v629 = vsub.s32 0, %v628
      %v630 = vrot.slane %v602, %v629
      %v631 = vlaneseq
      %v632 = vshrl.u32 %v631, 7
      %v633 = vsub.s32 0, %v632
      %v634 = vrot.slane %v606, %v633
      %v635 = vlaneseq
      %v636 = vshrl.u32 %v635, 7
      %v637 = vsub.s32 0, %v636
      %v638 = vrot.slane %v610, %v637
      %v639 = vlaneseq
      %v640 = vshrl.u32 %v639, 7
      %v641 = vsub.s32 0, %v640
      %v642 = vrot.slane %v614, %v641
      %vm643 = vcmp.eq.s32.totalorder %v171, %v618
      %vm644 = vcmp.eq.s32.totalorder %v171, %v622
      %vm645 = vcmp.eq.s32.totalorder %v171, %v626
      %vm646 = vcmp.eq.s32.totalorder %v171, %v630
      %vm647 = vcmp.eq.s32.totalorder %v171, %v634
      %vm648 = vcmp.eq.s32.totalorder %v171, %v638
      %vm649 = vcmp.eq.s32.totalorder %v171, %v642
      %vm650 = vcmp.eq.s32.totalorder %v172, %v618
      %vm651 = vcmp.eq.s32.totalorder %v172, %v622
      %vm652 = vcmp.eq.s32.totalorder %v172, %v626
      %vm653 = vcmp.eq.s32.totalorder %v172, %v630
      %vm654 = vcmp.eq.s32.totalorder %v172, %v634
      %vm655 = vcmp.eq.s32.totalorder %v172, %v638
      %vm656 = vcmp.eq.s32.totalorder %v172, %v642
      %vm657 = vcmp.eq.s32.totalorder %v173, %v618
      %vm658 = vcmp.eq.s32.totalorder %v173, %v622
      %vm659 = vcmp.eq.s32.totalorder %v173, %v626
      %vm660 = vcmp.eq.s32.totalorder %v173, %v630
      %vm661 = vcmp.eq.s32.totalorder %v173, %v634
      %vm662 = vcmp.eq.s32.totalorder %v173, %v638
      %vm663 = vcmp.eq.s32.totalorder %v173, %v642
      %vm664 = vcmp.eq.s32.totalorder %v174, %v618
      %vm665 = vcmp.eq.s32.totalorder %v174, %v622
      %vm666 = vcmp.eq.s32.totalorder %v174, %v626
      %vm667 = vcmp.eq.s32.totalorder %v174, %v630
      %vm668 = vcmp.eq.s32.totalorder %v174, %v634
      %vm669 = vcmp.eq.s32.totalorder %v174, %v638
      %vm670 = vcmp.eq.s32.totalorder %v174, %v642
      %v671 = vlaneseq
      %v672 = vshrl.u32 %v671, 7
      %v673 = vsub.s32 0, %v672
      %v674 = vrot.slane %v181, %v673
      %v675 = vlaneseq
      %v676 = vshrl.u32 %v675, 7
      %v677 = vsub.s32 2, %v676
      %v678 = vrot.slane %v181, %v677
      %v679 = vlaneseq
      %v680 = vshrl.u32 %v679, 7
      %v681 = vsub.s32 4, %v680
      %v682 = vrot.slane %v181, %v681
      %v683 = vlaneseq
      %v684 = vshrl.u32 %v683, 7
      %v685 = vsub.s32 6, %v684
      %v686 = vrot.slane %v181, %v685
      %v687 = vlaneseq
      %v688 = vshrl.u32 %v687, 7
      %v689 = vsub.s32 0, %v688
      %v690 = vrot.slane %v182, %v689
      %v691 = vlaneseq
      %v692 = vshrl.u32 %v691, 7
      %v693 = vsub.s32 2, %v692
      %v694 = vrot.slane %v182, %v693
      %v695 = vlaneseq
      %v696 = vshrl.u32 %v695, 7
      %v697 = vsub.s32 4, %v696
      %v698 = vrot.slane %v182, %v697
      %v706 = vlaneseq
      %v707 = vshrl.u32 %v706, 7
      %v708 = vsub.s32 0, %v707
      %v709 = vrot.slane %v674, %v708
      %v710 = vlaneseq
      %v711 = vshrl.u32 %v710, 7
      %v712 = vsub.s32 0, %v711
      %v713 = vrot.slane %v678, %v712
      %v714 = vlaneseq
      %v715 = vshrl.u32 %v714, 7
      %v716 = vsub.s32 0, %v715
      %v717 = vrot.slane %v682, %v716
      %v718 = vlaneseq
      %v719 = vshrl.u32 %v718, 7
      %v720 = vsub.s32 0, %v719
      %v721 = vrot.slane %v686, %v720
      %v722 = vlaneseq
      %v723 = vshrl.u32 %v722, 7
      %v724 = vsub.s32 0, %v723
      %v725 = vrot.slane %v690, %v724
      %v726 = vlaneseq
      %v727 = vshrl.u32 %v726, 7
      %v728 = vsub.s32 0, %v727
      %v729 = vrot.slane %v694, %v728
      %v730 = vlaneseq
      %v731 = vshrl.u32 %v730, 7
      %v732 = vsub.s32 0, %v731
      %v733 = vrot.slane %v698, %v732
      %v734 = vsel %vm643, %v709, 0.0
      %v735 = vsel %vm644, %v713, 0.0
      %v736 = vsel %vm645, %v717, 0.0
      %v737 = vsel %vm646, %v721, 0.0
      %v738 = vsel %vm647, %v725, 0.0
      %v739 = vsel %vm648, %v729, 0.0
      %v740 = vsel %vm649, %v733, 0.0
      %v741 = vsel %vm650, %v709, 0.0
      %v742 = vsel %vm651, %v713, 0.0
      %v743 = vsel %vm652, %v717, 0.0
      %v744 = vsel %vm653, %v721, 0.0
      %v745 = vsel %vm654, %v725, 0.0
      %v746 = vsel %vm655, %v729, 0.0
      %v747 = vsel %vm656, %v733, 0.0
      %v748 = vsel %vm657, %v709, 0.0
      %v749 = vsel %vm658, %v713, 0.0
      %v750 = vsel %vm659, %v717, 0.0
      %v751 = vsel %vm660, %v721, 0.0
      %v752 = vsel %vm661, %v725, 0.0
      %v753 = vsel %vm662, %v729, 0.0
      %v754 = vsel %vm663, %v733, 0.0
      %v755 = vsel %vm664, %v709, 0.0
      %v756 = vsel %vm665, %v713, 0.0
      %v757 = vsel %vm666, %v717, 0.0
      %v758 = vsel %vm667, %v721, 0.0
      %v759 = vsel %vm668, %v725, 0.0
      %v760 = vsel %vm669, %v729, 0.0
      %v761 = vsel %vm670, %v733, 0.0
      %v762 = vlaneseq
      %v763 = vshrl.u32 %v762, 7
      %v764 = vsub.s32 0, %v763
      %v765 = vrot.slane %v380, %v764
      %v766 = vlaneseq
      %v767 = vshrl.u32 %v766, 7
      %v768 = vsub.s32 2, %v767
      %v769 = vrot.slane %v380, %v768
      %v770 = vlaneseq
      %v771 = vshrl.u32 %v770, 7
      %v772 = vsub.s32 4, %v771
      %v773 = vrot.slane %v380, %v772
      %v774 = vlaneseq
      %v775 = vshrl.u32 %v774, 7
      %v776 = vsub.s32 6, %v775
      %v777 = vrot.slane %v380, %v776
      %v778 = vlaneseq
      %v779 = vshrl.u32 %v778, 7
      %v780 = vsub.s32 0, %v779
      %v781 = vrot.slane %v381, %v780
      %v782 = vlaneseq
      %v783 = vshrl.u32 %v782, 7
      %v784 = vsub.s32 2, %v783
      %v785 = vrot.slane %v381, %v784
      %v786 = vlaneseq
      %v787 = vshrl.u32 %v786, 7
      %v788 = vsub.s32 4, %v787
      %v789 = vrot.slane %v381, %v788
      %v790 = vlaneseq
      %v791 = vshrl.u32 %v790, 7
      %v792 = vsub.s32 0, %v791
      %v793 = vrot.slane %v765, %v792
      %v794 = vlaneseq
      %v795 = vshrl.u32 %v794, 7
      %v796 = vsub.s32 0, %v795
      %v797 = vrot.slane %v769, %v796
      %v798 = vlaneseq
      %v799 = vshrl.u32 %v798, 7
      %v800 = vsub.s32 0, %v799
      %v801 = vrot.slane %v773, %v800
      %v802 = vlaneseq
      %v803 = vshrl.u32 %v802, 7
      %v804 = vsub.s32 0, %v803
      %v805 = vrot.slane %v777, %v804
      %v806 = vlaneseq
      %v807 = vshrl.u32 %v806, 7
      %v808 = vsub.s32 0, %v807
      %v809 = vrot.slane %v781, %v808
      %v810 = vlaneseq
      %v811 = vshrl.u32 %v810, 7
      %v812 = vsub.s32 0, %v811
      %v813 = vrot.slane %v785, %v812
      %v814 = vlaneseq
      %v815 = vshrl.u32 %v814, 7
      %v816 = vsub.s32 0, %v815
      %v817 = vrot.slane %v789, %v816
      %vm818 = vcmp.eq.s32.totalorder %v171, %v793
      %vm819 = vcmp.eq.s32.totalorder %v171, %v797
      %vm820 = vcmp.eq.s32.totalorder %v171, %v801
      %vm821 = vcmp.eq.s32.totalorder %v171, %v805
      %vm822 = vcmp.eq.s32.totalorder %v171, %v809
      %vm823 = vcmp.eq.s32.totalorder %v171, %v813
      %vm824 = vcmp.eq.s32.totalorder %v171, %v817
      %vm825 = vcmp.eq.s32.totalorder %v172, %v793
      %vm826 = vcmp.eq.s32.totalorder %v172, %v797
      %vm827 = vcmp.eq.s32.totalorder %v172, %v801
      %vm828 = vcmp.eq.s32.totalorder %v172, %v805
      %vm829 = vcmp.eq.s32.totalorder %v172, %v809
      %vm830 = vcmp.eq.s32.totalorder %v172, %v813
      %vm831 = vcmp.eq.s32.totalorder %v172, %v817
      %vm832 = vcmp.eq.s32.totalorder %v173, %v793
      %vm833 = vcmp.eq.s32.totalorder %v173, %v797
      %vm834 = vcmp.eq.s32.totalorder %v173, %v801
      %vm835 = vcmp.eq.s32.totalorder %v173, %v805
      %vm836 = vcmp.eq.s32.totalorder %v173, %v809
      %vm837 = vcmp.eq.s32.totalorder %v173, %v813
      %vm838 = vcmp.eq.s32.totalorder %v173, %v817
      %vm839 = vcmp.eq.s32.totalorder %v174, %v793
      %vm840 = vcmp.eq.s32.totalorder %v174, %v797
      %vm841 = vcmp.eq.s32.totalorder %v174, %v801
      %vm842 = vcmp.eq.s32.totalorder %v174, %v805
      %vm843 = vcmp.eq.s32.totalorder %v174, %v809
      %vm844 = vcmp.eq.s32.totalorder %v174, %v813
      %vm845 = vcmp.eq.s32.totalorder %v174, %v817
      %v846 = vlaneseq
      %v847 = vshrl.u32 %v846, 7
      %v848 = vsub.s32 0, %v847
      %v849 = vrot.slane %v374, %v848
      %v850 = vlaneseq
      %v851 = vshrl.u32 %v850, 7
      %v852 = vsub.s32 2, %v851
      %v853 = vrot.slane %v374, %v852
      %v854 = vlaneseq
      %v855 = vshrl.u32 %v854, 7
      %v856 = vsub.s32 4, %v855
      %v857 = vrot.slane %v374, %v856
      %v858 = vlaneseq
      %v859 = vshrl.u32 %v858, 7
      %v860 = vsub.s32 6, %v859
      %v861 = vrot.slane %v374, %v860
      %v862 = vlaneseq
      %v863 = vshrl.u32 %v862, 7
      %v864 = vsub.s32 0, %v863
      %v865 = vrot.slane %v375, %v864
      %v866 = vlaneseq
      %v867 = vshrl.u32 %v866, 7
      %v868 = vsub.s32 2, %v867
      %v869 = vrot.slane %v375, %v868
      %v870 = vlaneseq
      %v871 = vshrl.u32 %v870, 7
      %v872 = vsub.s32 4, %v871
      %v873 = vrot.slane %v375, %v872
      %v881 = vlaneseq
      %v882 = vshrl.u32 %v881, 7
      %v883 = vsub.s32 0, %v882
      %v884 = vrot.slane %v849, %v883
      %v885 = vlaneseq
      %v886 = vshrl.u32 %v885, 7
      %v887 = vsub.s32 0, %v886
      %v888 = vrot.slane %v853, %v887
      %v889 = vlaneseq
      %v890 = vshrl.u32 %v889, 7
      %v891 = vsub.s32 0, %v890
      %v892 = vrot.slane %v857, %v891
      %v893 = vlaneseq
      %v894 = vshrl.u32 %v893, 7
      %v895 = vsub.s32 0, %v894
      %v896 = vrot.slane %v861, %v895
      %v897 = vlaneseq
      %v898 = vshrl.u32 %v897, 7
      %v899 = vsub.s32 0, %v898
      %v900 = vrot.slane %v865, %v899
      %v901 = vlaneseq
      %v902 = vshrl.u32 %v901, 7
      %v903 = vsub.s32 0, %v902
      %v904 = vrot.slane %v869, %v903
      %v905 = vlaneseq
      %v906 = vshrl.u32 %v905, 7
      %v907 = vsub.s32 0, %v906
      %v908 = vrot.slane %v873, %v907
      %v909 = vsel %vm818, %v884, 0.0
      %v910 = vsel %vm819, %v888, 0.0
      %v911 = vsel %vm820, %v892, 0.0
      %v912 = vsel %vm821, %v896, 0.0
      %v913 = vsel %vm822, %v900, 0.0
      %v914 = vsel %vm823, %v904, 0.0
      %v915 = vsel %vm824, %v908, 0.0
      %v916 = vsel %vm825, %v884, 0.0
      %v917 = vsel %vm826, %v888, 0.0
      %v918 = vsel %vm827, %v892, 0.0
      %v919 = vsel %vm828, %v896, 0.0
      %v920 = vsel %vm829, %v900, 0.0
      %v921 = vsel %vm830, %v904, 0.0
      %v922 = vsel %vm831, %v908, 0.0
      %v923 = vsel %vm832, %v884, 0.0
      %v924 = vsel %vm833, %v888, 0.0
      %v925 = vsel %vm834, %v892, 0.0
      %v926 = vsel %vm835, %v896, 0.0
      %v927 = vsel %vm836, %v900, 0.0
      %v928 = vsel %vm837, %v904, 0.0
      %v929 = vsel %vm838, %v908, 0.0
      %v930 = vsel %vm839, %v884, 0.0
      %v931 = vsel %vm840, %v888, 0.0
      %v932 = vsel %vm841, %v892, 0.0
      %v933 = vsel %vm842, %v896, 0.0
      %v934 = vsel %vm843, %v900, 0.0
      %v935 = vsel %vm844, %v904, 0.0
      %v936 = vsel %vm845, %v908, 0.0
      %v937 = vadd.f32 %v734, %v909
      %v938 = vadd.f32 %v735, %v910
      %v939 = vadd.f32 %v736, %v911
      %v940 = vadd.f32 %v737, %v912
      %v941 = vadd.f32 %v738, %v913
      %v942 = vadd.f32 %v739, %v914
      %v943 = vadd.f32 %v740, %v915
      %v944 = vadd.f32 %v741, %v916
      %v945 = vadd.f32 %v742, %v917
      %v946 = vadd.f32 %v743, %v918
      %v947 = vadd.f32 %v744, %v919
      %v948 = vadd.f32 %v745, %v920
      %v949 = vadd.f32 %v746, %v921
      %v950 = vadd.f32 %v747, %v922
      %v951 = vadd.f32 %v748, %v923
      %v952 = vadd.f32 %v749, %v924
      %v953 = vadd.f32 %v750, %v925
      %v954 = vadd.f32 %v751, %v926
      %v955 = vadd.f32 %v752, %v927
      %v956 = vadd.f32 %v753, %v928
      %v957 = vadd.f32 %v754, %v929
      %v958 = vadd.f32 %v755, %v930
      %v959 = vadd.f32 %v756, %v931
      %v960 = vadd.f32 %v757, %v932
      %v961 = vadd.f32 %v758, %v933
      %v962 = vadd.f32 %v759, %v934
      %v963 = vadd.f32 %v760, %v935
      %v964 = vadd.f32 %v761, %v936
      %v965 = vld [vmem:[%s157] sm:$0xff]
      %v966 = vld [vmem:[%s157 + $0x8] sm:$0xff]
      %v967 = vld [vmem:[%s157 + $0x10] sm:$0xff]
      %v968 = vld [vmem:[%s157 + $0x18] sm:$0xf]
      %vm969 = vcmask 228352
      %v971 = vsel %vm969, %v965, 0
      %v974 = vsel %vm969, %v966, 0
      %v977 = vsel %vm969, %v967, 0
      %v980 = vsel %vm969, %v968, 0
      %vm982 = vcmask 1043456
      %v984 = vsel %vm982, %v580, 0
      %v987 = vsel %vm982, %v581, 0
      %v990 = vsel %vm982, %v582, 0
      %v993 = vsel %vm982, %v583, 0
      %v996 = vsel %vm982, %v584, 0
      %v999 = vsel %vm982, %v585, 0
      %v1002 = vsel %vm982, %v586, 0
      %1004 = vmatprep.subr.mxu0 %v560
      %1005 = vmatpush1.msra.mxu0 %v559
      %1006 = vmatprep.subr.mxu0 %v567
      %1007 = vmatpush1.msra.mxu0 %v566
      %1008 = vmatprep.subr.mxu0 %v574
      %1009 = vmatpush1.msra.mxu0 %v573
      %1010 = vmatprep.subr.mxu0 %v987
      %1011 = vmatpush1.msra.mxu0 %v984
      %1012 = vmatprep.subr.mxu0 0.0
      %1013 = vmatpush1.msra.mxu0 0.0
      %1014 = vmatprep.subr.mxu0 0.0
      %1015 = vmatpush1.msra.mxu0 0.0
      %1016 = vmatprep.subr.mxu0 0.0
      %1017 = vmatpush1.msra.mxu0 0.0
      %1018 = vmatprep.subr.mxu0 0.0
      %1019 = vmatpush1.msra.mxu0 0.0
      %1020 = vmatprep.subr.mxu0 0.0
      %1021 = vmatpush1.msra.mxu0 0.0
      %1022 = vmatprep.subr.mxu0 0.0
      %1023 = vmatpush1.msra.mxu0 0.0
      %1024 = vmatprep.subr.mxu0 0.0
      %1025 = vmatpush1.msra.mxu0 0.0
      %1026 = vmatprep.subr.mxu0 0.0
      %1027 = vmatpush1.msra.mxu0 0.0
      %1028 = vmatprep.subr.mxu0 0.0
      %1029 = vmatpush1.msra.mxu0 0.0
      %1030 = vmatprep.subr.mxu0 0.0
      %1031 = vmatpush1.msra.mxu0 0.0
      %1032 = vmatprep.subr.mxu0 0.0
      %1033 = vmatpush1.msra.mxu0 0.0
      %1034 = vmatprep.subr.mxu0 0.0
      %1035 = vmatpush1.msra.mxu0 0.0
      %1036 = vmatprep.subr.mxu0 0.0
      %1037 = vmatpush1.msra.mxu0 0.0
      %1038 = vmatprep.subr.mxu0 0.0
      %1039 = vmatpush1.msra.mxu0 0.0
      %1040 = vmatprep.subr.mxu0 0.0
      %1041 = vmatpush1.msra.mxu0 0.0
      %1042 = vmatprep.subr.mxu0 0.0
      %1043 = vmatpush1.msra.mxu0 0.0
      %1044 = vmatprep.subr.mxu0 0.0
      %1045 = vmatpush1.msra.mxu0 0.0
      %1046 = vmatprep.subr.mxu0 0.0
      %1047 = vmatpush1.msra.mxu0 0.0
      %1048 = vmatprep.subr.mxu0 0.0
      %1049 = vmatpush1.msra.mxu0 0.0
      %1050 = vmatprep.subr.mxu0 0.0
      %1051 = vmatpush1.msra.mxu0 0.0
      %1052 = vmatprep.subr.mxu0 0.0
      %1053 = vmatpush1.msra.mxu0 0.0
      %1054 = vmatprep.subr.mxu0 0.0
      %1055 = vmatpush1.msra.mxu0 0.0
      %1056 = vmatprep.subr.mxu0 0.0
      %1057 = vmatpush1.msra.mxu0 0.0
      %1058 = vmatprep.subr.mxu0 0.0
      %1059 = vmatpush1.msra.mxu0 0.0
      %1060 = vmatprep.subr.mxu0 0.0
      %1061 = vmatpush1.msra.mxu0 0.0
      %1062 = vmatprep.subr.mxu0 0.0
      %1063 = vmatpush1.msra.mxu0 0.0
      %1064 = vmatprep.subr.mxu0 0.0
      %1065 = vmatpush1.msra.mxu0 0.0
      %1066 = vmatprep.subr.mxu0 0.0
      %1067 = vmatpush1.msra.mxu0 0.0
      %1068 = vmatprep.mubr.f32.mxu0 0.0
      %1069 = vmatmul.mubr.f32.gmra.mrb[0].mxu0 %v971
      %v1070 = vpop.f32.mrb[0].mxu0
      %v1071 = vadd.f32 0.0, %v1070
      %v1072 = vpop.f32.mrb[0].mxu0
      %v1073 = vadd.f32 0.0, %v1072
      %1074 = vmatprep.mubr.f32.mxu0 0.0
      %1075 = vmatmul.mubr.f32.gmra.mrb[0].mxu0 %v974
      %v1076 = vpop.f32.mrb[0].mxu0
      %v1077 = vadd.f32 0.0, %v1076
      %v1078 = vpop.f32.mrb[0].mxu0
      %v1079 = vadd.f32 0.0, %v1078
      %1080 = vmatprep.mubr.f32.mxu0 0.0
      %1081 = vmatmul.mubr.f32.gmra.mrb[0].mxu0 %v977
      %v1082 = vpop.f32.mrb[0].mxu0
      %v1083 = vadd.f32 0.0, %v1082
      %v1084 = vpop.f32.mrb[0].mxu0
      %v1085 = vadd.f32 0.0, %v1084
      %1086 = vmatprep.mubr.f32.mxu0 0.0
      %1087 = vmatmul.mubr.f32.gmra.mrb[0].mxu0 %v980
      %v1088 = vpop.f32.mrb[0].mxu0
      %v1089 = vadd.f32 0.0, %v1088
      %v1090 = vpop.f32.mrb[0].mxu0
      %v1091 = vadd.f32 0.0, %v1090
      %1092 = vdwg.mxu0
      %1093 = vmatprep.subr.mxu0 %v562
      %1094 = vmatpush1.msra.mxu0 %v561
      %1095 = vmatprep.subr.mxu0 %v569
      %1096 = vmatpush1.msra.mxu0 %v568
      %1097 = vmatprep.subr.mxu0 %v576
      %1098 = vmatpush1.msra.mxu0 %v575
      %1099 = vmatprep.subr.mxu0 %v993
      %1100 = vmatpush1.msra.mxu0 %v990
      %1101 = vmatprep.subr.mxu0 0.0
      %1102 = vmatpush1.msra.mxu0 0.0
      %1103 = vmatprep.subr.mxu0 0.0
      %1104 = vmatpush1.msra.mxu0 0.0
      %1105 = vmatprep.subr.mxu0 0.0
      %1106 = vmatpush1.msra.mxu0 0.0
      %1107 = vmatprep.subr.mxu0 0.0
      %1108 = vmatpush1.msra.mxu0 0.0
      %1109 = vmatprep.subr.mxu0 0.0
      %1110 = vmatpush1.msra.mxu0 0.0
      %1111 = vmatprep.subr.mxu0 0.0
      %1112 = vmatpush1.msra.mxu0 0.0
      %1113 = vmatprep.subr.mxu0 0.0
      %1114 = vmatpush1.msra.mxu0 0.0
      %1115 = vmatprep.subr.mxu0 0.0
      %1116 = vmatpush1.msra.mxu0 0.0
      %1117 = vmatprep.subr.mxu0 0.0
      %1118 = vmatpush1.msra.mxu0 0.0
      %1119 = vmatprep.subr.mxu0 0.0
      %1120 = vmatpush1.msra.mxu0 0.0
      %1121 = vmatprep.subr.mxu0 0.0
      %1122 = vmatpush1.msra.mxu0 0.0
      %1123 = vmatprep.subr.mxu0 0.0
      %1124 = vmatpush1.msra.mxu0 0.0
      %1125 = vmatprep.subr.mxu0 0.0
      %1126 = vmatpush1.msra.mxu0 0.0
      %1127 = vmatprep.subr.mxu0 0.0
      %1128 = vmatpush1.msra.mxu0 0.0
      %1129 = vmatprep.subr.mxu0 0.0
      %1130 = vmatpush1.msra.mxu0 0.0
      %1131 = vmatprep.subr.mxu0 0.0
      %1132 = vmatpush1.msra.mxu0 0.0
      %1133 = vmatprep.subr.mxu0 0.0
      %1134 = vmatpush1.msra.mxu0 0.0
      %1135 = vmatprep.subr.mxu0 0.0
      %1136 = vmatpush1.msra.mxu0 0.0
      %1137 = vmatprep.subr.mxu0 0.0
      %1138 = vmatpush1.msra.mxu0 0.0
      %1139 = vmatprep.subr.mxu0 0.0
      %1140 = vmatpush1.msra.mxu0 0.0
      %1141 = vmatprep.subr.mxu0 0.0
      %1142 = vmatpush1.msra.mxu0 0.0
      %1143 = vmatprep.subr.mxu0 0.0
      %1144 = vmatpush1.msra.mxu0 0.0
      %1145 = vmatprep.subr.mxu0 0.0
      %1146 = vmatpush1.msra.mxu0 0.0
      %1147 = vmatprep.subr.mxu0 0.0
      %1148 = vmatpush1.msra.mxu0 0.0
      %1149 = vmatprep.subr.mxu0 0.0
      %1150 = vmatpush1.msra.mxu0 0.0
      %1151 = vmatprep.subr.mxu0 0.0
      %1152 = vmatpush1.msra.mxu0 0.0
      %1153 = vmatprep.subr.mxu0 0.0
      %1154 = vmatpush1.msra.mxu0 0.0
      %1155 = vmatprep.subr.mxu0 0.0
      %1156 = vmatpush1.msra.mxu0 0.0
      %1157 = vmatprep.mubr.f32.mxu0 0.0
      %1158 = vmatmul.mubr.f32.gmra.mrb[0].mxu0 %v971
      %v1159 = vpop.f32.mrb[0].mxu0
      %v1160 = vadd.f32 0.0, %v1159
      %v1161 = vpop.f32.mrb[0].mxu0
      %v1162 = vadd.f32 0.0, %v1161
      %1163 = vmatprep.mubr.f32.mxu0 0.0
      %1164 = vmatmul.mubr.f32.gmra.mrb[0].mxu0 %v974
      %v1165 = vpop.f32.mrb[0].mxu0
      %v1166 = vadd.f32 0.0, %v1165
      %v1167 = vpop.f32.mrb[0].mxu0
      %v1168 = vadd.f32 0.0, %v1167
      %1169 = vmatprep.mubr.f32.mxu0 0.0
      %1170 = vmatmul.mubr.f32.gmra.mrb[0].mxu0 %v977
      %v1171 = vpop.f32.mrb[0].mxu0
      %v1172 = vadd.f32 0.0, %v1171
      %v1173 = vpop.f32.mrb[0].mxu0
      %v1174 = vadd.f32 0.0, %v1173
      %1175 = vmatprep.mubr.f32.mxu0 0.0
      %1176 = vmatmul.mubr.f32.gmra.mrb[0].mxu0 %v980
      %v1177 = vpop.f32.mrb[0].mxu0
      %v1178 = vadd.f32 0.0, %v1177
      %v1179 = vpop.f32.mrb[0].mxu0
      %v1180 = vadd.f32 0.0, %v1179
      %1181 = vdwg.mxu0
      %1182 = vmatprep.subr.mxu0 %v564
      %1183 = vmatpush1.msra.mxu0 %v563
      %1184 = vmatprep.subr.mxu0 %v571
      %1185 = vmatpush1.msra.mxu0 %v570
      %1186 = vmatprep.subr.mxu0 %v578
      %1187 = vmatpush1.msra.mxu0 %v577
      %1188 = vmatprep.subr.mxu0 %v999
      %1189 = vmatpush1.msra.mxu0 %v996
      %1190 = vmatprep.subr.mxu0 0.0
      %1191 = vmatpush1.msra.mxu0 0.0
      %1192 = vmatprep.subr.mxu0 0.0
      %1193 = vmatpush1.msra.mxu0 0.0
      %1194 = vmatprep.subr.mxu0 0.0
      %1195 = vmatpush1.msra.mxu0 0.0
      %1196 = vmatprep.subr.mxu0 0.0
      %1197 = vmatpush1.msra.mxu0 0.0
      %1198 = vmatprep.subr.mxu0 0.0
      %1199 = vmatpush1.msra.mxu0 0.0
      %1200 = vmatprep.subr.mxu0 0.0
      %1201 = vmatpush1.msra.mxu0 0.0
      %1202 = vmatprep.subr.mxu0 0.0
      %1203 = vmatpush1.msra.mxu0 0.0
      %1204 = vmatprep.subr.mxu0 0.0
      %1205 = vmatpush1.msra.mxu0 0.0
      %1206 = vmatprep.subr.mxu0 0.0
      %1207 = vmatpush1.msra.mxu0 0.0
      %1208 = vmatprep.subr.mxu0 0.0
      %1209 = vmatpush1.msra.mxu0 0.0
      %1210 = vmatprep.subr.mxu0 0.0
      %1211 = vmatpush1.msra.mxu0 0.0
      %1212 = vmatprep.subr.mxu0 0.0
      %1213 = vmatpush1.msra.mxu0 0.0
      %1214 = vmatprep.subr.mxu0 0.0
      %1215 = vmatpush1.msra.mxu0 0.0
      %1216 = vmatprep.subr.mxu0 0.0
      %1217 = vmatpush1.msra.mxu0 0.0
      %1218 = vmatprep.subr.mxu0 0.0
      %1219 = vmatpush1.msra.mxu0 0.0
      %1220 = vmatprep.subr.mxu0 0.0
      %1221 = vmatpush1.msra.mxu0 0.0
      %1222 = vmatprep.subr.mxu0 0.0
      %1223 = vmatpush1.msra.mxu0 0.0
      %1224 = vmatprep.subr.mxu0 0.0
      %1225 = vmatpush1.msra.mxu0 0.0
      %1226 = vmatprep.subr.mxu0 0.0
      %1227 = vmatpush1.msra.mxu0 0.0
      %1228 = vmatprep.subr.mxu0 0.0
      %1229 = vmatpush1.msra.mxu0 0.0
      %1230 = vmatprep.subr.mxu0 0.0
      %1231 = vmatpush1.msra.mxu0 0.0
      %1232 = vmatprep.subr.mxu0 0.0
      %1233 = vmatpush1.msra.mxu0 0.0
      %1234 = vmatprep.subr.mxu0 0.0
      %1235 = vmatpush1.msra.mxu0 0.0
      %1236 = vmatprep.subr.mxu0 0.0
      %1237 = vmatpush1.msra.mxu0 0.0
      %1238 = vmatprep.subr.mxu0 0.0
      %1239 = vmatpush1.msra.mxu0 0.0
      %1240 = vmatprep.subr.mxu0 0.0
      %1241 = vmatpush1.msra.mxu0 0.0
      %1242 = vmatprep.subr.mxu0 0.0
      %1243 = vmatpush1.msra.mxu0 0.0
      %1244 = vmatprep.subr.mxu0 0.0
      %1245 = vmatpush1.msra.mxu0 0.0
      %1246 = vmatprep.mubr.f32.mxu0 0.0
      %1247 = vmatmul.mubr.f32.gmra.mrb[0].mxu0 %v971
      %v1248 = vpop.f32.mrb[0].mxu0
      %v1249 = vadd.f32 0.0, %v1248
      %v1250 = vpop.f32.mrb[0].mxu0
      %v1251 = vadd.f32 0.0, %v1250
      %1252 = vmatprep.mubr.f32.mxu0 0.0
      %1253 = vmatmul.mubr.f32.gmra.mrb[0].mxu0 %v974
      %v1254 = vpop.f32.mrb[0].mxu0
      %v1255 = vadd.f32 0.0, %v1254
      %v1256 = vpop.f32.mrb[0].mxu0
      %v1257 = vadd.f32 0.0, %v1256
      %1258 = vmatprep.mubr.f32.mxu0 0.0
      %1259 = vmatmul.mubr.f32.gmra.mrb[0].mxu0 %v977
      %v1260 = vpop.f32.mrb[0].mxu0
      %v1261 = vadd.f32 0.0, %v1260
      %v1262 = vpop.f32.mrb[0].mxu0
      %v1263 = vadd.f32 0.0, %v1262
      %1264 = vmatprep.mubr.f32.mxu0 0.0
      %1265 = vmatmul.mubr.f32.gmra.mrb[0].mxu0 %v980
      %v1266 = vpop.f32.mrb[0].mxu0
      %v1267 = vadd.f32 0.0, %v1266
      %v1268 = vpop.f32.mrb[0].mxu0
      %v1269 = vadd.f32 0.0, %v1268
      %1270 = vdwg.mxu0
      %1271 = vmatprep.subr.mxu0 0.0
      %1272 = vmatpush1.msra.mxu0 %v565
      %1273 = vmatprep.subr.mxu0 0.0
      %1274 = vmatpush1.msra.mxu0 %v572
      %1275 = vmatprep.subr.mxu0 0.0
      %1276 = vmatpush1.msra.mxu0 %v579
      %1277 = vmatprep.subr.mxu0 0.0
      %1278 = vmatpush1.msra.mxu0 %v1002
      %1279 = vmatprep.subr.mxu0 0.0
      %1280 = vmatpush1.msra.mxu0 0.0
      %1281 = vmatprep.subr.mxu0 0.0
      %1282 = vmatpush1.msra.mxu0 0.0
      %1283 = vmatprep.subr.mxu0 0.0
      %1284 = vmatpush1.msra.mxu0 0.0
      %1285 = vmatprep.subr.mxu0 0.0
      %1286 = vmatpush1.msra.mxu0 0.0
      %1287 = vmatprep.subr.mxu0 0.0
      %1288 = vmatpush1.msra.mxu0 0.0
      %1289 = vmatprep.subr.mxu0 0.0
      %1290 = vmatpush1.msra.mxu0 0.0
      %1291 = vmatprep.subr.mxu0 0.0
      %1292 = vmatpush1.msra.mxu0 0.0
      %1293 = vmatprep.subr.mxu0 0.0
      %1294 = vmatpush1.msra.mxu0 0.0
      %1295 = vmatprep.subr.mxu0 0.0
      %1296 = vmatpush1.msra.mxu0 0.0
      %1297 = vmatprep.subr.mxu0 0.0
      %1298 = vmatpush1.msra.mxu0 0.0
      %1299 = vmatprep.subr.mxu0 0.0
      %1300 = vmatpush1.msra.mxu0 0.0
      %1301 = vmatprep.subr.mxu0 0.0
      %1302 = vmatpush1.msra.mxu0 0.0
      %1303 = vmatprep.subr.mxu0 0.0
      %1304 = vmatpush1.msra.mxu0 0.0
      %1305 = vmatprep.subr.mxu0 0.0
      %1306 = vmatpush1.msra.mxu0 0.0
      %1307 = vmatprep.subr.mxu0 0.0
      %1308 = vmatpush1.msra.mxu0 0.0
      %1309 = vmatprep.subr.mxu0 0.0
      %1310 = vmatpush1.msra.mxu0 0.0
      %1311 = vmatprep.subr.mxu0 0.0
      %1312 = vmatpush1.msra.mxu0 0.0
      %1313 = vmatprep.subr.mxu0 0.0
      %1314 = vmatpush1.msra.mxu0 0.0
      %1315 = vmatprep.subr.mxu0 0.0
      %1316 = vmatpush1.msra.mxu0 0.0
      %1317 = vmatprep.subr.mxu0 0.0
      %1318 = vmatpush1.msra.mxu0 0.0
      %1319 = vmatprep.subr.mxu0 0.0
      %1320 = vmatpush1.msra.mxu0 0.0
      %1321 = vmatprep.subr.mxu0 0.0
      %1322 = vmatpush1.msra.mxu0 0.0
      %1323 = vmatprep.subr.mxu0 0.0
      %1324 = vmatpush1.msra.mxu0 0.0
      %1325 = vmatprep.subr.mxu0 0.0
      %1326 = vmatpush1.msra.mxu0 0.0
      %1327 = vmatprep.subr.mxu0 0.0
      %1328 = vmatpush1.msra.mxu0 0.0
      %1329 = vmatprep.subr.mxu0 0.0
      %1330 = vmatpush1.msra.mxu0 0.0
      %1331 = vmatprep.subr.mxu0 0.0
      %1332 = vmatpush1.msra.mxu0 0.0
      %1333 = vmatprep.subr.mxu0 0.0
      %1334 = vmatpush1.msra.mxu0 0.0
      %1335 = vmatprep.mubr.f32.mxu0 0.0
      %1336 = vmatmul.mubr.f32.gmra.mrb[0].mxu0 %v971
      %v1337 = vpop.f32.mrb[0].mxu0
      %v1338 = vadd.f32 0.0, %v1337
      %v1339 = vpop.f32.mrb[0].mxu0
      %1340 = vmatprep.mubr.f32.mxu0 0.0
      %1341 = vmatmul.mubr.f32.gmra.mrb[0].mxu0 %v974
      %v1342 = vpop.f32.mrb[0].mxu0
      %v1343 = vadd.f32 0.0, %v1342
      %v1344 = vpop.f32.mrb[0].mxu0
      %1345 = vmatprep.mubr.f32.mxu0 0.0
      %1346 = vmatmul.mubr.f32.gmra.mrb[0].mxu0 %v977
      %v1347 = vpop.f32.mrb[0].mxu0
      %v1348 = vadd.f32 0.0, %v1347
      %v1349 = vpop.f32.mrb[0].mxu0
      %1350 = vmatprep.mubr.f32.mxu0 0.0
      %1351 = vmatmul.mubr.f32.gmra.mrb[0].mxu0 %v980
      %v1352 = vpop.f32.mrb[0].mxu0
      %v1353 = vadd.f32 0.0, %v1352
      %v1354 = vpop.f32.mrb[0].mxu0
      %1355 = vdwg.mxu0
      %v1356 = vmul.f32 %v1071, %v937
      %v1357 = vmul.f32 %v1073, %v938
      %v1358 = vmul.f32 %v1160, %v939
      %v1359 = vmul.f32 %v1162, %v940
      %v1360 = vmul.f32 %v1249, %v941
      %v1361 = vmul.f32 %v1251, %v942
      %v1362 = vmul.f32 %v1338, %v943
      %v1363 = vmul.f32 %v1077, %v944
      %v1364 = vmul.f32 %v1079, %v945
      %v1365 = vmul.f32 %v1166, %v946
      %v1366 = vmul.f32 %v1168, %v947
      %v1367 = vmul.f32 %v1255, %v948
      %v1368 = vmul.f32 %v1257, %v949
      %v1369 = vmul.f32 %v1343, %v950
      %v1370 = vmul.f32 %v1083, %v951
      %v1371 = vmul.f32 %v1085, %v952
      %v1372 = vmul.f32 %v1172, %v953
      %v1373 = vmul.f32 %v1174, %v954
      %v1374 = vmul.f32 %v1261, %v955
      %v1375 = vmul.f32 %v1263, %v956
      %v1376 = vmul.f32 %v1348, %v957
      %v1377 = vmul.f32 %v1089, %v958
      %v1378 = vmul.f32 %v1091, %v959
      %v1379 = vmul.f32 %v1178, %v960
      %v1380 = vmul.f32 %v1180, %v961
      %v1381 = vmul.f32 %v1267, %v962
      %v1382 = vmul.f32 %v1269, %v963
      %v1383 = vmul.f32 %v1353, %v964
      %v1384 = vadd.f32 %v1356, %v1363
      %v1385 = vadd.f32 %v1384, %v1370
      %v1386 = vsel %vm982, %v1377, 0.0
      %v1387 = vadd.f32 %v1385, %v1386
      %v1388 = vrot.slane %v1387, 4
      %v1389 = vadd.f32 %v1387, %v1388
      %v1390 = vrot.slane %v1389, 2
      %v1391 = vadd.f32 %v1389, %v1390
      %v1392 = vrot.slane %v1391, 1
      %v1393 = vadd.f32 %v1391, %v1392
      %v1394 = vadd.f32 %v1357, %v1364
      %v1395 = vadd.f32 %v1394, %v1371
      %v1396 = vsel %vm982, %v1378, 0.0
      %v1397 = vadd.f32 %v1395, %v1396
      %v1398 = vrot.slane %v1397, 4
      %v1399 = vadd.f32 %v1397, %v1398
      %v1400 = vrot.slane %v1399, 2
      %v1401 = vadd.f32 %v1399, %v1400
      %v1402 = vrot.slane %v1401, 1
      %v1403 = vadd.f32 %v1401, %v1402
      %v1404 = vadd.f32 %v1358, %v1365
      %v1405 = vadd.f32 %v1404, %v1372
      %v1406 = vsel %vm982, %v1379, 0.0
      %v1407 = vadd.f32 %v1405, %v1406
      %v1408 = vrot.slane %v1407, 4
      %v1409 = vadd.f32 %v1407, %v1408
      %v1410 = vrot.slane %v1409, 2
      %v1411 = vadd.f32 %v1409, %v1410
      %v1412 = vrot.slane %v1411, 1
      %v1413 = vadd.f32 %v1411, %v1412
      %v1414 = vadd.f32 %v1359, %v1366
      %v1415 = vadd.f32 %v1414, %v1373
      %v1416 = vsel %vm982, %v1380, 0.0
      %v1417 = vadd.f32 %v1415, %v1416
      %v1418 = vrot.slane %v1417, 4
      %v1419 = vadd.f32 %v1417, %v1418
      %v1420 = vrot.slane %v1419, 2
      %v1421 = vadd.f32 %v1419, %v1420
      %v1422 = vrot.slane %v1421, 1
      %v1423 = vadd.f32 %v1421, %v1422
      %v1424 = vadd.f32 %v1360, %v1367
      %v1425 = vadd.f32 %v1424, %v1374
      %v1426 = vsel %vm982, %v1381, 0.0
      %v1427 = vadd.f32 %v1425, %v1426
      %v1428 = vrot.slane %v1427, 4
      %v1429 = vadd.f32 %v1427, %v1428
      %v1430 = vrot.slane %v1429, 2
      %v1431 = vadd.f32 %v1429, %v1430
      %v1432 = vrot.slane %v1431, 1
      %v1433 = vadd.f32 %v1431, %v1432
      %v1434 = vadd.f32 %v1361, %v1368
      %v1435 = vadd.f32 %v1434, %v1375
      %v1436 = vsel %vm982, %v1382, 0.0
      %v1437 = vadd.f32 %v1435, %v1436
      %v1438 = vrot.slane %v1437, 4
      %v1439 = vadd.f32 %v1437, %v1438
      %v1440 = vrot.slane %v1439, 2
      %v1441 = vadd.f32 %v1439, %v1440
      %v1442 = vrot.slane %v1441, 1
      %v1443 = vadd.f32 %v1441, %v1442
      %vm1444 = vcmask 130048
      %v1445 = vsel %vm1444, %v1362, 0.0
      %v1446 = vsel %vm1444, %v1369, 0.0
      %v1447 = vadd.f32 %v1445, %v1446
      %v1448 = vsel %vm1444, %v1376, 0.0
      %v1449 = vadd.f32 %v1447, %v1448
      %vm1450 = vcmask 125952
      %v1451 = vsel %vm1450, %v1383, 0.0
      %v1452 = vadd.f32 %v1449, %v1451
      %v1453 = vrot.slane %v1452, 4
      %v1454 = vadd.f32 %v1452, %v1453
      %v1455 = vrot.slane %v1454, 2
      %v1456 = vadd.f32 %v1454, %v1455
      %v1457 = vrot.slane %v1456, 1
      %v1458 = vadd.f32 %v1456, %v1457
      %v1466 = vcombine.low %v1393, %v1403
      %v1467 = vcombine.low %v1413, %v1423
      %v1468 = vcombine.low %v1433, %v1443
      %v1470 = vunpack.c.l.s4 1966171168
      %v1471 = vunpack.c.0.s8 %v1470
      %v1472 = vlaneseq
      %v1473 = vshrl.u32 %v1472, 7
      %v1474 = vsub.s32 %v1471, %v1473
      %v1475 = vrot.slane %v1466, %v1474
      %v1477 = vunpack.c.l.s4 1966171168
      %v1478 = vunpack.c.0.s8 %v1477
      %v1479 = vlaneseq
      %v1480 = vshrl.u32 %v1479, 7
      %v1481 = vsub.s32 %v1478, %v1480
      %v1482 = vrot.slane %v1467, %v1481
      %v1484 = vunpack.c.l.s4 1966171168
      %v1485 = vunpack.c.0.s8 %v1484
      %v1486 = vlaneseq
      %v1487 = vshrl.u32 %v1486, 7
      %v1488 = vsub.s32 %v1485, %v1487
      %v1489 = vrot.slane %v1468, %v1488
      %v1491 = vunpack.c.l.s4 1966171168
      %v1492 = vunpack.c.0.s8 %v1491
      %v1493 = vlaneseq
      %v1494 = vshrl.u32 %v1493, 7
      %v1495 = vsub.s32 %v1492, %v1494
      %v1496 = vrot.slane %v1458, %v1495
      %v1497 = vcombine.low %v1475, %v1482
      %v1498 = vcombine.low %v1489, %v1496
      %v1500 = vunpack.c.l.s4 1966171168
      %v1501 = vunpack.c.0.s8 %v1500
      %v1502 = vlaneseq
      %v1503 = vshrl.u32 %v1502, 7
      %v1504 = vsub.s32 %v1501, %v1503
      %v1505 = vrot.slane %v1497, %v1504
      %v1507 = vunpack.c.l.s4 1966171168
      %v1508 = vunpack.c.0.s8 %v1507
      %v1509 = vlaneseq
      %v1510 = vshrl.u32 %v1509, 7
      %v1511 = vsub.s32 %v1508, %v1510
      %v1512 = vrot.slane %v1498, %v1511
      %v1513 = vcombine.low %v1505, %v1512
      %v1515 = vlaneseq
      %vm1516 = vcmp.ge.s32.totalorder %v1515, 0
      %vm1517 = vcmp.lt.s32.totalorder %v1515, 784
      %vm1518 = vmand %vm1516, %vm1517
      %1519 = vst.msk [vmem:[%s161] sm:$0x7f] %vm1518, %v1513
      %p1520 = scmp.lt.s32.totalorder %s13, 1
      %s1521 = scalar_select %p1520, %s13, 1
      %s1522 = smul.addr %s1521, 7
      %s1523 = scalar_lea.vmem %s2, %s1522
      // Predicated region
      $region29: #{stn_forward.10} parent=27 // pred_check
        %p1524 = pneg %p83
      $region30: #{stn_forward.10} parent=27 // pred_check_branch
        %1526 = sbr.rel (%p1524) target = $region32
      $region31: #{stn_forward.10} parent=27 // pred_region
        _
      $region32: #{stn_forward.10} parent=27 // pred_fallthru
        _
    $region28: #{stn_forward.10} parent=5 // pred_fallthru
      _
    %p1527 = scmp.le.s32.totalorder 2, %s8
    // Predicated region
    $region33: #{stn_forward.10} parent=5 // pred_check
      %p1528 = pneg %p1527
    $region34: #{stn_forward.10} parent=5 // pred_check_branch
      %1530 = sbr.rel (%p1528) target = $region36
    $region35: #{stn_forward.10} parent=5 // pred_region
      %s1531 = ssub.s32 %s8, 2
      // Predicated region
      $region37: #{stn_forward.10} parent=35 // pred_check
        %p1532 = pneg %p89
      $region38: #{stn_forward.10} parent=35 // pred_check_branch
        %1534 = sbr.rel (%p1532) target = $region40
      $region39: #{stn_forward.10} parent=35 // pred_region
        %p1535 = scmp.lt.s32.totalorder %s14, 1
        %s1536 = scalar_select %p1535, %s14, 1
        %s1537 = smul.addr %s1536, 7
        %s1538 = scalar_lea.vmem %s2, %s1537
      $region40: #{stn_forward.10} parent=35 // pred_fallthru
        _
    $region36: #{stn_forward.10} parent=5 // pred_fallthru
      _
  $region6: #{stn_forward.10} parent=0 // loop_footer
    %s12 = sadd.s32 1, %s8
  $region7: #{stn_forward.10} parent=0 // loop_footer_branch
    %7 = sbr.rel target = $region3
  $region8: #{stn_forward.10} parent=0 // loop_exit
    _

// kernel: stn_forward.11
$region0: #{stn_forward.11}
  #allocation0 [shape = 'u32[]', space=smem, size = 0x4, offset = 0x4, fixed_abs, tag = 'smem constant byte address 0x4 - core index']
  #allocation1 [shape = 'u32[144,128]{1,0:T(1,128)}', space=vmem, size = 0x12000, scoped, tag = 'internal scratch']
  %s0 = inlined_call_operand.vmem [shape: bf16[4,25,384], index: 0, kind: input, shape index: {}]
  %s1 = inlined_call_operand.vmem [shape: bf16[10,25], index: 1, kind: input, shape index: {}]
  %s2 = inlined_call_operand.vmem [shape: f32[10,1], index: 2, kind: input, shape index: {}]
  %s3 = inlined_call_operand.vmem [shape: f32[10,384], index: 3, kind: output, shape index: {}]
  %s4 = sld [smem:[#allocation0]]
  $region22: #{stn_forward.11} parent=0
    _
  %s6 = ssub.s32 1, %s4
  %s7 = scalar_select 0, %s6, %s4
  // Predicated region
  $region2: #{stn_forward.11} parent=0 // pred_check
    _
  $region3: #{stn_forward.11} parent=0 // pred_check_branch
    %9 = sbr.rel (0) target = $region5
  $region4: #{stn_forward.11} parent=0 // pred_region
    _
  $region5: #{stn_forward.11} parent=0 // pred_fallthru
    _
  // Predicated region
  $region6: #{stn_forward.11} parent=0 // pred_check
    _
  $region7: #{stn_forward.11} parent=0 // pred_check_branch
    %11 = sbr.rel (0) target = $region9
  $region8: #{stn_forward.11} parent=0 // pred_region
    _
  $region9: #{stn_forward.11} parent=0 // pred_fallthru
    _
  // Predicated region
  $region10: #{stn_forward.11} parent=0 // pred_check
    _
  $region11: #{stn_forward.11} parent=0 // pred_check_branch
    %13 = sbr.rel (0) target = $region13
  $region12: #{stn_forward.11} parent=0 // pred_region
    _
  $region13: #{stn_forward.11} parent=0 // pred_fallthru
    _
  %v15 = vld [vmem:[%s1] sm:$0xf]
  %v16 = vld [vmem:[%s1 + $0x4] sm:$0x1]
  %v17 = vld [vmem:[%s0] sm:$0xff]
  %v18 = vld [vmem:[%s0 + $0x8] sm:$0xf]
  %v19 = vld [vmem:[%s0 + $0xc] sm:$0xff]
  %v20 = vld [vmem:[%s0 + $0x14] sm:$0xf]
  %v21 = vld [vmem:[%s0 + $0x18] sm:$0xff]
  %v22 = vld [vmem:[%s0 + $0x20] sm:$0xf]
  %v23 = vld [vmem:[%s0 + $0x24] sm:$0x11]
  %v24 = vld [vmem:[%s0 + $0x2c] sm:$0x1]
  %v27 = vunpack.c.l.b16 %v15
  %v28 = vunpack.c.l.b16 %v16
  %v29 = vpack.c.b16 %v28, %v27
  %v38 = vunpack.c.l.b16 %v17
  %v39 = vunpack.c.h.b16 %v17
  %v40 = vunpack.c.l.b16 %v18
  %v41 = vunpack.c.l.b16 %v19
  %v42 = vunpack.c.h.b16 %v19
  %v43 = vunpack.c.l.b16 %v20
  %v44 = vunpack.c.l.b16 %v21
  %v45 = vunpack.c.h.b16 %v21
  %v46 = vunpack.c.l.b16 %v22
  %v47 = vunpack.c.l.b16 %v23
  %v48 = vunpack.c.h.b16 %v23
  %v49 = vunpack.c.l.b16 %v24
  %v50 = vpack.c.b16 %v41, %v38
  %v51 = vpack.c.b16 %v42, %v39
  %v52 = vpack.c.b16 %v43, %v40
  %v53 = vpack.c.b16 %v47, %v44
  %v54 = vpack.c.b16 %v48, %v45
  %v55 = vpack.c.b16 %v49, %v46
  %vm59 = vcmask 203776
  %v61 = vsel %vm59, %v29, 0
  %vm63 = vcmask 1043456
  %vm64 = vcmask 1044480
  %v65 = vsel %vm63, 4294967295, 65535
  %v66 = vsel %vm64, %v65, 0
  %v68 = vand.u32 %v53, %v66
  %v71 = vand.u32 %v54, %v66
  %v74 = vand.u32 %v55, %v66
  %76 = vmatprep.subr.bf16.mxu0 %v51
  %77 = vmatpush1.bf16.msra.mxu0 %v50
  %78 = vmatprep.subr.bf16.mxu0 %v71
  %79 = vmatpush1.bf16.msra.mxu0 %v68
  %80 = vmatprep.subr.bf16.mxu0 0
  %81 = vmatpush1.bf16.msra.mxu0 0
  %82 = vmatprep.subr.bf16.mxu0 0
  %83 = vmatpush1.bf16.msra.mxu0 0
  %84 = vmatprep.subr.bf16.mxu0 0
  %85 = vmatpush1.bf16.msra.mxu0 0
  %86 = vmatprep.subr.bf16.mxu0 0
  %87 = vmatpush1.bf16.msra.mxu0 0
  %88 = vmatprep.subr.bf16.mxu0 0
  %89 = vmatpush1.bf16.msra.mxu0 0
  %90 = vmatprep.subr.bf16.mxu0 0
  %91 = vmatpush1.bf16.msra.mxu0 0
  %92 = vmatprep.subr.bf16.mxu0 0
  %93 = vmatpush1.bf16.msra.mxu0 0
  %94 = vmatprep.subr.bf16.mxu0 0
  %95 = vmatpush1.bf16.msra.mxu0 0
  %96 = vmatprep.subr.bf16.mxu0 0
  %97 = vmatpush1.bf16.msra.mxu0 0
  %98 = vmatprep.subr.bf16.mxu0 0
  %99 = vmatpush1.bf16.msra.mxu0 0
  %100 = vmatprep.subr.bf16.mxu0 0
  %101 = vmatpush1.bf16.msra.mxu0 0
  %102 = vmatprep.subr.bf16.mxu0 0
  %103 = vmatpush1.bf16.msra.mxu0 0
  %104 = vmatprep.subr.bf16.mxu0 0
  %105 = vmatpush1.bf16.msra.mxu0 0
  %106 = vmatprep.subr.bf16.mxu0 0
  %107 = vmatpush1.bf16.msra.mxu0 0
  %108 = vmatprep.mubr.bf16.mxu0 0
  %109 = vmatmul.mubr.bf16.gmra.mrb[0].mxu0 %v61
  %v110 = vpop.f32.mrb[0].mxu0
  %v111 = vadd.f32 0.0, %v110
  %v112 = vpop.f32.mrb[0].mxu0
  %v113 = vadd.f32 0.0, %v112
  %v114 = vpop.f32.mrb[0].mxu0
  %v115 = vadd.f32 0.0, %v114
  %v116 = vpop.f32.mrb[0].mxu0
  %v117 = vadd.f32 0.0, %v116
  %118 = vdwg.mxu0
  %119 = vmatprep.subr.bf16.mxu0 0
  %120 = vmatpush1.bf16.msra.mxu0 %v52
  %121 = vmatprep.subr.bf16.mxu0 0
  %122 = vmatpush1.bf16.msra.mxu0 %v74
  %123 = vmatprep.subr.bf16.mxu0 0
  %124 = vmatpush1.bf16.msra.mxu0 0
  %125 = vmatprep.subr.bf16.mxu0 0
  %126 = vmatpush1.bf16.msra.mxu0 0
  %127 = vmatprep.subr.bf16.mxu0 0
  %128 = vmatpush1.bf16.msra.mxu0 0
  %129 = vmatprep.subr.bf16.mxu0 0
  %130 = vmatpush1.bf16.msra.mxu0 0
  %131 = vmatprep.subr.bf16.mxu0 0
  %132 = vmatpush1.bf16.msra.mxu0 0
  %133 = vmatprep.subr.bf16.mxu0 0
  %134 = vmatpush1.bf16.msra.mxu0 0
  %135 = vmatprep.subr.bf16.mxu0 0
  %136 = vmatpush1.bf16.msra.mxu0 0
  %137 = vmatprep.subr.bf16.mxu0 0
  %138 = vmatpush1.bf16.msra.mxu0 0
  %139 = vmatprep.subr.bf16.mxu0 0
  %140 = vmatpush1.bf16.msra.mxu0 0
  %141 = vmatprep.subr.bf16.mxu0 0
  %142 = vmatpush1.bf16.msra.mxu0 0
  %143 = vmatprep.subr.bf16.mxu0 0
  %144 = vmatpush1.bf16.msra.mxu0 0
  %145 = vmatprep.subr.bf16.mxu0 0
  %146 = vmatpush1.bf16.msra.mxu0 0
  %147 = vmatprep.subr.bf16.mxu0 0
  %148 = vmatpush1.bf16.msra.mxu0 0
  %149 = vmatprep.subr.bf16.mxu0 0
  %150 = vmatpush1.bf16.msra.mxu0 0
  %151 = vmatprep.mubr.bf16.mxu0 0
  %152 = vmatmul.mubr.bf16.gmra.mrb[0].mxu0 %v61
  %v153 = vpop.f32.mrb[0].mxu0
  %v154 = vadd.f32 0.0, %v153
  %v155 = vpop.f32.mrb[0].mxu0
  %v156 = vpop.f32.mrb[0].mxu0
  %v157 = vadd.f32 0.0, %v156
  %v158 = vpop.f32.mrb[0].mxu0
  %159 = vdwg.mxu0
  %s160 = scalar_lea.vmem %s0, 48
  %v161 = vld [vmem:[%s160] sm:$0xff]
  %v162 = vld [vmem:[%s160 + $0x8] sm:$0xf]
  %v163 = vld [vmem:[%s160 + $0xc] sm:$0xff]
  %v164 = vld [vmem:[%s160 + $0x14] sm:$0xf]
  %v165 = vld [vmem:[%s160 + $0x18] sm:$0xff]
  %v166 = vld [vmem:[%s160 + $0x20] sm:$0xf]
  %v167 = vld [vmem:[%s160 + $0x24] sm:$0x11]
  %v168 = vld [vmem:[%s160 + $0x2c] sm:$0x1]
  %v177 = vunpack.c.l.b16 %v161
  %v178 = vunpack.c.h.b16 %v161
  %v179 = vunpack.c.l.b16 %v162
  %v180 = vunpack.c.l.b16 %v163
  %v181 = vunpack.c.h.b16 %v163
  %v182 = vunpack.c.l.b16 %v164
  %v183 = vunpack.c.l.b16 %v165
  %v184 = vunpack.c.h.b16 %v165
  %v185 = vunpack.c.l.b16 %v166
  %v186 = vunpack.c.l.b16 %v167
  %v187 = vunpack.c.h.b16 %v167
  %v188 = vunpack.c.l.b16 %v168
  %v189 = vpack.c.b16 %v180, %v177
  %v190 = vpack.c.b16 %v181, %v178
  %v191 = vpack.c.b16 %v182, %v179
  %v192 = vpack.c.b16 %v186, %v183
  %v193 = vpack.c.b16 %v187, %v184
  %v194 = vpack.c.b16 %v188, %v185
  %v199 = vand.u32 %v192, %v66
  %v202 = vand.u32 %v193, %v66
  %v205 = vand.u32 %v194, %v66
  %207 = vmatprep.subr.bf16.mxu0 %v190
  %208 = vmatpush1.bf16.msra.mxu0 %v189
  %209 = vmatprep.subr.bf16.mxu0 %v202
  %210 = vmatpush1.bf16.msra.mxu0 %v199
  %211 = vmatprep.subr.bf16.mxu0 0
  %212 = vmatpush1.bf16.msra.mxu0 0
  %213 = vmatprep.subr.bf16.mxu0 0
  %214 = vmatpush1.bf16.msra.mxu0 0
  %215 = vmatprep.subr.bf16.mxu0 0
  %216 = vmatpush1.bf16.msra.mxu0 0
  %217 = vmatprep.subr.bf16.mxu0 0
  %218 = vmatpush1.bf16.msra.mxu0 0
  %219 = vmatprep.subr.bf16.mxu0 0
  %220 = vmatpush1.bf16.msra.mxu0 0
  %221 = vmatprep.subr.bf16.mxu0 0
  %222 = vmatpush1.bf16.msra.mxu0 0
  %223 = vmatprep.subr.bf16.mxu0 0
  %224 = vmatpush1.bf16.msra.mxu0 0
  %225 = vmatprep.subr.bf16.mxu0 0
  %226 = vmatpush1.bf16.msra.mxu0 0
  %227 = vmatprep.subr.bf16.mxu0 0
  %228 = vmatpush1.bf16.msra.mxu0 0
  %229 = vmatprep.subr.bf16.mxu0 0
  %230 = vmatpush1.bf16.msra.mxu0 0
  %231 = vmatprep.subr.bf16.mxu0 0
  %232 = vmatpush1.bf16.msra.mxu0 0
  %233 = vmatprep.subr.bf16.mxu0 0
  %234 = vmatpush1.bf16.msra.mxu0 0
  %235 = vmatprep.subr.bf16.mxu0 0
  %236 = vmatpush1.bf16.msra.mxu0 0
  %237 = vmatprep.subr.bf16.mxu0 0
  %238 = vmatpush1.bf16.msra.mxu0 0
  %239 = vmatprep.mubr.bf16.mxu0 0
  %240 = vmatmul.mubr.bf16.gmra.mrb[0].mxu0 %v61
  %v241 = vpop.f32.mrb[0].mxu0
  %v242 = vadd.f32 0.0, %v241
  %v243 = vpop.f32.mrb[0].mxu0
  %v244 = vadd.f32 0.0, %v243
  %v245 = vpop.f32.mrb[0].mxu0
  %v246 = vadd.f32 0.0, %v245
  %v247 = vpop.f32.mrb[0].mxu0
  %v248 = vadd.f32 0.0, %v247
  %249 = vdwg.mxu0
  %250 = vmatprep.subr.bf16.mxu0 0
  %251 = vmatpush1.bf16.msra.mxu0 %v191
  %252 = vmatprep.subr.bf16.mxu0 0
  %253 = vmatpush1.bf16.msra.mxu0 %v205
  %254 = vmatprep.subr.bf16.mxu0 0
  %255 = vmatpush1.bf16.msra.mxu0 0
  %256 = vmatprep.subr.bf16.mxu0 0
  %257 = vmatpush1.bf16.msra.mxu0 0
  %258 = vmatprep.subr.bf16.mxu0 0
  %259 = vmatpush1.bf16.msra.mxu0 0
  %260 = vmatprep.subr.bf16.mxu0 0
  %261 = vmatpush1.bf16.msra.mxu0 0
  %262 = vmatprep.subr.bf16.mxu0 0
  %263 = vmatpush1.bf16.msra.mxu0 0
  %264 = vmatprep.subr.bf16.mxu0 0
  %265 = vmatpush1.bf16.msra.mxu0 0
  %266 = vmatprep.subr.bf16.mxu0 0
  %267 = vmatpush1.bf16.msra.mxu0 0
  %268 = vmatprep.subr.bf16.mxu0 0
  %269 = vmatpush1.bf16.msra.mxu0 0
  %270 = vmatprep.subr.bf16.mxu0 0
  %271 = vmatpush1.bf16.msra.mxu0 0
  %272 = vmatprep.subr.bf16.mxu0 0
  %273 = vmatpush1.bf16.msra.mxu0 0
  %274 = vmatprep.subr.bf16.mxu0 0
  %275 = vmatpush1.bf16.msra.mxu0 0
  %276 = vmatprep.subr.bf16.mxu0 0
  %277 = vmatpush1.bf16.msra.mxu0 0
  %278 = vmatprep.subr.bf16.mxu0 0
  %279 = vmatpush1.bf16.msra.mxu0 0
  %280 = vmatprep.subr.bf16.mxu0 0
  %281 = vmatpush1.bf16.msra.mxu0 0
  %282 = vmatprep.mubr.bf16.mxu0 0
  %283 = vmatmul.mubr.bf16.gmra.mrb[0].mxu0 %v61
  %v284 = vpop.f32.mrb[0].mxu0
  %v285 = vadd.f32 0.0, %v284
  %v286 = vpop.f32.mrb[0].mxu0
  %v287 = vpop.f32.mrb[0].mxu0
  %v288 = vadd.f32 0.0, %v287
  %v289 = vpop.f32.mrb[0].mxu0
  %290 = vdwg.mxu0
  %v291 = vmax.f32 %v111, %v242
  %v292 = vmax.f32 %v113, %v244
  %v293 = vmax.f32 %v154, %v285
  %v294 = vmax.f32 %v115, %v246
  %v295 = vmax.f32 %v117, %v248
  %v296 = vmax.f32 %v157, %v288
  %s297 = scalar_lea.vmem %s0, 96
  %v298 = vld [vmem:[%s297] sm:$0xff]
  %v299 = vld [vmem:[%s297 + $0x8] sm:$0xf]
  %v300 = vld [vmem:[%s297 + $0xc] sm:$0xff]
  %v301 = vld [vmem:[%s297 + $0x14] sm:$0xf]
  %v302 = vld [vmem:[%s297 + $0x18] sm:$0xff]
  %v303 = vld [vmem:[%s297 + $0x20] sm:$0xf]
  %v304 = vld [vmem:[%s297 + $0x24] sm:$0x11]
  %v305 = vld [vmem:[%s297 + $0x2c] sm:$0x1]
  %v314 = vunpack.c.l.b16 %v298
  %v315 = vunpack.c.h.b16 %v298
  %v316 = vunpack.c.l.b16 %v299
  %v317 = vunpack.c.l.b16 %v300
  %v318 = vunpack.c.h.b16 %v300
  %v319 = vunpack.c.l.b16 %v301
  %v320 = vunpack.c.l.b16 %v302
  %v321 = vunpack.c.h.b16 %v302
  %v322 = vunpack.c.l.b16 %v303
  %v323 = vunpack.c.l.b16 %v304
  %v324 = vunpack.c.h.b16 %v304
  %v325 = vunpack.c.l.b16 %v305
  %v326 = vpack.c.b16 %v317, %v314
  %v327 = vpack.c.b16 %v318, %v315
  %v328 = vpack.c.b16 %v319, %v316
  %v329 = vpack.c.b16 %v323, %v320
  %v330 = vpack.c.b16 %v324, %v321
  %v331 = vpack.c.b16 %v325, %v322
  %v336 = vand.u32 %v329, %v66
  %v339 = vand.u32 %v330, %v66
  %v342 = vand.u32 %v331, %v66
  %344 = vmatprep.subr.bf16.mxu0 %v327
  %345 = vmatpush1.bf16.msra.mxu0 %v326
  %346 = vmatprep.subr.bf16.mxu0 %v339
  %347 = vmatpush1.bf16.msra.mxu0 %v336
  %348 = vmatprep.subr.bf16.mxu0 0
  %349 = vmatpush1.bf16.msra.mxu0 0
  %350 = vmatprep.subr.bf16.mxu0 0
  %351 = vmatpush1.bf16.msra.mxu0 0
  %352 = vmatprep.subr.bf16.mxu0 0
  %353 = vmatpush1.bf16.msra.mxu0 0
  %354 = vmatprep.subr.bf16.mxu0 0
  %355 = vmatpush1.bf16.msra.mxu0 0
  %356 = vmatprep.subr.bf16.mxu0 0
  %357 = vmatpush1.bf16.msra.mxu0 0
  %358 = vmatprep.subr.bf16.mxu0 0
  %359 = vmatpush1.bf16.msra.mxu0 0
  %360 = vmatprep.subr.bf16.mxu0 0
  %361 = vmatpush1.bf16.msra.mxu0 0
  %362 = vmatprep.subr.bf16.mxu0 0
  %363 = vmatpush1.bf16.msra.mxu0 0
  %364 = vmatprep.subr.bf16.mxu0 0
  %365 = vmatpush1.bf16.msra.mxu0 0
  %366 = vmatprep.subr.bf16.mxu0 0
  %367 = vmatpush1.bf16.msra.mxu0 0
  %368 = vmatprep.subr.bf16.mxu0 0
  %369 = vmatpush1.bf16.msra.mxu0 0
  %370 = vmatprep.subr.bf16.mxu0 0
  %371 = vmatpush1.bf16.msra.mxu0 0
  %372 = vmatprep.subr.bf16.mxu0 0
  %373 = vmatpush1.bf16.msra.mxu0 0
  %374 = vmatprep.subr.bf16.mxu0 0
  %375 = vmatpush1.bf16.msra.mxu0 0
  %376 = vmatprep.mubr.bf16.mxu0 0
  %377 = vmatmul.mubr.bf16.gmra.mrb[0].mxu0 %v61
  %v378 = vpop.f32.mrb[0].mxu0
  %v379 = vadd.f32 0.0, %v378
  %v380 = vpop.f32.mrb[0].mxu0
  %v381 = vadd.f32 0.0, %v380
  %v382 = vpop.f32.mrb[0].mxu0
  %v383 = vadd.f32 0.0, %v382
  %v384 = vpop.f32.mrb[0].mxu0
  %v385 = vadd.f32 0.0, %v384
  %386 = vdwg.mxu0
  %387 = vmatprep.subr.bf16.mxu0 0
  %388 = vmatpush1.bf16.msra.mxu0 %v328
  %389 = vmatprep.subr.bf16.mxu0 0
  %390 = vmatpush1.bf16.msra.mxu0 %v342
  %391 = vmatprep.subr.bf16.mxu0 0
  %392 = vmatpush1.bf16.msra.mxu0 0
  %393 = vmatprep.subr.bf16.mxu0 0
  %394 = vmatpush1.bf16.msra.mxu0 0
  %395 = vmatprep.subr.bf16.mxu0 0
  %396 = vmatpush1.bf16.msra.mxu0 0
  %397 = vmatprep.subr.bf16.mxu0 0
  %398 = vmatpush1.bf16.msra.mxu0 0
  %399 = vmatprep.subr.bf16.mxu0 0
  %400 = vmatpush1.bf16.msra.mxu0 0
  %401 = vmatprep.subr.bf16.mxu0 0
  %402 = vmatpush1.bf16.msra.mxu0 0
  %403 = vmatprep.subr.bf16.mxu0 0
  %404 = vmatpush1.bf16.msra.mxu0 0
  %405 = vmatprep.subr.bf16.mxu0 0
  %406 = vmatpush1.bf16.msra.mxu0 0
  %407 = vmatprep.subr.bf16.mxu0 0
  %408 = vmatpush1.bf16.msra.mxu0 0
  %409 = vmatprep.subr.bf16.mxu0 0
  %410 = vmatpush1.bf16.msra.mxu0 0
  %411 = vmatprep.subr.bf16.mxu0 0
  %412 = vmatpush1.bf16.msra.mxu0 0
  %413 = vmatprep.subr.bf16.mxu0 0
  %414 = vmatpush1.bf16.msra.mxu0 0
  %415 = vmatprep.subr.bf16.mxu0 0
  %416 = vmatpush1.bf16.msra.mxu0 0
  %417 = vmatprep.subr.bf16.mxu0 0
  %418 = vmatpush1.bf16.msra.mxu0 0
  %419 = vmatprep.mubr.bf16.mxu0 0
  %420 = vmatmul.mubr.bf16.gmra.mrb[0].mxu0 %v61
  %v421 = vpop.f32.mrb[0].mxu0
  %v422 = vadd.f32 0.0, %v421
  %v423 = vpop.f32.mrb[0].mxu0
  %v424 = vpop.f32.mrb[0].mxu0
  %v425 = vadd.f32 0.0, %v424
  %v426 = vpop.f32.mrb[0].mxu0
  %427 = vdwg.mxu0
  %v428 = vmax.f32 %v291, %v379
  %v429 = vmax.f32 %v292, %v381
  %v430 = vmax.f32 %v293, %v422
  %v431 = vmax.f32 %v294, %v383
  %v432 = vmax.f32 %v295, %v385
  %v433 = vmax.f32 %v296, %v425
  %s434 = scalar_lea.vmem %s0, 144
  %v435 = vld [vmem:[%s434] sm:$0xff]
  %v436 = vld [vmem:[%s434 + $0x8] sm:$0xf]
  %v437 = vld [vmem:[%s434 + $0xc] sm:$0xff]
  %v438 = vld [vmem:[%s434 + $0x14] sm:$0xf]
  %v439 = vld [vmem:[%s434 + $0x18] sm:$0xff]
  %v440 = vld [vmem:[%s434 + $0x20] sm:$0xf]
  %v441 = vld [vmem:[%s434 + $0x24] sm:$0x11]
  %v442 = vld [vmem:[%s434 + $0x2c] sm:$0x1]
  %v451 = vunpack.c.l.b16 %v435
  %v452 = vunpack.c.h.b16 %v435
  %v453 = vunpack.c.l.b16 %v436
  %v454 = vunpack.c.l.b16 %v437
  %v455 = vunpack.c.h.b16 %v437
  %v456 = vunpack.c.l.b16 %v438
  %v457 = vunpack.c.l.b16 %v439
  %v458 = vunpack.c.h.b16 %v439
  %v459 = vunpack.c.l.b16 %v440
  %v460 = vunpack.c.l.b16 %v441
  %v461 = vunpack.c.h.b16 %v441
  %v462 = vunpack.c.l.b16 %v442
  %v463 = vpack.c.b16 %v454, %v451
  %v464 = vpack.c.b16 %v455, %v452
  %v465 = vpack.c.b16 %v456, %v453
  %v466 = vpack.c.b16 %v460, %v457
  %v467 = vpack.c.b16 %v461, %v458
  %v468 = vpack.c.b16 %v462, %v459
  %v473 = vand.u32 %v466, %v66
  %v476 = vand.u32 %v467, %v66
  %v479 = vand.u32 %v468, %v66
  %481 = vmatprep.subr.bf16.mxu0 %v464
  %482 = vmatpush1.bf16.msra.mxu0 %v463
  %483 = vmatprep.subr.bf16.mxu0 %v476
  %484 = vmatpush1.bf16.msra.mxu0 %v473
  %485 = vmatprep.subr.bf16.mxu0 0
  %486 = vmatpush1.bf16.msra.mxu0 0
  %487 = vmatprep.subr.bf16.mxu0 0
  %488 = vmatpush1.bf16.msra.mxu0 0
  %489 = vmatprep.subr.bf16.mxu0 0
  %490 = vmatpush1.bf16.msra.mxu0 0
  %491 = vmatprep.subr.bf16.mxu0 0
  %492 = vmatpush1.bf16.msra.mxu0 0
  %493 = vmatprep.subr.bf16.mxu0 0
  %494 = vmatpush1.bf16.msra.mxu0 0
  %495 = vmatprep.subr.bf16.mxu0 0
  %496 = vmatpush1.bf16.msra.mxu0 0
  %497 = vmatprep.subr.bf16.mxu0 0
  %498 = vmatpush1.bf16.msra.mxu0 0
  %499 = vmatprep.subr.bf16.mxu0 0
  %500 = vmatpush1.bf16.msra.mxu0 0
  %501 = vmatprep.subr.bf16.mxu0 0
  %502 = vmatpush1.bf16.msra.mxu0 0
  %503 = vmatprep.subr.bf16.mxu0 0
  %504 = vmatpush1.bf16.msra.mxu0 0
  %505 = vmatprep.subr.bf16.mxu0 0
  %506 = vmatpush1.bf16.msra.mxu0 0
  %507 = vmatprep.subr.bf16.mxu0 0
  %508 = vmatpush1.bf16.msra.mxu0 0
  %509 = vmatprep.subr.bf16.mxu0 0
  %510 = vmatpush1.bf16.msra.mxu0 0
  %511 = vmatprep.subr.bf16.mxu0 0
  %512 = vmatpush1.bf16.msra.mxu0 0
  %513 = vmatprep.mubr.bf16.mxu0 0
  %514 = vmatmul.mubr.bf16.gmra.mrb[0].mxu0 %v61
  %v515 = vpop.f32.mrb[0].mxu0
  %v516 = vadd.f32 0.0, %v515
  %v517 = vpop.f32.mrb[0].mxu0
  %v518 = vadd.f32 0.0, %v517
  %v519 = vpop.f32.mrb[0].mxu0
  %v520 = vadd.f32 0.0, %v519
  %v521 = vpop.f32.mrb[0].mxu0
  %v522 = vadd.f32 0.0, %v521
  %523 = vdwg.mxu0
  %524 = vmatprep.subr.bf16.mxu0 0
  %525 = vmatpush1.bf16.msra.mxu0 %v465
  %526 = vmatprep.subr.bf16.mxu0 0
  %527 = vmatpush1.bf16.msra.mxu0 %v479
  %528 = vmatprep.subr.bf16.mxu0 0
  %529 = vmatpush1.bf16.msra.mxu0 0
  %530 = vmatprep.subr.bf16.mxu0 0
  %531 = vmatpush1.bf16.msra.mxu0 0
  %532 = vmatprep.subr.bf16.mxu0 0
  %533 = vmatpush1.bf16.msra.mxu0 0
  %534 = vmatprep.subr.bf16.mxu0 0
  %535 = vmatpush1.bf16.msra.mxu0 0
  %536 = vmatprep.subr.bf16.mxu0 0
  %537 = vmatpush1.bf16.msra.mxu0 0
  %538 = vmatprep.subr.bf16.mxu0 0
  %539 = vmatpush1.bf16.msra.mxu0 0
  %540 = vmatprep.subr.bf16.mxu0 0
  %541 = vmatpush1.bf16.msra.mxu0 0
  %542 = vmatprep.subr.bf16.mxu0 0
  %543 = vmatpush1.bf16.msra.mxu0 0
  %544 = vmatprep.subr.bf16.mxu0 0
  %545 = vmatpush1.bf16.msra.mxu0 0
  %546 = vmatprep.subr.bf16.mxu0 0
  %547 = vmatpush1.bf16.msra.mxu0 0
  %548 = vmatprep.subr.bf16.mxu0 0
  %549 = vmatpush1.bf16.msra.mxu0 0
  %550 = vmatprep.subr.bf16.mxu0 0
  %551 = vmatpush1.bf16.msra.mxu0 0
  %552 = vmatprep.subr.bf16.mxu0 0
  %553 = vmatpush1.bf16.msra.mxu0 0
  %554 = vmatprep.subr.bf16.mxu0 0
  %555 = vmatpush1.bf16.msra.mxu0 0
  %556 = vmatprep.mubr.bf16.mxu0 0
  %557 = vmatmul.mubr.bf16.gmra.mrb[0].mxu0 %v61
  %v558 = vpop.f32.mrb[0].mxu0
  %v559 = vadd.f32 0.0, %v558
  %v560 = vpop.f32.mrb[0].mxu0
  %v561 = vpop.f32.mrb[0].mxu0
  %v562 = vadd.f32 0.0, %v561
  %v563 = vpop.f32.mrb[0].mxu0
  %564 = vdwg.mxu0
  %v565 = vmax.f32 %v428, %v516
  %v566 = vmax.f32 %v429, %v518
  %v567 = vmax.f32 %v430, %v559
  %v568 = vmax.f32 %v431, %v520
  %v569 = vmax.f32 %v432, %v522
  %v570 = vmax.f32 %v433, %v562
  %v571 = vld [vmem:[%s2] sm:$0xff]
  %v572 = vld [vmem:[%s2 + $0x8] sm:$0x3]
  %574 = vset.pattern.permute.xlu0 0
  %575 = vperm.xlu0 %574, %v571
  %v576 = vpop.permute.xlu0 %575
  %579 = vset.pattern.permute.xlu0 0
  %580 = vperm.xlu0 %579, %v572
  %v581 = vpop.permute.xlu0 %580
  %v583 = vadd.f32 %v565, %v576
  %v584 = vadd.f32 %v566, %v576
  %v585 = vadd.f32 %v567, %v576
  %v586 = vadd.f32 %v568, %v581
  %v587 = vadd.f32 %v569, %v581
  %v588 = vadd.f32 %v570, %v581
  %v589 = vmax.f32 %v583, 0.0
  %v590 = vmax.f32 %v584, 0.0
  %v591 = vmax.f32 %v585, 0.0
  %v592 = vmax.f32 %v586, 0.0
  %v593 = vmax.f32 %v587, 0.0
  %v594 = vmax.f32 %v588, 0.0
  %595 = vst [vmem:[%s3] sm:$0xff] %v589
  %596 = vst [vmem:[%s3 + $0x8] sm:$0xff] %v590
  %597 = vst [vmem:[%s3 + $0x10] sm:$0xff] %v591
  %598 = vst [vmem:[%s3 + $0x18] sm:$0x3] %v592
  %599 = vst [vmem:[%s3 + $0x20] sm:$0x3] %v593
  %600 = vst [vmem:[%s3 + $0x28] sm:$0x3] %v594
  // Predicated region
  $region14: #{stn_forward.11} parent=0 // pred_check
    _
  $region15: #{stn_forward.11} parent=0 // pred_check_branch
    %602 = sbr.rel (0) target = $region17
  $region16: #{stn_forward.11} parent=0 // pred_region
    _
  $region17: #{stn_forward.11} parent=0 // pred_fallthru
    _
  // Predicated region
  $region18: #{stn_forward.11} parent=0 // pred_check
    _
  $region19: #{stn_forward.11} parent=0 // pred_check_branch
    %604 = sbr.rel (0) target = $region21
  $region20: #{stn_forward.11} parent=0 // pred_region
    _
  $region21: #{stn_forward.11} parent=0 // pred_fallthru
    _

// kernel: stn_forward.12
$region0: #{stn_forward.12}
  #allocation0 [shape = 'u32[]', space=smem, size = 0x4, offset = 0x4, fixed_abs, tag = 'smem constant byte address 0x4 - core index']
  #allocation1 [shape = 'u32[144,128]{1,0:T(1,128)}', space=vmem, size = 0x12000, scoped, tag = 'internal scratch']
  %s0 = inlined_call_operand.vmem [shape: bf16[4,250,128], index: 0, kind: input, shape index: {}]
  %s1 = inlined_call_operand.vmem [shape: bf16[20,250], index: 1, kind: input, shape index: {}]
  %s2 = inlined_call_operand.vmem [shape: f32[20,1], index: 2, kind: input, shape index: {}]
  %s3 = inlined_call_operand.vmem [shape: f32[20,128], index: 3, kind: output, shape index: {}]
  %s4 = sld [smem:[#allocation0]]
  $region22: #{stn_forward.12} parent=0
    _
  %s6 = ssub.s32 1, %s4
  %s7 = scalar_select 0, %s6, %s4
  // Predicated region
  $region2: #{stn_forward.12} parent=0 // pred_check
    _
  $region3: #{stn_forward.12} parent=0 // pred_check_branch
    %9 = sbr.rel (0) target = $region5
  $region4: #{stn_forward.12} parent=0 // pred_region
    _
  $region5: #{stn_forward.12} parent=0 // pred_fallthru
    _
  // Predicated region
  $region6: #{stn_forward.12} parent=0 // pred_check
    _
  $region7: #{stn_forward.12} parent=0 // pred_check_branch
    %11 = sbr.rel (0) target = $region9
  $region8: #{stn_forward.12} parent=0 // pred_region
    _
  $region9: #{stn_forward.12} parent=0 // pred_fallthru
    _
  // Predicated region
  $region10: #{stn_forward.12} parent=0 // pred_check
    _
  $region11: #{stn_forward.12} parent=0 // pred_check_branch
    %13 = sbr.rel (0) target = $region13
  $region12: #{stn_forward.12} parent=0 // pred_region
    _
  $region13: #{stn_forward.12} parent=0 // pred_fallthru
    _
  %v15 = vld [vmem:[%s1] sm:$0xff]
  %v16 = vld [vmem:[%s1 + $0x8] sm:$0xff]
  %v17 = vld [vmem:[%s1 + $0x10] sm:$0x33]
  %v18 = vld [vmem:[%s0] sm:$0xf]
  %v19 = vld [vmem:[%s0 + $0x4] sm:$0xf]
  %v20 = vld [vmem:[%s0 + $0x8] sm:$0xf]
  %v21 = vld [vmem:[%s0 + $0xc] sm:$0xf]
  %v22 = vld [vmem:[%s0 + $0x10] sm:$0xf]
  %v23 = vld [vmem:[%s0 + $0x14] sm:$0xf]
  %v24 = vld [vmem:[%s0 + $0x18] sm:$0xf]
  %v25 = vld [vmem:[%s0 + $0x1c] sm:$0xf]
  %v26 = vld [vmem:[%s0 + $0x20] sm:$0xf]
  %v27 = vld [vmem:[%s0 + $0x24] sm:$0xf]
  %v28 = vld [vmem:[%s0 + $0x28] sm:$0xf]
  %v29 = vld [vmem:[%s0 + $0x2c] sm:$0xf]
  %v30 = vld [vmem:[%s0 + $0x30] sm:$0xf]
  %v31 = vld [vmem:[%s0 + $0x34] sm:$0xf]
  %v32 = vld [vmem:[%s0 + $0x38] sm:$0xf]
  %v33 = vld [vmem:[%s0 + $0x3c] sm:$0xf]
  %v34 = vld [vmem:[%s0 + $0x40] sm:$0xf]
  %v35 = vld [vmem:[%s0 + $0x44] sm:$0xf]
  %v36 = vld [vmem:[%s0 + $0x48] sm:$0xf]
  %v37 = vld [vmem:[%s0 + $0x4c] sm:$0xf]
  %v38 = vld [vmem:[%s0 + $0x50] sm:$0xf]
  %v39 = vld [vmem:[%s0 + $0x54] sm:$0xf]
  %v40 = vld [vmem:[%s0 + $0x58] sm:$0xf]
  %v41 = vld [vmem:[%s0 + $0x5c] sm:$0xf]
  %v42 = vld [vmem:[%s0 + $0x60] sm:$0xf]
  %v43 = vld [vmem:[%s0 + $0x64] sm:$0xf]
  %v44 = vld [vmem:[%s0 + $0x68] sm:$0xf]
  %v45 = vld [vmem:[%s0 + $0x6c] sm:$0xf]
  %v46 = vld [vmem:[%s0 + $0x70] sm:$0xf]
  %v47 = vld [vmem:[%s0 + $0x74] sm:$0xf]
  %v48 = vld [vmem:[%s0 + $0x78] sm:$0xf]
  %v49 = vld [vmem:[%s0 + $0x7c] sm:$0x1]
  %v53 = vunpack.c.l.b16 %v15
  %v54 = vunpack.c.h.b16 %v15
  %v55 = vunpack.c.l.b16 %v16
  %v56 = vunpack.c.h.b16 %v16
  %v57 = vunpack.c.l.b16 %v17
  %v58 = vunpack.c.h.b16 %v17
  %v59 = vpack.c.b16 %v55, %v53
  %v60 = vpack.c.b16 %v56, %v54
  %v61 = vpack.c.b16 %v57, %v57
  %v62 = vpack.c.b16 %v58, %v58
  %v97 = vunpack.c.l.b16 %v18
  %v98 = vunpack.c.l.b16 %v19
  %v99 = vunpack.c.l.b16 %v20
  %v100 = vunpack.c.l.b16 %v21
  %v101 = vunpack.c.l.b16 %v22
  %v102 = vunpack.c.l.b16 %v23
  %v103 = vunpack.c.l.b16 %v24
  %v104 = vunpack.c.l.b16 %v25
  %v105 = vunpack.c.l.b16 %v26
  %v106 = vunpack.c.l.b16 %v27
  %v107 = vunpack.c.l.b16 %v28
  %v108 = vunpack.c.l.b16 %v29
  %v109 = vunpack.c.l.b16 %v30
  %v110 = vunpack.c.l.b16 %v31
  %v111 = vunpack.c.l.b16 %v32
  %v112 = vunpack.c.l.b16 %v33
  %v113 = vunpack.c.l.b16 %v34
  %v114 = vunpack.c.l.b16 %v35
  %v115 = vunpack.c.l.b16 %v36
  %v116 = vunpack.c.l.b16 %v37
  %v117 = vunpack.c.l.b16 %v38
  %v118 = vunpack.c.l.b16 %v39
  %v119 = vunpack.c.l.b16 %v40
  %v120 = vunpack.c.l.b16 %v41
  %v121 = vunpack.c.l.b16 %v42
  %v122 = vunpack.c.l.b16 %v43
  %v123 = vunpack.c.l.b16 %v44
  %v124 = vunpack.c.l.b16 %v45
  %v125 = vunpack.c.l.b16 %v46
  %v126 = vunpack.c.l.b16 %v47
  %v127 = vunpack.c.l.b16 %v48
  %v128 = vunpack.c.l.b16 %v49
  %v129 = vpack.c.b16 %v98, %v97
  %v130 = vpack.c.b16 %v100, %v99
  %v131 = vpack.c.b16 %v102, %v101
  %v132 = vpack.c.b16 %v104, %v103
  %v133 = vpack.c.b16 %v106, %v105
  %v134 = vpack.c.b16 %v108, %v107
  %v135 = vpack.c.b16 %v110, %v109
  %v136 = vpack.c.b16 %v112, %v111
  %v137 = vpack.c.b16 %v114, %v113
  %v138 = vpack.c.b16 %v116, %v115
  %v139 = vpack.c.b16 %v118, %v117
  %v140 = vpack.c.b16 %v120, %v119
  %v141 = vpack.c.b16 %v122, %v121
  %v142 = vpack.c.b16 %v124, %v123
  %v143 = vpack.c.b16 %v126, %v125
  %v144 = vpack.c.b16 %v128, %v127
  %vm160 = vcmask 998400
  %v162 = vsel %vm160, %v60, 0
  %v165 = vsel %vm160, %v62, 0
  %vm167 = vcmask 1044480
  %v169 = vsel %vm167, %v144, 0
  %171 = vmatprep.subr.bf16.mxu0 0
  %172 = vmatpush1.bf16.msra.mxu0 %v129
  %173 = vmatprep.subr.bf16.mxu0 0
  %174 = vmatpush1.bf16.msra.mxu0 %v130
  %175 = vmatprep.subr.bf16.mxu0 0
  %176 = vmatpush1.bf16.msra.mxu0 %v131
  %177 = vmatprep.subr.bf16.mxu0 0
  %178 = vmatpush1.bf16.msra.mxu0 %v132
  %179 = vmatprep.subr.bf16.mxu0 0
  %180 = vmatpush1.bf16.msra.mxu0 %v133
  %181 = vmatprep.subr.bf16.mxu0 0
  %182 = vmatpush1.bf16.msra.mxu0 %v134
  %183 = vmatprep.subr.bf16.mxu0 0
  %184 = vmatpush1.bf16.msra.mxu0 %v135
  %185 = vmatprep.subr.bf16.mxu0 0
  %186 = vmatpush1.bf16.msra.mxu0 %v136
  %187 = vmatprep.subr.bf16.mxu0 0
  %188 = vmatpush1.bf16.msra.mxu0 %v137
  %189 = vmatprep.subr.bf16.mxu0 0
  %190 = vmatpush1.bf16.msra.mxu0 %v138
  %191 = vmatprep.subr.bf16.mxu0 0
  %192 = vmatpush1.bf16.msra.mxu0 %v139
  %193 = vmatprep.subr.bf16.mxu0 0
  %194 = vmatpush1.bf16.msra.mxu0 %v140
  %195 = vmatprep.subr.bf16.mxu0 0
  %196 = vmatpush1.bf16.msra.mxu0 %v141
  %197 = vmatprep.subr.bf16.mxu0 0
  %198 = vmatpush1.bf16.msra.mxu0 %v142
  %199 = vmatprep.subr.bf16.mxu0 0
  %200 = vmatpush1.bf16.msra.mxu0 %v143
  %201 = vmatprep.subr.bf16.mxu0 0
  %202 = vmatpush1.bf16.msra.mxu0 %v169
  %203 = vmatprep.mubr.bf16.mxu0 %v162
  %204 = vmatmul.mubr.bf16.gmra.mrb[0].mxu0 %v59
  %v205 = vpop.f32.mrb[0].mxu0
  %v206 = vadd.f32 0.0, %v205
  %v207 = vpop.f32.mrb[0].mxu0
  %v208 = vpop.f32.mrb[0].mxu0
  %v209 = vadd.f32 0.0, %v208
  %v210 = vpop.f32.mrb[0].mxu0
  %211 = vmatprep.mubr.bf16.mxu0 %v165
  %212 = vmatmul.mubr.bf16.gmra.mrb[0].mxu0 %v61
  %v213 = vpop.f32.mrb[0].mxu0
  %v214 = vadd.f32 0.0, %v213
  %v215 = vpop.f32.mrb[0].mxu0
  %v216 = vpop.f32.mrb[0].mxu0
  %v217 = vpop.f32.mrb[0].mxu0
  %218 = vdwg.mxu0
  %s219 = scalar_lea.vmem %s0, 128
  %v220 = vld [vmem:[%s219] sm:$0xf]
  %v221 = vld [vmem:[%s219 + $0x4] sm:$0xf]
  %v222 = vld [vmem:[%s219 + $0x8] sm:$0xf]
  %v223 = vld [vmem:[%s219 + $0xc] sm:$0xf]
  %v224 = vld [vmem:[%s219 + $0x10] sm:$0xf]
  %v225 = vld [vmem:[%s219 + $0x14] sm:$0xf]
  %v226 = vld [vmem:[%s219 + $0x18] sm:$0xf]
  %v227 = vld [vmem:[%s219 + $0x1c] sm:$0xf]
  %v228 = vld [vmem:[%s219 + $0x20] sm:$0xf]
  %v229 = vld [vmem:[%s219 + $0x24] sm:$0xf]
  %v230 = vld [vmem:[%s219 + $0x28] sm:$0xf]
  %v231 = vld [vmem:[%s219 + $0x2c] sm:$0xf]
  %v232 = vld [vmem:[%s219 + $0x30] sm:$0xf]
  %v233 = vld [vmem:[%s219 + $0x34] sm:$0xf]
  %v234 = vld [vmem:[%s219 + $0x38] sm:$0xf]
  %v235 = vld [vmem:[%s219 + $0x3c] sm:$0xf]
  %v236 = vld [vmem:[%s219 + $0x40] sm:$0xf]
  %v237 = vld [vmem:[%s219 + $0x44] sm:$0xf]
  %v238 = vld [vmem:[%s219 + $0x48] sm:$0xf]
  %v239 = vld [vmem:[%s219 + $0x4c] sm:$0xf]
  %v240 = vld [vmem:[%s219 + $0x50] sm:$0xf]
  %v241 = vld [vmem:[%s219 + $0x54] sm:$0xf]
  %v242 = vld [vmem:[%s219 + $0x58] sm:$0xf]
  %v243 = vld [vmem:[%s219 + $0x5c] sm:$0xf]
  %v244 = vld [vmem:[%s219 + $0x60] sm:$0xf]
  %v245 = vld [vmem:[%s219 + $0x64] sm:$0xf]
  %v246 = vld [vmem:[%s219 + $0x68] sm:$0xf]
  %v247 = vld [vmem:[%s219 + $0x6c] sm:$0xf]
  %v248 = vld [vmem:[%s219 + $0x70] sm:$0xf]
  %v249 = vld [vmem:[%s219 + $0x74] sm:$0xf]
  %v250 = vld [vmem:[%s219 + $0x78] sm:$0xf]
  %v251 = vld [vmem:[%s219 + $0x7c] sm:$0x1]
  %v284 = vunpack.c.l.b16 %v220
  %v285 = vunpack.c.l.b16 %v221
  %v286 = vunpack.c.l.b16 %v222
  %v287 = vunpack.c.l.b16 %v223
  %v288 = vunpack.c.l.b16 %v224
  %v289 = vunpack.c.l.b16 %v225
  %v290 = vunpack.c.l.b16 %v226
  %v291 = vunpack.c.l.b16 %v227
  %v292 = vunpack.c.l.b16 %v228
  %v293 = vunpack.c.l.b16 %v229
  %v294 = vunpack.c.l.b16 %v230
  %v295 = vunpack.c.l.b16 %v231
  %v296 = vunpack.c.l.b16 %v232
  %v297 = vunpack.c.l.b16 %v233
  %v298 = vunpack.c.l.b16 %v234
  %v299 = vunpack.c.l.b16 %v235
  %v300 = vunpack.c.l.b16 %v236
  %v301 = vunpack.c.l.b16 %v237
  %v302 = vunpack.c.l.b16 %v238
  %v303 = vunpack.c.l.b16 %v239
  %v304 = vunpack.c.l.b16 %v240
  %v305 = vunpack.c.l.b16 %v241
  %v306 = vunpack.c.l.b16 %v242
  %v307 = vunpack.c.l.b16 %v243
  %v308 = vunpack.c.l.b16 %v244
  %v309 = vunpack.c.l.b16 %v245
  %v310 = vunpack.c.l.b16 %v246
  %v311 = vunpack.c.l.b16 %v247
  %v312 = vunpack.c.l.b16 %v248
  %v313 = vunpack.c.l.b16 %v249
  %v314 = vunpack.c.l.b16 %v250
  %v315 = vunpack.c.l.b16 %v251
  %v316 = vpack.c.b16 %v285, %v284
  %v317 = vpack.c.b16 %v287, %v286
  %v318 = vpack.c.b16 %v289, %v288
  %v319 = vpack.c.b16 %v291, %v290
  %v320 = vpack.c.b16 %v293, %v292
  %v321 = vpack.c.b16 %v295, %v294
  %v322 = vpack.c.b16 %v297, %v296
  %v323 = vpack.c.b16 %v299, %v298
  %v324 = vpack.c.b16 %v301, %v300
  %v325 = vpack.c.b16 %v303, %v302
  %v326 = vpack.c.b16 %v305, %v304
  %v327 = vpack.c.b16 %v307, %v306
  %v328 = vpack.c.b16 %v309, %v308
  %v329 = vpack.c.b16 %v311, %v310
  %v330 = vpack.c.b16 %v313, %v312
  %v331 = vpack.c.b16 %v315, %v314
  %v348 = vsel %vm167, %v331, 0
  %350 = vmatprep.subr.bf16.mxu0 0
  %351 = vmatpush1.bf16.msra.mxu0 %v316
  %352 = vmatprep.subr.bf16.mxu0 0
  %353 = vmatpush1.bf16.msra.mxu0 %v317
  %354 = vmatprep.subr.bf16.mxu0 0
  %355 = vmatpush1.bf16.msra.mxu0 %v318
  %356 = vmatprep.subr.bf16.mxu0 0
  %357 = vmatpush1.bf16.msra.mxu0 %v319
  %358 = vmatprep.subr.bf16.mxu0 0
  %359 = vmatpush1.bf16.msra.mxu0 %v320
  %360 = vmatprep.subr.bf16.mxu0 0
  %361 = vmatpush1.bf16.msra.mxu0 %v321
  %362 = vmatprep.subr.bf16.mxu0 0
  %363 = vmatpush1.bf16.msra.mxu0 %v322
  %364 = vmatprep.subr.bf16.mxu0 0
  %365 = vmatpush1.bf16.msra.mxu0 %v323
  %366 = vmatprep.subr.bf16.mxu0 0
  %367 = vmatpush1.bf16.msra.mxu0 %v324
  %368 = vmatprep.subr.bf16.mxu0 0
  %369 = vmatpush1.bf16.msra.mxu0 %v325
  %370 = vmatprep.subr.bf16.mxu0 0
  %371 = vmatpush1.bf16.msra.mxu0 %v326
  %372 = vmatprep.subr.bf16.mxu0 0
  %373 = vmatpush1.bf16.msra.mxu0 %v327
  %374 = vmatprep.subr.bf16.mxu0 0
  %375 = vmatpush1.bf16.msra.mxu0 %v328
  %376 = vmatprep.subr.bf16.mxu0 0
  %377 = vmatpush1.bf16.msra.mxu0 %v329
  %378 = vmatprep.subr.bf16.mxu0 0
  %379 = vmatpush1.bf16.msra.mxu0 %v330
  %380 = vmatprep.subr.bf16.mxu0 0
  %381 = vmatpush1.bf16.msra.mxu0 %v348
  %382 = vmatprep.mubr.bf16.mxu0 %v162
  %383 = vmatmul.mubr.bf16.gmra.mrb[0].mxu0 %v59
  %v384 = vpop.f32.mrb[0].mxu0
  %v385 = vadd.f32 0.0, %v384
  %v386 = vpop.f32.mrb[0].mxu0
  %v387 = vpop.f32.mrb[0].mxu0
  %v388 = vadd.f32 0.0, %v387
  %v389 = vpop.f32.mrb[0].mxu0
  %390 = vmatprep.mubr.bf16.mxu0 %v165
  %391 = vmatmul.mubr.bf16.gmra.mrb[0].mxu0 %v61
  %v392 = vpop.f32.mrb[0].mxu0
  %v393 = vadd.f32 0.0, %v392
  %v394 = vpop.f32.mrb[0].mxu0
  %v395 = vpop.f32.mrb[0].mxu0
  %v396 = vpop.f32.mrb[0].mxu0
  %397 = vdwg.mxu0
  %v398 = vmax.f32 %v206, %v385
  %v399 = vmax.f32 %v209, %v388
  %v400 = vmax.f32 %v214, %v393
  %s401 = scalar_lea.vmem %s0, 256
  %v402 = vld [vmem:[%s401] sm:$0xf]
  %v403 = vld [vmem:[%s401 + $0x4] sm:$0xf]
  %v404 = vld [vmem:[%s401 + $0x8] sm:$0xf]
  %v405 = vld [vmem:[%s401 + $0xc] sm:$0xf]
  %v406 = vld [vmem:[%s401 + $0x10] sm:$0xf]
  %v407 = vld [vmem:[%s401 + $0x14] sm:$0xf]
  %v408 = vld [vmem:[%s401 + $0x18] sm:$0xf]
  %v409 = vld [vmem:[%s401 + $0x1c] sm:$0xf]
  %v410 = vld [vmem:[%s401 + $0x20] sm:$0xf]
  %v411 = vld [vmem:[%s401 + $0x24] sm:$0xf]
  %v412 = vld [vmem:[%s401 + $0x28] sm:$0xf]
  %v413 = vld [vmem:[%s401 + $0x2c] sm:$0xf]
  %v414 = vld [vmem:[%s401 + $0x30] sm:$0xf]
  %v415 = vld [vmem:[%s401 + $0x34] sm:$0xf]
  %v416 = vld [vmem:[%s401 + $0x38] sm:$0xf]
  %v417 = vld [vmem:[%s401 + $0x3c] sm:$0xf]
  %v418 = vld [vmem:[%s401 + $0x40] sm:$0xf]
  %v419 = vld [vmem:[%s401 + $0x44] sm:$0xf]
  %v420 = vld [vmem:[%s401 + $0x48] sm:$0xf]
  %v421 = vld [vmem:[%s401 + $0x4c] sm:$0xf]
  %v422 = vld [vmem:[%s401 + $0x50] sm:$0xf]
  %v423 = vld [vmem:[%s401 + $0x54] sm:$0xf]
  %v424 = vld [vmem:[%s401 + $0x58] sm:$0xf]
  %v425 = vld [vmem:[%s401 + $0x5c] sm:$0xf]
  %v426 = vld [vmem:[%s401 + $0x60] sm:$0xf]
  %v427 = vld [vmem:[%s401 + $0x64] sm:$0xf]
  %v428 = vld [vmem:[%s401 + $0x68] sm:$0xf]
  %v429 = vld [vmem:[%s401 + $0x6c] sm:$0xf]
  %v430 = vld [vmem:[%s401 + $0x70] sm:$0xf]
  %v431 = vld [vmem:[%s401 + $0x74] sm:$0xf]
  %v432 = vld [vmem:[%s401 + $0x78] sm:$0xf]
  %v433 = vld [vmem:[%s401 + $0x7c] sm:$0x1]
  %v466 = vunpack.c.l.b16 %v402
  %v467 = vunpack.c.l.b16 %v403
  %v468 = vunpack.c.l.b16 %v404
  %v469 = vunpack.c.l.b16 %v405
  %v470 = vunpack.c.l.b16 %v406
  %v471 = vunpack.c.l.b16 %v407
  %v472 = vunpack.c.l.b16 %v408
  %v473 = vunpack.c.l.b16 %v409
  %v474 = vunpack.c.l.b16 %v410
  %v475 = vunpack.c.l.b16 %v411
  %v476 = vunpack.c.l.b16 %v412
  %v477 = vunpack.c.l.b16 %v413
  %v478 = vunpack.c.l.b16 %v414
  %v479 = vunpack.c.l.b16 %v415
  %v480 = vunpack.c.l.b16 %v416
  %v481 = vunpack.c.l.b16 %v417
  %v482 = vunpack.c.l.b16 %v418
  %v483 = vunpack.c.l.b16 %v419
  %v484 = vunpack.c.l.b16 %v420
  %v485 = vunpack.c.l.b16 %v421
  %v486 = vunpack.c.l.b16 %v422
  %v487 = vunpack.c.l.b16 %v423
  %v488 = vunpack.c.l.b16 %v424
  %v489 = vunpack.c.l.b16 %v425
  %v490 = vunpack.c.l.b16 %v426
  %v491 = vunpack.c.l.b16 %v427
  %v492 = vunpack.c.l.b16 %v428
  %v493 = vunpack.c.l.b16 %v429
  %v494 = vunpack.c.l.b16 %v430
  %v495 = vunpack.c.l.b16 %v431
  %v496 = vunpack.c.l.b16 %v432
  %v497 = vunpack.c.l.b16 %v433
  %v498 = vpack.c.b16 %v467, %v466
  %v499 = vpack.c.b16 %v469, %v468
  %v500 = vpack.c.b16 %v471, %v470
  %v501 = vpack.c.b16 %v473, %v472
  %v502 = vpack.c.b16 %v475, %v474
  %v503 = vpack.c.b16 %v477, %v476
  %v504 = vpack.c.b16 %v479, %v478
  %v505 = vpack.c.b16 %v481, %v480
  %v506 = vpack.c.b16 %v483, %v482
  %v507 = vpack.c.b16 %v485, %v484
  %v508 = vpack.c.b16 %v487, %v486
  %v509 = vpack.c.b16 %v489, %v488
  %v510 = vpack.c.b16 %v491, %v490
  %v511 = vpack.c.b16 %v493, %v492
  %v512 = vpack.c.b16 %v495, %v494
  %v513 = vpack.c.b16 %v497, %v496
  %v530 = vsel %vm167, %v513, 0
  %532 = vmatprep.subr.bf16.mxu0 0
  %533 = vmatpush1.bf16.msra.mxu0 %v498
  %534 = vmatprep.subr.bf16.mxu0 0
  %535 = vmatpush1.bf16.msra.mxu0 %v499
  %536 = vmatprep.subr.bf16.mxu0 0
  %537 = vmatpush1.bf16.msra.mxu0 %v500
  %538 = vmatprep.subr.bf16.mxu0 0
  %539 = vmatpush1.bf16.msra.mxu0 %v501
  %540 = vmatprep.subr.bf16.mxu0 0
  %541 = vmatpush1.bf16.msra.mxu0 %v502
  %542 = vmatprep.subr.bf16.mxu0 0
  %543 = vmatpush1.bf16.msra.mxu0 %v503
  %544 = vmatprep.subr.bf16.mxu0 0
  %545 = vmatpush1.bf16.msra.mxu0 %v504
  %546 = vmatprep.subr.bf16.mxu0 0
  %547 = vmatpush1.bf16.msra.mxu0 %v505
  %548 = vmatprep.subr.bf16.mxu0 0
  %549 = vmatpush1.bf16.msra.mxu0 %v506
  %550 = vmatprep.subr.bf16.mxu0 0
  %551 = vmatpush1.bf16.msra.mxu0 %v507
  %552 = vmatprep.subr.bf16.mxu0 0
  %553 = vmatpush1.bf16.msra.mxu0 %v508
  %554 = vmatprep.subr.bf16.mxu0 0
  %555 = vmatpush1.bf16.msra.mxu0 %v509
  %556 = vmatprep.subr.bf16.mxu0 0
  %557 = vmatpush1.bf16.msra.mxu0 %v510
  %558 = vmatprep.subr.bf16.mxu0 0
  %559 = vmatpush1.bf16.msra.mxu0 %v511
  %560 = vmatprep.subr.bf16.mxu0 0
  %561 = vmatpush1.bf16.msra.mxu0 %v512
  %562 = vmatprep.subr.bf16.mxu0 0
  %563 = vmatpush1.bf16.msra.mxu0 %v530
  %564 = vmatprep.mubr.bf16.mxu0 %v162
  %565 = vmatmul.mubr.bf16.gmra.mrb[0].mxu0 %v59
  %v566 = vpop.f32.mrb[0].mxu0
  %v567 = vadd.f32 0.0, %v566
  %v568 = vpop.f32.mrb[0].mxu0
  %v569 = vpop.f32.mrb[0].mxu0
  %v570 = vadd.f32 0.0, %v569
  %v571 = vpop.f32.mrb[0].mxu0
  %572 = vmatprep.mubr.bf16.mxu0 %v165
  %573 = vmatmul.mubr.bf16.gmra.mrb[0].mxu0 %v61
  %v574 = vpop.f32.mrb[0].mxu0
  %v575 = vadd.f32 0.0, %v574
  %v576 = vpop.f32.mrb[0].mxu0
  %v577 = vpop.f32.mrb[0].mxu0
  %v578 = vpop.f32.mrb[0].mxu0
  %579 = vdwg.mxu0
  %v580 = vmax.f32 %v398, %v567
  %v581 = vmax.f32 %v399, %v570
  %v582 = vmax.f32 %v400, %v575
  %s583 = scalar_lea.vmem %s0, 384
  %v584 = vld [vmem:[%s583] sm:$0xf]
  %v585 = vld [vmem:[%s583 + $0x4] sm:$0xf]
  %v586 = vld [vmem:[%s583 + $0x8] sm:$0xf]
  %v587 = vld [vmem:[%s583 + $0xc] sm:$0xf]
  %v588 = vld [vmem:[%s583 + $0x10] sm:$0xf]
  %v589 = vld [vmem:[%s583 + $0x14] sm:$0xf]
  %v590 = vld [vmem:[%s583 + $0x18] sm:$0xf]
  %v591 = vld [vmem:[%s583 + $0x1c] sm:$0xf]
  %v592 = vld [vmem:[%s583 + $0x20] sm:$0xf]
  %v593 = vld [vmem:[%s583 + $0x24] sm:$0xf]
  %v594 = vld [vmem:[%s583 + $0x28] sm:$0xf]
  %v595 = vld [vmem:[%s583 + $0x2c] sm:$0xf]
  %v596 = vld [vmem:[%s583 + $0x30] sm:$0xf]
  %v597 = vld [vmem:[%s583 + $0x34] sm:$0xf]
  %v598 = vld [vmem:[%s583 + $0x38] sm:$0xf]
  %v599 = vld [vmem:[%s583 + $0x3c] sm:$0xf]
  %v600 = vld [vmem:[%s583 + $0x40] sm:$0xf]
  %v601 = vld [vmem:[%s583 + $0x44] sm:$0xf]
  %v602 = vld [vmem:[%s583 + $0x48] sm:$0xf]
  %v603 = vld [vmem:[%s583 + $0x4c] sm:$0xf]
  %v604 = vld [vmem:[%s583 + $0x50] sm:$0xf]
  %v605 = vld [vmem:[%s583 + $0x54] sm:$0xf]
  %v606 = vld [vmem:[%s583 + $0x58] sm:$0xf]
  %v607 = vld [vmem:[%s583 + $0x5c] sm:$0xf]
  %v608 = vld [vmem:[%s583 + $0x60] sm:$0xf]
  %v609 = vld [vmem:[%s583 + $0x64] sm:$0xf]
  %v610 = vld [vmem:[%s583 + $0x68] sm:$0xf]
  %v611 = vld [vmem:[%s583 + $0x6c] sm:$0xf]
  %v612 = vld [vmem:[%s583 + $0x70] sm:$0xf]
  %v613 = vld [vmem:[%s583 + $0x74] sm:$0xf]
  %v614 = vld [vmem:[%s583 + $0x78] sm:$0xf]
  %v615 = vld [vmem:[%s583 + $0x7c] sm:$0x1]
  %v648 = vunpack.c.l.b16 %v584
  %v649 = vunpack.c.l.b16 %v585
  %v650 = vunpack.c.l.b16 %v586
  %v651 = vunpack.c.l.b16 %v587
  %v652 = vunpack.c.l.b16 %v588
  %v653 = vunpack.c.l.b16 %v589
  %v654 = vunpack.c.l.b16 %v590
  %v655 = vunpack.c.l.b16 %v591
  %v656 = vunpack.c.l.b16 %v592
  %v657 = vunpack.c.l.b16 %v593
  %v658 = vunpack.c.l.b16 %v594
  %v659 = vunpack.c.l.b16 %v595
  %v660 = vunpack.c.l.b16 %v596
  %v661 = vunpack.c.l.b16 %v597
  %v662 = vunpack.c.l.b16 %v598
  %v663 = vunpack.c.l.b16 %v599
  %v664 = vunpack.c.l.b16 %v600
  %v665 = vunpack.c.l.b16 %v601
  %v666 = vunpack.c.l.b16 %v602
  %v667 = vunpack.c.l.b16 %v603
  %v668 = vunpack.c.l.b16 %v604
  %v669 = vunpack.c.l.b16 %v605
  %v670 = vunpack.c.l.b16 %v606
  %v671 = vunpack.c.l.b16 %v607
  %v672 = vunpack.c.l.b16 %v608
  %v673 = vunpack.c.l.b16 %v609
  %v674 = vunpack.c.l.b16 %v610
  %v675 = vunpack.c.l.b16 %v611
  %v676 = vunpack.c.l.b16 %v612
  %v677 = vunpack.c.l.b16 %v613
  %v678 = vunpack.c.l.b16 %v614
  %v679 = vunpack.c.l.b16 %v615
  %v680 = vpack.c.b16 %v649, %v648
  %v681 = vpack.c.b16 %v651, %v650
  %v682 = vpack.c.b16 %v653, %v652
  %v683 = vpack.c.b16 %v655, %v654
  %v684 = vpack.c.b16 %v657, %v656
  %v685 = vpack.c.b16 %v659, %v658
  %v686 = vpack.c.b16 %v661, %v660
  %v687 = vpack.c.b16 %v663, %v662
  %v688 = vpack.c.b16 %v665, %v664
  %v689 = vpack.c.b16 %v667, %v666
  %v690 = vpack.c.b16 %v669, %v668
  %v691 = vpack.c.b16 %v671, %v670
  %v692 = vpack.c.b16 %v673, %v672
  %v693 = vpack.c.b16 %v675, %v674
  %v694 = vpack.c.b16 %v677, %v676
  %v695 = vpack.c.b16 %v679, %v678
  %v712 = vsel %vm167, %v695, 0
  %714 = vmatprep.subr.bf16.mxu0 0
  %715 = vmatpush1.bf16.msra.mxu0 %v680
  %716 = vmatprep.subr.bf16.mxu0 0
  %717 = vmatpush1.bf16.msra.mxu0 %v681
  %718 = vmatprep.subr.bf16.mxu0 0
  %719 = vmatpush1.bf16.msra.mxu0 %v682
  %720 = vmatprep.subr.bf16.mxu0 0
  %721 = vmatpush1.bf16.msra.mxu0 %v683
  %722 = vmatprep.subr.bf16.mxu0 0
  %723 = vmatpush1.bf16.msra.mxu0 %v684
  %724 = vmatprep.subr.bf16.mxu0 0
  %725 = vmatpush1.bf16.msra.mxu0 %v685
  %726 = vmatprep.subr.bf16.mxu0 0
  %727 = vmatpush1.bf16.msra.mxu0 %v686
  %728 = vmatprep.subr.bf16.mxu0 0
  %729 = vmatpush1.bf16.msra.mxu0 %v687
  %730 = vmatprep.subr.bf16.mxu0 0
  %731 = vmatpush1.bf16.msra.mxu0 %v688
  %732 = vmatprep.subr.bf16.mxu0 0
  %733 = vmatpush1.bf16.msra.mxu0 %v689
  %734 = vmatprep.subr.bf16.mxu0 0
  %735 = vmatpush1.bf16.msra.mxu0 %v690
  %736 = vmatprep.subr.bf16.mxu0 0
  %737 = vmatpush1.bf16.msra.mxu0 %v691
  %738 = vmatprep.subr.bf16.mxu0 0
  %739 = vmatpush1.bf16.msra.mxu0 %v692
  %740 = vmatprep.subr.bf16.mxu0 0
  %741 = vmatpush1.bf16.msra.mxu0 %v693
  %742 = vmatprep.subr.bf16.mxu0 0
  %743 = vmatpush1.bf16.msra.mxu0 %v694
  %744 = vmatprep.subr.bf16.mxu0 0
  %745 = vmatpush1.bf16.msra.mxu0 %v712
  %746 = vmatprep.mubr.bf16.mxu0 %v162
  %747 = vmatmul.mubr.bf16.gmra.mrb[0].mxu0 %v59
  %v748 = vpop.f32.mrb[0].mxu0
  %v749 = vadd.f32 0.0, %v748
  %v750 = vpop.f32.mrb[0].mxu0
  %v751 = vpop.f32.mrb[0].mxu0
  %v752 = vadd.f32 0.0, %v751
  %v753 = vpop.f32.mrb[0].mxu0
  %754 = vmatprep.mubr.bf16.mxu0 %v165
  %755 = vmatmul.mubr.bf16.gmra.mrb[0].mxu0 %v61
  %v756 = vpop.f32.mrb[0].mxu0
  %v757 = vadd.f32 0.0, %v756
  %v758 = vpop.f32.mrb[0].mxu0
  %v759 = vpop.f32.mrb[0].mxu0
  %v760 = vpop.f32.mrb[0].mxu0
  %761 = vdwg.mxu0
  %v762 = vmax.f32 %v580, %v749
  %v763 = vmax.f32 %v581, %v752
  %v764 = vmax.f32 %v582, %v757
  %v765 = vld [vmem:[%s2] sm:$0xff]
  %v766 = vld [vmem:[%s2 + $0x8] sm:$0xff]
  %v767 = vld [vmem:[%s2 + $0x10] sm:$0xf]
  %769 = vset.pattern.permute.xlu0 0
  %770 = vperm.xlu0 %769, %v765
  %v771 = vpop.permute.xlu0 %770
  %774 = vset.pattern.permute.xlu0 0
  %775 = vperm.xlu0 %774, %v766
  %v776 = vpop.permute.xlu0 %775
  %779 = vset.pattern.permute.xlu0 0
  %780 = vperm.xlu0 %779, %v767
  %v781 = vpop.permute.xlu0 %780
  %v783 = vadd.f32 %v762, %v771
  %v784 = vadd.f32 %v763, %v776
  %v785 = vadd.f32 %v764, %v781
  %v786 = vmax.f32 %v783, 0.0
  %v787 = vmax.f32 %v784, 0.0
  %v788 = vmax.f32 %v785, 0.0
  %789 = vst [vmem:[%s3] sm:$0xff] %v786
  %790 = vst [vmem:[%s3 + $0x8] sm:$0xff] %v787
  %791 = vst [vmem:[%s3 + $0x10] sm:$0xf] %v788
  // Predicated region
  $region14: #{stn_forward.12} parent=0 // pred_check
    _
  $region15: #{stn_forward.12} parent=0 // pred_check_branch
    %793 = sbr.rel (0) target = $region17
  $region16: #{stn_forward.12} parent=0 // pred_region
    _
  $region17: #{stn_forward.12} parent=0 // pred_fallthru
    _
  // Predicated region
  $region18: #{stn_forward.12} parent=0 // pred_check
    _
  $region19: #{stn_forward.12} parent=0 // pred_check_branch
    %795 = sbr.rel (0) target = $region21
  $region20: #{stn_forward.12} parent=0 // pred_region
    _
  $region21: #{stn_forward.12} parent=0 // pred_fallthru
    _

// kernel: stn_forward.13
$region0: #{stn_forward.13}
  #allocation0 [shape = 'u32[]', space=smem, size = 0x4, offset = 0x4, fixed_abs, tag = 'smem constant byte address 0x4 - core index']
  #allocation1 [shape = 'u32[144,128]{1,0:T(1,128)}', space=vmem, size = 0x12000, scoped, tag = 'internal scratch']
  %s0 = inlined_call_operand.vmem [shape: bf16[8,320], index: 0, kind: input, shape index: {}]
  %s1 = inlined_call_operand.vmem [shape: bf16[320,50], index: 1, kind: input, shape index: {}]
  %s2 = inlined_call_operand.vmem [shape: f32[1,50], index: 2, kind: input, shape index: {}]
  %s3 = inlined_call_operand.vmem [shape: bf16[50,10], index: 3, kind: input, shape index: {}]
  %s4 = inlined_call_operand.vmem [shape: f32[1,10], index: 4, kind: input, shape index: {}]
  %s5 = inlined_call_operand.vmem [shape: f32[8,10], index: 5, kind: output, shape index: {}]
  %s6 = sld [smem:[#allocation0]]
  $region30: #{stn_forward.13} parent=0
    _
  %s8 = ssub.s32 1, %s6
  %s9 = scalar_select 0, %s8, %s6
  // Predicated region
  $region2: #{stn_forward.13} parent=0 // pred_check
    _
  $region3: #{stn_forward.13} parent=0 // pred_check_branch
    %11 = sbr.rel (0) target = $region5
  $region4: #{stn_forward.13} parent=0 // pred_region
    _
  $region5: #{stn_forward.13} parent=0 // pred_fallthru
    _
  // Predicated region
  $region6: #{stn_forward.13} parent=0 // pred_check
    _
  $region7: #{stn_forward.13} parent=0 // pred_check_branch
    %13 = sbr.rel (0) target = $region9
  $region8: #{stn_forward.13} parent=0 // pred_region
    _
  $region9: #{stn_forward.13} parent=0 // pred_fallthru
    _
  // Predicated region
  $region10: #{stn_forward.13} parent=0 // pred_check
    _
  $region11: #{stn_forward.13} parent=0 // pred_check_branch
    %15 = sbr.rel (0) target = $region13
  $region12: #{stn_forward.13} parent=0 // pred_region
    _
  $region13: #{stn_forward.13} parent=0 // pred_fallthru
    _
  // Predicated region
  $region14: #{stn_forward.13} parent=0 // pred_check
    _
  $region15: #{stn_forward.13} parent=0 // pred_check_branch
    %17 = sbr.rel (0) target = $region17
  $region16: #{stn_forward.13} parent=0 // pred_region
    _
  $region17: #{stn_forward.13} parent=0 // pred_fallthru
    _
  // Predicated region
  $region18: #{stn_forward.13} parent=0 // pred_check
    _
  $region19: #{stn_forward.13} parent=0 // pred_check_branch
    %19 = sbr.rel (0) target = $region21
  $region20: #{stn_forward.13} parent=0 // pred_region
    _
  $region21: #{stn_forward.13} parent=0 // pred_fallthru
    _
  %v21 = vld [vmem:[%s0] sm:$0xff]
  %v22 = vld [vmem:[%s0 + $0x8] sm:$0xf]
  %v23 = vld [vmem:[%s1] sm:$0xf]
  %v24 = vld [vmem:[%s1 + $0x4] sm:$0xf]
  %v25 = vld [vmem:[%s1 + $0x8] sm:$0xf]
  %v26 = vld [vmem:[%s1 + $0xc] sm:$0xf]
  %v27 = vld [vmem:[%s1 + $0x10] sm:$0xf]
  %v28 = vld [vmem:[%s1 + $0x14] sm:$0xf]
  %v29 = vld [vmem:[%s1 + $0x18] sm:$0xf]
  %v30 = vld [vmem:[%s1 + $0x1c] sm:$0xf]
  %v31 = vld [vmem:[%s1 + $0x20] sm:$0xf]
  %v32 = vld [vmem:[%s1 + $0x24] sm:$0xf]
  %v33 = vld [vmem:[%s1 + $0x28] sm:$0xf]
  %v34 = vld [vmem:[%s1 + $0x2c] sm:$0xf]
  %v35 = vld [vmem:[%s1 + $0x30] sm:$0xf]
  %v36 = vld [vmem:[%s1 + $0x34] sm:$0xf]
  %v37 = vld [vmem:[%s1 + $0x38] sm:$0xf]
  %v38 = vld [vmem:[%s1 + $0x3c] sm:$0xf]
  %v39 = vld [vmem:[%s1 + $0x40] sm:$0xf]
  %v40 = vld [vmem:[%s1 + $0x44] sm:$0xf]
  %v41 = vld [vmem:[%s1 + $0x48] sm:$0xf]
  %v42 = vld [vmem:[%s1 + $0x4c] sm:$0xf]
  %v43 = vld [vmem:[%s1 + $0x50] sm:$0xf]
  %v44 = vld [vmem:[%s1 + $0x54] sm:$0xf]
  %v45 = vld [vmem:[%s1 + $0x58] sm:$0xf]
  %v46 = vld [vmem:[%s1 + $0x5c] sm:$0xf]
  %v47 = vld [vmem:[%s1 + $0x60] sm:$0xf]
  %v48 = vld [vmem:[%s1 + $0x64] sm:$0xf]
  %v49 = vld [vmem:[%s1 + $0x68] sm:$0xf]
  %v50 = vld [vmem:[%s1 + $0x6c] sm:$0xf]
  %v51 = vld [vmem:[%s1 + $0x70] sm:$0xf]
  %v52 = vld [vmem:[%s1 + $0x74] sm:$0xf]
  %v53 = vld [vmem:[%s1 + $0x78] sm:$0xf]
  %v54 = vld [vmem:[%s1 + $0x7c] sm:$0xf]
  %v55 = vld [vmem:[%s1 + $0x80] sm:$0xf]
  %v56 = vld [vmem:[%s1 + $0x84] sm:$0xf]
  %v57 = vld [vmem:[%s1 + $0x88] sm:$0xf]
  %v58 = vld [vmem:[%s1 + $0x8c] sm:$0xf]
  %v59 = vld [vmem:[%s1 + $0x90] sm:$0xf]
  %v60 = vld [vmem:[%s1 + $0x94] sm:$0xf]
  %v61 = vld [vmem:[%s1 + $0x98] sm:$0xf]
  %v62 = vld [vmem:[%s1 + $0x9c] sm:$0xf]
  %v63 = vld [vmem:[%s2] sm:$0x1]
  %v65 = vlaneseq
  %v66 = vshrl.u32 %v65, 7
  %v67 = vsub.s32 0, %v66
  %v68 = vrot.slane %v63, %v67
  %v72 = vunpack.c.l.b16 %v21
  %v73 = vunpack.c.h.b16 %v21
  %v74 = vunpack.c.l.b16 %v22
  %v75 = vpack.c.b16 %v72, %v72
  %v76 = vpack.c.b16 %v73, %v73
  %v77 = vpack.c.b16 %v74, %v74
  %v120 = vunpack.c.l.b16 %v23
  %v121 = vunpack.c.l.b16 %v24
  %v122 = vunpack.c.l.b16 %v25
  %v123 = vunpack.c.l.b16 %v26
  %v124 = vunpack.c.l.b16 %v27
  %v125 = vunpack.c.l.b16 %v28
  %v126 = vunpack.c.l.b16 %v29
  %v127 = vunpack.c.l.b16 %v30
  %v128 = vunpack.c.l.b16 %v31
  %v129 = vunpack.c.l.b16 %v32
  %v130 = vunpack.c.l.b16 %v33
  %v131 = vunpack.c.l.b16 %v34
  %v132 = vunpack.c.l.b16 %v35
  %v133 = vunpack.c.l.b16 %v36
  %v134 = vunpack.c.l.b16 %v37
  %v135 = vunpack.c.l.b16 %v38
  %v136 = vunpack.c.l.b16 %v39
  %v137 = vunpack.c.l.b16 %v40
  %v138 = vunpack.c.l.b16 %v41
  %v139 = vunpack.c.l.b16 %v42
  %v140 = vunpack.c.l.b16 %v43
  %v141 = vunpack.c.l.b16 %v44
  %v142 = vunpack.c.l.b16 %v45
  %v143 = vunpack.c.l.b16 %v46
  %v144 = vunpack.c.l.b16 %v47
  %v145 = vunpack.c.l.b16 %v48
  %v146 = vunpack.c.l.b16 %v49
  %v147 = vunpack.c.l.b16 %v50
  %v148 = vunpack.c.l.b16 %v51
  %v149 = vunpack.c.l.b16 %v52
  %v150 = vunpack.c.l.b16 %v53
  %v151 = vunpack.c.l.b16 %v54
  %v152 = vunpack.c.l.b16 %v55
  %v153 = vunpack.c.l.b16 %v56
  %v154 = vunpack.c.l.b16 %v57
  %v155 = vunpack.c.l.b16 %v58
  %v156 = vunpack.c.l.b16 %v59
  %v157 = vunpack.c.l.b16 %v60
  %v158 = vunpack.c.l.b16 %v61
  %v159 = vunpack.c.l.b16 %v62
  %v160 = vpack.c.b16 %v121, %v120
  %v161 = vpack.c.b16 %v123, %v122
  %v162 = vpack.c.b16 %v125, %v124
  %v163 = vpack.c.b16 %v127, %v126
  %v164 = vpack.c.b16 %v129, %v128
  %v165 = vpack.c.b16 %v131, %v130
  %v166 = vpack.c.b16 %v133, %v132
  %v167 = vpack.c.b16 %v135, %v134
  %v168 = vpack.c.b16 %v137, %v136
  %v169 = vpack.c.b16 %v139, %v138
  %v170 = vpack.c.b16 %v141, %v140
  %v171 = vpack.c.b16 %v143, %v142
  %v172 = vpack.c.b16 %v145, %v144
  %v173 = vpack.c.b16 %v147, %v146
  %v174 = vpack.c.b16 %v149, %v148
  %v175 = vpack.c.b16 %v151, %v150
  %v176 = vpack.c.b16 %v153, %v152
  %v177 = vpack.c.b16 %v155, %v154
  %v178 = vpack.c.b16 %v157, %v156
  %v179 = vpack.c.b16 %v159, %v158
  %vm200 = vcmask 523264
  %v202 = vsel %vm200, %v77, 0
  %204 = vmatprep.subr.bf16.mxu0 0
  %205 = vmatpush1.bf16.msra.mxu0 %v160
  %206 = vmatprep.subr.bf16.mxu0 0
  %207 = vmatpush1.bf16.msra.mxu0 %v161
  %208 = vmatprep.subr.bf16.mxu0 0
  %209 = vmatpush1.bf16.msra.mxu0 %v162
  %210 = vmatprep.subr.bf16.mxu0 0
  %211 = vmatpush1.bf16.msra.mxu0 %v163
  %212 = vmatprep.subr.bf16.mxu0 0
  %213 = vmatpush1.bf16.msra.mxu0 %v164
  %214 = vmatprep.subr.bf16.mxu0 0
  %215 = vmatpush1.bf16.msra.mxu0 %v165
  %216 = vmatprep.subr.bf16.mxu0 0
  %217 = vmatpush1.bf16.msra.mxu0 %v166
  %218 = vmatprep.subr.bf16.mxu0 0
  %219 = vmatpush1.bf16.msra.mxu0 %v167
  %220 = vmatprep.subr.bf16.mxu0 0
  %221 = vmatpush1.bf16.msra.mxu0 %v168
  %222 = vmatprep.subr.bf16.mxu0 0
  %223 = vmatpush1.bf16.msra.mxu0 %v169
  %224 = vmatprep.subr.bf16.mxu0 0
  %225 = vmatpush1.bf16.msra.mxu0 %v170
  %226 = vmatprep.subr.bf16.mxu0 0
  %227 = vmatpush1.bf16.msra.mxu0 %v171
  %228 = vmatprep.subr.bf16.mxu0 0
  %229 = vmatpush1.bf16.msra.mxu0 %v172
  %230 = vmatprep.subr.bf16.mxu0 0
  %231 = vmatpush1.bf16.msra.mxu0 %v173
  %232 = vmatprep.subr.bf16.mxu0 0
  %233 = vmatpush1.bf16.msra.mxu0 %v174
  %234 = vmatprep.subr.bf16.mxu0 0
  %235 = vmatpush1.bf16.msra.mxu0 %v175
  %236 = vmatprep.mubr.bf16.mxu0 %v76
  %237 = vmatmul.mubr.bf16.gmra.mrb[0].mxu0 %v75
  %v238 = vpop.f32.mrb[0].mxu0
  %v239 = vadd.f32 %v68, %v238
  %v240 = vpop.f32.mrb[0].mxu0
  %v241 = vpop.f32.mrb[0].mxu0
  %v242 = vpop.f32.mrb[0].mxu0
  %243 = vdwg.mxu0
  %244 = vmatprep.subr.bf16.mxu0 0
  %245 = vmatpush1.bf16.msra.mxu0 %v176
  %246 = vmatprep.subr.bf16.mxu0 0
  %247 = vmatpush1.bf16.msra.mxu0 %v177
  %248 = vmatprep.subr.bf16.mxu0 0
  %249 = vmatpush1.bf16.msra.mxu0 %v178
  %250 = vmatprep.subr.bf16.mxu0 0
  %251 = vmatpush1.bf16.msra.mxu0 %v179
  %252 = vmatprep.subr.bf16.mxu0 0
  %253 = vmatpush1.bf16.msra.mxu0 0
  %254 = vmatprep.subr.bf16.mxu0 0
  %255 = vmatpush1.bf16.msra.mxu0 0
  %256 = vmatprep.subr.bf16.mxu0 0
  %257 = vmatpush1.bf16.msra.mxu0 0
  %258 = vmatprep.subr.bf16.mxu0 0
  %259 = vmatpush1.bf16.msra.mxu0 0
  %260 = vmatprep.subr.bf16.mxu0 0
  %261 = vmatpush1.bf16.msra.mxu0 0
  %262 = vmatprep.subr.bf16.mxu0 0
  %263 = vmatpush1.bf16.msra.mxu0 0
  %264 = vmatprep.subr.bf16.mxu0 0
  %265 = vmatpush1.bf16.msra.mxu0 0
  %266 = vmatprep.subr.bf16.mxu0 0
  %267 = vmatpush1.bf16.msra.mxu0 0
  %268 = vmatprep.subr.bf16.mxu0 0
  %269 = vmatpush1.bf16.msra.mxu0 0
  %270 = vmatprep.subr.bf16.mxu0 0
  %271 = vmatpush1.bf16.msra.mxu0 0
  %272 = vmatprep.subr.bf16.mxu0 0
  %273 = vmatpush1.bf16.msra.mxu0 0
  %274 = vmatprep.subr.bf16.mxu0 0
  %275 = vmatpush1.bf16.msra.mxu0 0
  %276 = vmatprep.mubr.bf16.mxu0 0
  %277 = vmatmul.mubr.bf16.gmra.mrb[0].mxu0 %v202
  %v278 = vpop.f32.mrb[0].mxu0
  %v279 = vadd.f32 %v239, %v278
  %v280 = vpop.f32.mrb[0].mxu0
  %v281 = vpop.f32.mrb[0].mxu0
  %v282 = vpop.f32.mrb[0].mxu0
  %283 = vdwg.mxu0
  %v284 = vmax.f32 %v279, 0.0
  %v285 = vpack.c.bf16 %v284, %v284
  %v286 = vld [vmem:[%s3] sm:$0xf]
  %v287 = vld [vmem:[%s3 + $0x4] sm:$0xf]
  %v288 = vld [vmem:[%s3 + $0x8] sm:$0xf]
  %v289 = vld [vmem:[%s3 + $0xc] sm:$0xf]
  %v290 = vld [vmem:[%s3 + $0x10] sm:$0xf]
  %v291 = vld [vmem:[%s3 + $0x14] sm:$0xf]
  %v292 = vld [vmem:[%s3 + $0x18] sm:$0x1]
  %v293 = vld [vmem:[%s4] sm:$0x1]
  %v295 = vlaneseq
  %v296 = vshrl.u32 %v295, 7
  %v297 = vsub.s32 0, %v296
  %v298 = vrot.slane %v293, %v297
  %v307 = vunpack.c.l.b16 %v286
  %v308 = vunpack.c.l.b16 %v287
  %v309 = vunpack.c.l.b16 %v288
  %v310 = vunpack.c.l.b16 %v289
  %v311 = vunpack.c.l.b16 %v290
  %v312 = vunpack.c.l.b16 %v291
  %v313 = vunpack.c.l.b16 %v292
  %v314 = vpack.c.b16 %v308, %v307
  %v315 = vpack.c.b16 %v310, %v309
  %v316 = vpack.c.b16 %v312, %v311
  %v317 = vpack.c.b16 %v313, %v313
  %vm321 = vcmask 408576
  %v323 = vsel %vm321, %v285, 0
  %vm325 = vcmask 1040384
  %v327 = vsel %vm325, %v317, 0
  %329 = vmatprep.subr.bf16.mxu0 0
  %330 = vmatpush1.bf16.msra.mxu0 %v314
  %331 = vmatprep.subr.bf16.mxu0 0
  %332 = vmatpush1.bf16.msra.mxu0 %v315
  %333 = vmatprep.subr.bf16.mxu0 0
  %334 = vmatpush1.bf16.msra.mxu0 %v316
  %335 = vmatprep.subr.bf16.mxu0 0
  %336 = vmatpush1.bf16.msra.mxu0 %v327
  %337 = vmatprep.subr.bf16.mxu0 0
  %338 = vmatpush1.bf16.msra.mxu0 0
  %339 = vmatprep.subr.bf16.mxu0 0
  %340 = vmatpush1.bf16.msra.mxu0 0
  %341 = vmatprep.subr.bf16.mxu0 0
  %342 = vmatpush1.bf16.msra.mxu0 0
  %343 = vmatprep.subr.bf16.mxu0 0
  %344 = vmatpush1.bf16.msra.mxu0 0
  %345 = vmatprep.subr.bf16.mxu0 0
  %346 = vmatpush1.bf16.msra.mxu0 0
  %347 = vmatprep.subr.bf16.mxu0 0
  %348 = vmatpush1.bf16.msra.mxu0 0
  %349 = vmatprep.subr.bf16.mxu0 0
  %350 = vmatpush1.bf16.msra.mxu0 0
  %351 = vmatprep.subr.bf16.mxu0 0
  %352 = vmatpush1.bf16.msra.mxu0 0
  %353 = vmatprep.subr.bf16.mxu0 0
  %354 = vmatpush1.bf16.msra.mxu0 0
  %355 = vmatprep.subr.bf16.mxu0 0
  %356 = vmatpush1.bf16.msra.mxu0 0
  %357 = vmatprep.subr.bf16.mxu0 0
  %358 = vmatpush1.bf16.msra.mxu0 0
  %359 = vmatprep.subr.bf16.mxu0 0
  %360 = vmatpush1.bf16.msra.mxu0 0
  %361 = vmatprep.mubr.bf16.mxu0 0
  %362 = vmatmul.mubr.bf16.gmra.mrb[0].mxu0 %v323
  %v363 = vpop.f32.mrb[0].mxu0
  %v364 = vadd.f32 %v298, %v363
  %v365 = vpop.f32.mrb[0].mxu0
  %v366 = vpop.f32.mrb[0].mxu0
  %v367 = vpop.f32.mrb[0].mxu0
  %368 = vdwg.mxu0
  %vm369 = vcmask 80896
  %v370 = vsel %vm369, %v364, -inf
  %371 = vmax.xlane.f32.xlu0 %v370
  %v372 = vpop.xlane.xlu0 %371
  %v373 = vsub.f32 %v364, %v372
  %v374 = vmul.f32 %v373, 1.442695
  %v375 = vpow.pop %v374
  %v376 = vsel %vm369, %v375, 0.0
  %377 = vadd.xlane.f32.xlu0 %v376
  %v378 = vpop.xlane.xlu0 %377
  %v379 = vlog2.pop %v378
  %v380 = vmul.f32 %v379, 0.6931472
  %v381 = vsub.f32 %v373, %v380
  %382 = vst.msk [vmem:[%s5] sm:$0xff] %vm369, %v381
  // Predicated region
  $region22: #{stn_forward.13} parent=0 // pred_check
    _
  $region23: #{stn_forward.13} parent=0 // pred_check_branch
    %384 = sbr.rel (0) target = $region25
  $region24: #{stn_forward.13} parent=0 // pred_region
    _
  $region25: #{stn_forward.13} parent=0 // pred_fallthru
    _
  // Predicated region
  $region26: #{stn_forward.13} parent=0 // pred_check
    _
  $region27: #{stn_forward.13} parent=0 // pred_check_branch
    %386 = sbr.rel (0) target = $region29
  $region28: #{stn_forward.13} parent=0 // pred_region
    _
  $region29: #{stn_forward.13} parent=0 // pred_fallthru
    _

</llo_original>
